<compile_context>
chip_gen: v6e
topology: v6e:2x2x1
jax: 0.10.0
libtpu: 0.0.40
codegen_flags: <defaults>
</compile_context>

<pallas_src>
import math
import functools

import jax
import jax.numpy as jnp
from jax import lax
from jax.experimental import pallas as pl
from jax.experimental.pallas import tpu as pltpu


def _multi_attention_kernel(kernel_sizes, d, k_max, compute_dtype, approx_recip,
                            x_ref, wconv_ref, bconv_ref, wproj_ref, bproj_ref,
                            out_ref):
    """One batch element per grid step.

    x_ref     : (1, C_in, Lp)        shared 'same'-padded input, Lp = L + k_max - 1
    wconv_ref : (3*d*H, k_max*C_in)  stacked q/k/v conv weights for all heads,
                                     zero-padded to a k_max-tap window per head
    bconv_ref : (3*d*H, 1)           stacked conv biases
    wproj_ref : (H, emb, d)          per-head column slices of the Linear weight
    bproj_ref : (emb, 1)             Linear bias
    out_ref   : (1, emb, L)          feature-major output (lane-dense along L)
    """
    n_heads = len(kernel_sizes)
    emb = out_ref.shape[1]
    L = out_ref.shape[2]
    c_in = x_ref.shape[1]
    scale = 1.0 / math.sqrt(d)
    cd = compute_dtype

    xp = x_ref[0]                        # (C_in, Lp) f32
    wc = wconv_ref[...]                  # (3dH, k_max*C_in) f32

    # ---- Conv1d for all heads and Q/K/V at once: one MXU matmul per tap ----
    qkv = jnp.zeros((3 * d * n_heads, L), jnp.float32)
    for j in range(k_max):               # static unroll (k_max is small)
        x_j = xp[:, j:j + L].astype(cd)                       # (C_in, L)
        w_j = wc[:, j * c_in:(j + 1) * c_in].astype(cd)       # (3dH, C_in)
        qkv = qkv + jnp.dot(w_j, x_j, preferred_element_type=jnp.float32)
    qkv = qkv + bconv_ref[...]           # lane-broadcast bias -> (3dH, L)

    # ---- output accumulator, feature-major (emb, L), f32 --------------------
    y = jnp.broadcast_to(bproj_ref[...], (emb, L)).astype(jnp.float32)

    for h in range(n_heads):
        base = 3 * d * h
        qT = qkv[base:base + d, :]               # (d, L)
        kT = qkv[base + d:base + 2 * d, :]       # (d, L)
        vT = qkv[base + 2 * d:base + 3 * d, :]   # (d, L)

        # scores (L_q, L_k); softmax over keys (lane axis)
        s = jnp.dot(qT.T.astype(cd), kT.astype(cd),
                    preferred_element_type=jnp.float32) * scale
        s = s - jnp.max(s, axis=-1, keepdims=True)
        p = jnp.exp(s)
        denom = jnp.sum(p, axis=-1, keepdims=True)
        if approx_recip:
            p = p * pl.reciprocal(denom, approx=True)   # EUP, not VALU divide
        else:
            p = p / denom

        # O^T = V^T P^T : contract the key axis (last dim of both operands)
        oT = lax.dot_general(vT.astype(cd), p.astype(cd),
                             (((1,), (1,)), ((), ())),
                             preferred_element_type=jnp.float32)     # (d, L)

        # fused output projection for this head: (emb, d) @ (d, L)
        y = y + jnp.dot(wproj_ref[h].astype(cd), oT.astype(cd),
                        preferred_element_type=jnp.float32)

    out_ref[0] = jnp.tanh(y)             # (emb, L), lane-dense store


def init_params(key, input_dim, hidden_dim_per_head, kernel_sizes):
    params = {}
    n_heads = len(kernel_sizes)
    emb = hidden_dim_per_head * n_heads
    keys = jax.random.split(key, 6 * n_heads + 2)
    i = 0
    for h, ksize in enumerate(kernel_sizes):
        bound = 1.0 / math.sqrt(input_dim * ksize)
        for name in ("wq", "wk", "wv"):
            params[f"head{h}_{name}"] = jax.random.uniform(
                keys[i], (hidden_dim_per_head, input_dim, ksize), jnp.float32,
                -bound, bound)
            i += 1
        for name in ("bq", "bk", "bv"):
            params[f"head{h}_{name}"] = jax.random.uniform(
                keys[i], (hidden_dim_per_head,), jnp.float32, -bound, bound)
            i += 1
    bound = 1.0 / math.sqrt(emb)
    params["lin_w"] = jax.random.uniform(keys[i], (emb, emb), jnp.float32,
                                         -bound, bound)
    params["lin_b"] = jax.random.uniform(keys[i + 1], (emb,), jnp.float32,
                                         -bound, bound)
    return params


def _pack_params(params, kernel_sizes, c_in, d):
    """Pack per-head Conv1d weights/biases and the Linear into 4 slabs."""
    n_heads = len(kernel_sizes)
    k_max = max(kernel_sizes)
    emb = d * n_heads
    wconv = jnp.zeros((3 * d * n_heads, k_max * c_in), jnp.float32)
    bconv = jnp.zeros((3 * d * n_heads, 1), jnp.float32)
    for h, ksize in enumerate(kernel_sizes):
        off = (k_max - 1) // 2 - (ksize - 1) // 2      # tap offset in shared window
        for s, name in enumerate(("wq", "wk", "wv")):
            w = params[f"head{h}_{name}"]              # (d, c_in, k)
            # rows = output unit, cols = tap*c_in + channel
            w2 = jnp.transpose(w, (0, 2, 1)).reshape(d, ksize * c_in)
            wconv = lax.dynamic_update_slice(
                wconv, w2, (3 * d * h + s * d, off * c_in))
        for s, name in enumerate(("bq", "bk", "bv")):
            b = params[f"head{h}_{name}"].reshape(d, 1)
            bconv = lax.dynamic_update_slice(bconv, b, (3 * d * h + s * d, 0))
    wproj = jnp.stack(
        [params["lin_w"][:, h * d:(h + 1) * d] for h in range(n_heads)], axis=0)
    bproj = params["lin_b"].reshape(emb, 1)
    return wconv, bconv, wproj, bproj


def multi_attention_head(x, params, kernel_sizes, hidden_dim_per_head,
                         *, precise=False):
    """x: (B, C_in, L)  ->  (B, emb, L), matching MultiAttentionHead.forward."""
    assert all(k % 2 == 1 for k in kernel_sizes), "odd kernel sizes ('same' pad)"
    B, c_in, L = x.shape
    d = hidden_dim_per_head
    n_heads = len(kernel_sizes)
    emb = d * n_heads
    k_max = max(kernel_sizes)
    pad_l = (k_max - 1) // 2
    Lp = L + k_max - 1

    # single shared 'same'-padded copy of x (one HBM copy serves all heads)
    xpad = jnp.pad(x, ((0, 0), (0, 0), (pad_l, k_max - 1 - pad_l)))

    wconv, bconv, wproj, bproj = _pack_params(params, kernel_sizes, c_in, d)

    compute_dtype = jnp.float32 if precise else jnp.bfloat16
    kernel = functools.partial(
        _multi_attention_kernel, tuple(kernel_sizes), d, k_max,
        compute_dtype, not precise)

    return pl.pallas_call(
        kernel,
        out_shape=jax.ShapeDtypeStruct((B, emb, L), jnp.float32),
        grid_spec=pltpu.PrefetchScalarGridSpec(
            num_scalar_prefetch=0,
            grid=(B,),
            in_specs=[
                pl.BlockSpec((1, c_in, Lp), lambda b: (b, 0, 0)),
                pl.BlockSpec((3 * d * n_heads, k_max * c_in), lambda b: (0, 0)),
                pl.BlockSpec((3 * d * n_heads, 1), lambda b: (0, 0)),
                pl.BlockSpec((n_heads, emb, d), lambda b: (0, 0, 0)),
                pl.BlockSpec((emb, 1), lambda b: (0, 0)),
            ],
            out_specs=pl.BlockSpec((1, emb, L), lambda b: (b, 0, 0)),
        ),
        compiler_params=pltpu.CompilerParams(
            dimension_semantics=("parallel",)),
    )(xpad, wconv, bconv, wproj, bproj)


def reference_forward(x, params, kernel_sizes, d):
    """Pure-JAX reference matching the PyTorch forward semantics."""
    B, c_in, L = x.shape
    heads = []
    for h, ksize in enumerate(kernel_sizes):
        p = (ksize - 1) // 2
        xp = jnp.pad(x, ((0, 0), (0, 0), (p, ksize - 1 - p)))

        def conv(w, b):
            out = jnp.zeros((B, L, d), jnp.float32)
            for t in range(ksize):
                out = out + jnp.einsum('bcl,oc->blo', xp[:, :, t:t + L], w[:, :, t])
            return out + b.reshape(1, 1, d)

        q = conv(params[f"head{h}_wq"], params[f"head{h}_bq"])
        k = conv(params[f"head{h}_wk"], params[f"head{h}_bk"])
        v = conv(params[f"head{h}_wv"], params[f"head{h}_bv"])
        s = jnp.einsum('bld,bmd->blm', q, k) / math.sqrt(d)
        pmat = jax.nn.softmax(s, axis=2)
        heads.append(jnp.einsum('blm,bmd->bld', pmat, v))
    e = jnp.concatenate(heads, axis=2)                          # (B, L, emb)
    y = jnp.tanh(jnp.einsum('ble,fe->blf', e, params["lin_w"])
                 + params["lin_b"].reshape(1, 1, -1))
    return jnp.transpose(y, (0, 2, 1))                          # (B, emb, L)


if __name__ == "__main__":
    input_dim = 4
    hidden_dim_per_head = 8
    kernel_sizes = (3, 9, 25)
    B, L = 2, 128
    emb = hidden_dim_per_head * len(kernel_sizes)

    key = jax.random.PRNGKey(0)
    pkey, xkey = jax.random.split(key)
    params = init_params(pkey, input_dim, hidden_dim_per_head, kernel_sizes)
    x = jax.random.normal(xkey, (B, input_dim, L), jnp.float32)

    ref = reference_forward(x, params, kernel_sizes, hidden_dim_per_head)

    # precise path: f32 MXU inputs, exact softmax normalization
    out_f32 = jax.block_until_ready(
        multi_attention_head(x, params, kernel_sizes, hidden_dim_per_head,
                             precise=True))
    assert out_f32.shape == (B, emb, L), out_f32.shape
    err = float(jnp.max(jnp.abs(out_f32 - ref)))
    assert jnp.allclose(out_f32, ref, atol=1e-4, rtol=1e-4), err

    # fast path (default): bf16 matmul inputs + approx-reciprocal softmax
    out_fast = jax.block_until_ready(
        multi_attention_head(x, params, kernel_sizes, hidden_dim_per_head))
    assert out_fast.shape == (B, emb, L), out_fast.shape
    err_fast = float(jnp.max(jnp.abs(out_fast - ref)))
    assert jnp.allclose(out_fast, ref, atol=1e-1, rtol=1e-1), err_fast

    print("KERNEL_OK")
</pallas_src>

<mosaic_0001>
module attributes {stable_mosaic.version = 11 : i64} {
  func.func @_multi_attention_kernel(%arg0: i32, %arg1: memref<1x4x152xf32, #tpu.memory_space<vmem>>, %arg2: memref<72x100xf32, #tpu.memory_space<vmem>>, %arg3: memref<72x1xf32, #tpu.memory_space<vmem>>, %arg4: memref<3x24x8xf32, #tpu.memory_space<vmem>>, %arg5: memref<24x1xf32, #tpu.memory_space<vmem>>, %arg6: memref<1x24x128xf32, #tpu.memory_space<vmem>>) attributes {dimension_semantics = [#tpu.dimension_semantics<parallel>], iteration_bounds = array<i64: 2>, scalar_prefetch = 0 : i64, scratch_operands = 0 : i64, tpu.core_type = #tpu.core_type<tc>, window_params = [{transform_indices = @transform_0, window_bounds = array<i64: 1, 4, 152>}, {pipeline_mode = #tpu.pipeline_mode<synchronous>, transform_indices = @transform_1, window_bounds = array<i64: 72, 100>}, {pipeline_mode = #tpu.pipeline_mode<synchronous>, transform_indices = @transform_2, window_bounds = array<i64: 72, 1>}, {pipeline_mode = #tpu.pipeline_mode<synchronous>, transform_indices = @transform_3, window_bounds = array<i64: 3, 24, 8>}, {pipeline_mode = #tpu.pipeline_mode<synchronous>, transform_indices = @transform_4, window_bounds = array<i64: 24, 1>}, {transform_indices = @transform_5, window_bounds = array<i64: 1, 24, 128>}]} {
    %c0 = arith.constant 0 : index
    %c0_0 = arith.constant 0 : index
    %c0_1 = arith.constant 0 : index
    %0 = vector.load %arg1[%c0, %c0_0, %c0_1] : memref<1x4x152xf32, #tpu.memory_space<vmem>>, vector<1x4x152xf32>
    %1 = vector.shape_cast %0 : vector<1x4x152xf32> to vector<4x152xf32>
    %c0_2 = arith.constant 0 : index
    %c0_3 = arith.constant 0 : index
    %2 = vector.load %arg2[%c0_2, %c0_3] : memref<72x100xf32, #tpu.memory_space<vmem>>, vector<72x100xf32>
    %cst = arith.constant 0.000000e+00 : f32
    %3 = vector.broadcast %cst : f32 to vector<72x128xf32>
    %4 = vector.extract_strided_slice %1 {offsets = [0, 0], sizes = [4, 128], strides = [1, 1]} : vector<4x152xf32> to vector<4x128xf32>
    %5 = vector.extract_strided_slice %2 {offsets = [0, 0], sizes = [72, 4], strides = [1, 1]} : vector<72x100xf32> to vector<72x4xf32>
    %cst_4 = arith.constant dense<0.000000e+00> : vector<72x128xf32>
    %6 = tpu.matmul %5, %4, %cst_4 {dimension_numbers = #tpu.dot_dimension_numbers<[1], [0], [0], [1], [0, 0, 1, 1], [], []>} : vector<72x4xf32>, vector<4x128xf32>, vector<72x128xf32> -> vector<72x128xf32>
    %7 = arith.addf %3, %6 : vector<72x128xf32>
    %8 = vector.extract_strided_slice %1 {offsets = [0, 1], sizes = [4, 128], strides = [1, 1]} : vector<4x152xf32> to vector<4x128xf32>
    %9 = vector.extract_strided_slice %2 {offsets = [0, 4], sizes = [72, 4], strides = [1, 1]} : vector<72x100xf32> to vector<72x4xf32>
    %cst_5 = arith.constant dense<0.000000e+00> : vector<72x128xf32>
    %10 = tpu.matmul %9, %8, %cst_5 {dimension_numbers = #tpu.dot_dimension_numbers<[1], [0], [0], [1], [0, 0, 1, 1], [], []>} : vector<72x4xf32>, vector<4x128xf32>, vector<72x128xf32> -> vector<72x128xf32>
    %11 = arith.addf %7, %10 : vector<72x128xf32>
    %12 = vector.extract_strided_slice %1 {offsets = [0, 2], sizes = [4, 128], strides = [1, 1]} : vector<4x152xf32> to vector<4x128xf32>
    %13 = vector.extract_strided_slice %2 {offsets = [0, 8], sizes = [72, 4], strides = [1, 1]} : vector<72x100xf32> to vector<72x4xf32>
    %cst_6 = arith.constant dense<0.000000e+00> : vector<72x128xf32>
    %14 = tpu.matmul %13, %12, %cst_6 {dimension_numbers = #tpu.dot_dimension_numbers<[1], [0], [0], [1], [0, 0, 1, 1], [], []>} : vector<72x4xf32>, vector<4x128xf32>, vector<72x128xf32> -> vector<72x128xf32>
    %15 = arith.addf %11, %14 : vector<72x128xf32>
    %16 = vector.extract_strided_slice %1 {offsets = [0, 3], sizes = [4, 128], strides = [1, 1]} : vector<4x152xf32> to vector<4x128xf32>
    %17 = vector.extract_strided_slice %2 {offsets = [0, 12], sizes = [72, 4], strides = [1, 1]} : vector<72x100xf32> to vector<72x4xf32>
    %cst_7 = arith.constant dense<0.000000e+00> : vector<72x128xf32>
    %18 = tpu.matmul %17, %16, %cst_7 {dimension_numbers = #tpu.dot_dimension_numbers<[1], [0], [0], [1], [0, 0, 1, 1], [], []>} : vector<72x4xf32>, vector<4x128xf32>, vector<72x128xf32> -> vector<72x128xf32>
    %19 = arith.addf %15, %18 : vector<72x128xf32>
    %20 = vector.extract_strided_slice %1 {offsets = [0, 4], sizes = [4, 128], strides = [1, 1]} : vector<4x152xf32> to vector<4x128xf32>
    %21 = vector.extract_strided_slice %2 {offsets = [0, 16], sizes = [72, 4], strides = [1, 1]} : vector<72x100xf32> to vector<72x4xf32>
    %cst_8 = arith.constant dense<0.000000e+00> : vector<72x128xf32>
    %22 = tpu.matmul %21, %20, %cst_8 {dimension_numbers = #tpu.dot_dimension_numbers<[1], [0], [0], [1], [0, 0, 1, 1], [], []>} : vector<72x4xf32>, vector<4x128xf32>, vector<72x128xf32> -> vector<72x128xf32>
    %23 = arith.addf %19, %22 : vector<72x128xf32>
    %24 = vector.extract_strided_slice %1 {offsets = [0, 5], sizes = [4, 128], strides = [1, 1]} : vector<4x152xf32> to vector<4x128xf32>
    %25 = vector.extract_strided_slice %2 {offsets = [0, 20], sizes = [72, 4], strides = [1, 1]} : vector<72x100xf32> to vector<72x4xf32>
    %cst_9 = arith.constant dense<0.000000e+00> : vector<72x128xf32>
    %26 = tpu.matmul %25, %24, %cst_9 {dimension_numbers = #tpu.dot_dimension_numbers<[1], [0], [0], [1], [0, 0, 1, 1], [], []>} : vector<72x4xf32>, vector<4x128xf32>, vector<72x128xf32> -> vector<72x128xf32>
    %27 = arith.addf %23, %26 : vector<72x128xf32>
    %28 = vector.extract_strided_slice %1 {offsets = [0, 6], sizes = [4, 128], strides = [1, 1]} : vector<4x152xf32> to vector<4x128xf32>
    %29 = vector.extract_strided_slice %2 {offsets = [0, 24], sizes = [72, 4], strides = [1, 1]} : vector<72x100xf32> to vector<72x4xf32>
    %cst_10 = arith.constant dense<0.000000e+00> : vector<72x128xf32>
    %30 = tpu.matmul %29, %28, %cst_10 {dimension_numbers = #tpu.dot_dimension_numbers<[1], [0], [0], [1], [0, 0, 1, 1], [], []>} : vector<72x4xf32>, vector<4x128xf32>, vector<72x128xf32> -> vector<72x128xf32>
    %31 = arith.addf %27, %30 : vector<72x128xf32>
    %32 = vector.extract_strided_slice %1 {offsets = [0, 7], sizes = [4, 128], strides = [1, 1]} : vector<4x152xf32> to vector<4x128xf32>
    %33 = vector.extract_strided_slice %2 {offsets = [0, 28], sizes = [72, 4], strides = [1, 1]} : vector<72x100xf32> to vector<72x4xf32>
    %cst_11 = arith.constant dense<0.000000e+00> : vector<72x128xf32>
    %34 = tpu.matmul %33, %32, %cst_11 {dimension_numbers = #tpu.dot_dimension_numbers<[1], [0], [0], [1], [0, 0, 1, 1], [], []>} : vector<72x4xf32>, vector<4x128xf32>, vector<72x128xf32> -> vector<72x128xf32>
    %35 = arith.addf %31, %34 : vector<72x128xf32>
    %36 = vector.extract_strided_slice %1 {offsets = [0, 8], sizes = [4, 128], strides = [1, 1]} : vector<4x152xf32> to vector<4x128xf32>
    %37 = vector.extract_strided_slice %2 {offsets = [0, 32], sizes = [72, 4], strides = [1, 1]} : vector<72x100xf32> to vector<72x4xf32>
    %cst_12 = arith.constant dense<0.000000e+00> : vector<72x128xf32>
    %38 = tpu.matmul %37, %36, %cst_12 {dimension_numbers = #tpu.dot_dimension_numbers<[1], [0], [0], [1], [0, 0, 1, 1], [], []>} : vector<72x4xf32>, vector<4x128xf32>, vector<72x128xf32> -> vector<72x128xf32>
    %39 = arith.addf %35, %38 : vector<72x128xf32>
    %40 = vector.extract_strided_slice %1 {offsets = [0, 9], sizes = [4, 128], strides = [1, 1]} : vector<4x152xf32> to vector<4x128xf32>
    %41 = vector.extract_strided_slice %2 {offsets = [0, 36], sizes = [72, 4], strides = [1, 1]} : vector<72x100xf32> to vector<72x4xf32>
    %cst_13 = arith.constant dense<0.000000e+00> : vector<72x128xf32>
    %42 = tpu.matmul %41, %40, %cst_13 {dimension_numbers = #tpu.dot_dimension_numbers<[1], [0], [0], [1], [0, 0, 1, 1], [], []>} : vector<72x4xf32>, vector<4x128xf32>, vector<72x128xf32> -> vector<72x128xf32>
    %43 = arith.addf %39, %42 : vector<72x128xf32>
    %44 = vector.extract_strided_slice %1 {offsets = [0, 10], sizes = [4, 128], strides = [1, 1]} : vector<4x152xf32> to vector<4x128xf32>
    %45 = vector.extract_strided_slice %2 {offsets = [0, 40], sizes = [72, 4], strides = [1, 1]} : vector<72x100xf32> to vector<72x4xf32>
    %cst_14 = arith.constant dense<0.000000e+00> : vector<72x128xf32>
    %46 = tpu.matmul %45, %44, %cst_14 {dimension_numbers = #tpu.dot_dimension_numbers<[1], [0], [0], [1], [0, 0, 1, 1], [], []>} : vector<72x4xf32>, vector<4x128xf32>, vector<72x128xf32> -> vector<72x128xf32>
    %47 = arith.addf %43, %46 : vector<72x128xf32>
    %48 = vector.extract_strided_slice %1 {offsets = [0, 11], sizes = [4, 128], strides = [1, 1]} : vector<4x152xf32> to vector<4x128xf32>
    %49 = vector.extract_strided_slice %2 {offsets = [0, 44], sizes = [72, 4], strides = [1, 1]} : vector<72x100xf32> to vector<72x4xf32>
    %cst_15 = arith.constant dense<0.000000e+00> : vector<72x128xf32>
    %50 = tpu.matmul %49, %48, %cst_15 {dimension_numbers = #tpu.dot_dimension_numbers<[1], [0], [0], [1], [0, 0, 1, 1], [], []>} : vector<72x4xf32>, vector<4x128xf32>, vector<72x128xf32> -> vector<72x128xf32>
    %51 = arith.addf %47, %50 : vector<72x128xf32>
    %52 = vector.extract_strided_slice %1 {offsets = [0, 12], sizes = [4, 128], strides = [1, 1]} : vector<4x152xf32> to vector<4x128xf32>
    %53 = vector.extract_strided_slice %2 {offsets = [0, 48], sizes = [72, 4], strides = [1, 1]} : vector<72x100xf32> to vector<72x4xf32>
    %cst_16 = arith.constant dense<0.000000e+00> : vector<72x128xf32>
    %54 = tpu.matmul %53, %52, %cst_16 {dimension_numbers = #tpu.dot_dimension_numbers<[1], [0], [0], [1], [0, 0, 1, 1], [], []>} : vector<72x4xf32>, vector<4x128xf32>, vector<72x128xf32> -> vector<72x128xf32>
    %55 = arith.addf %51, %54 : vector<72x128xf32>
    %56 = vector.extract_strided_slice %1 {offsets = [0, 13], sizes = [4, 128], strides = [1, 1]} : vector<4x152xf32> to vector<4x128xf32>
    %57 = vector.extract_strided_slice %2 {offsets = [0, 52], sizes = [72, 4], strides = [1, 1]} : vector<72x100xf32> to vector<72x4xf32>
    %cst_17 = arith.constant dense<0.000000e+00> : vector<72x128xf32>
    %58 = tpu.matmul %57, %56, %cst_17 {dimension_numbers = #tpu.dot_dimension_numbers<[1], [0], [0], [1], [0, 0, 1, 1], [], []>} : vector<72x4xf32>, vector<4x128xf32>, vector<72x128xf32> -> vector<72x128xf32>
    %59 = arith.addf %55, %58 : vector<72x128xf32>
    %60 = vector.extract_strided_slice %1 {offsets = [0, 14], sizes = [4, 128], strides = [1, 1]} : vector<4x152xf32> to vector<4x128xf32>
    %61 = vector.extract_strided_slice %2 {offsets = [0, 56], sizes = [72, 4], strides = [1, 1]} : vector<72x100xf32> to vector<72x4xf32>
    %cst_18 = arith.constant dense<0.000000e+00> : vector<72x128xf32>
    %62 = tpu.matmul %61, %60, %cst_18 {dimension_numbers = #tpu.dot_dimension_numbers<[1], [0], [0], [1], [0, 0, 1, 1], [], []>} : vector<72x4xf32>, vector<4x128xf32>, vector<72x128xf32> -> vector<72x128xf32>
    %63 = arith.addf %59, %62 : vector<72x128xf32>
    %64 = vector.extract_strided_slice %1 {offsets = [0, 15], sizes = [4, 128], strides = [1, 1]} : vector<4x152xf32> to vector<4x128xf32>
    %65 = vector.extract_strided_slice %2 {offsets = [0, 60], sizes = [72, 4], strides = [1, 1]} : vector<72x100xf32> to vector<72x4xf32>
    %cst_19 = arith.constant dense<0.000000e+00> : vector<72x128xf32>
    %66 = tpu.matmul %65, %64, %cst_19 {dimension_numbers = #tpu.dot_dimension_numbers<[1], [0], [0], [1], [0, 0, 1, 1], [], []>} : vector<72x4xf32>, vector<4x128xf32>, vector<72x128xf32> -> vector<72x128xf32>
    %67 = arith.addf %63, %66 : vector<72x128xf32>
    %68 = vector.extract_strided_slice %1 {offsets = [0, 16], sizes = [4, 128], strides = [1, 1]} : vector<4x152xf32> to vector<4x128xf32>
    %69 = vector.extract_strided_slice %2 {offsets = [0, 64], sizes = [72, 4], strides = [1, 1]} : vector<72x100xf32> to vector<72x4xf32>
    %cst_20 = arith.constant dense<0.000000e+00> : vector<72x128xf32>
    %70 = tpu.matmul %69, %68, %cst_20 {dimension_numbers = #tpu.dot_dimension_numbers<[1], [0], [0], [1], [0, 0, 1, 1], [], []>} : vector<72x4xf32>, vector<4x128xf32>, vector<72x128xf32> -> vector<72x128xf32>
    %71 = arith.addf %67, %70 : vector<72x128xf32>
    %72 = vector.extract_strided_slice %1 {offsets = [0, 17], sizes = [4, 128], strides = [1, 1]} : vector<4x152xf32> to vector<4x128xf32>
    %73 = vector.extract_strided_slice %2 {offsets = [0, 68], sizes = [72, 4], strides = [1, 1]} : vector<72x100xf32> to vector<72x4xf32>
    %cst_21 = arith.constant dense<0.000000e+00> : vector<72x128xf32>
    %74 = tpu.matmul %73, %72, %cst_21 {dimension_numbers = #tpu.dot_dimension_numbers<[1], [0], [0], [1], [0, 0, 1, 1], [], []>} : vector<72x4xf32>, vector<4x128xf32>, vector<72x128xf32> -> vector<72x128xf32>
    %75 = arith.addf %71, %74 : vector<72x128xf32>
    %76 = vector.extract_strided_slice %1 {offsets = [0, 18], sizes = [4, 128], strides = [1, 1]} : vector<4x152xf32> to vector<4x128xf32>
    %77 = vector.extract_strided_slice %2 {offsets = [0, 72], sizes = [72, 4], strides = [1, 1]} : vector<72x100xf32> to vector<72x4xf32>
    %cst_22 = arith.constant dense<0.000000e+00> : vector<72x128xf32>
    %78 = tpu.matmul %77, %76, %cst_22 {dimension_numbers = #tpu.dot_dimension_numbers<[1], [0], [0], [1], [0, 0, 1, 1], [], []>} : vector<72x4xf32>, vector<4x128xf32>, vector<72x128xf32> -> vector<72x128xf32>
    %79 = arith.addf %75, %78 : vector<72x128xf32>
    %80 = vector.extract_strided_slice %1 {offsets = [0, 19], sizes = [4, 128], strides = [1, 1]} : vector<4x152xf32> to vector<4x128xf32>
    %81 = vector.extract_strided_slice %2 {offsets = [0, 76], sizes = [72, 4], strides = [1, 1]} : vector<72x100xf32> to vector<72x4xf32>
    %cst_23 = arith.constant dense<0.000000e+00> : vector<72x128xf32>
    %82 = tpu.matmul %81, %80, %cst_23 {dimension_numbers = #tpu.dot_dimension_numbers<[1], [0], [0], [1], [0, 0, 1, 1], [], []>} : vector<72x4xf32>, vector<4x128xf32>, vector<72x128xf32> -> vector<72x128xf32>
    %83 = arith.addf %79, %82 : vector<72x128xf32>
    %84 = vector.extract_strided_slice %1 {offsets = [0, 20], sizes = [4, 128], strides = [1, 1]} : vector<4x152xf32> to vector<4x128xf32>
    %85 = vector.extract_strided_slice %2 {offsets = [0, 80], sizes = [72, 4], strides = [1, 1]} : vector<72x100xf32> to vector<72x4xf32>
    %cst_24 = arith.constant dense<0.000000e+00> : vector<72x128xf32>
    %86 = tpu.matmul %85, %84, %cst_24 {dimension_numbers = #tpu.dot_dimension_numbers<[1], [0], [0], [1], [0, 0, 1, 1], [], []>} : vector<72x4xf32>, vector<4x128xf32>, vector<72x128xf32> -> vector<72x128xf32>
    %87 = arith.addf %83, %86 : vector<72x128xf32>
    %88 = vector.extract_strided_slice %1 {offsets = [0, 21], sizes = [4, 128], strides = [1, 1]} : vector<4x152xf32> to vector<4x128xf32>
    %89 = vector.extract_strided_slice %2 {offsets = [0, 84], sizes = [72, 4], strides = [1, 1]} : vector<72x100xf32> to vector<72x4xf32>
    %cst_25 = arith.constant dense<0.000000e+00> : vector<72x128xf32>
    %90 = tpu.matmul %89, %88, %cst_25 {dimension_numbers = #tpu.dot_dimension_numbers<[1], [0], [0], [1], [0, 0, 1, 1], [], []>} : vector<72x4xf32>, vector<4x128xf32>, vector<72x128xf32> -> vector<72x128xf32>
    %91 = arith.addf %87, %90 : vector<72x128xf32>
    %92 = vector.extract_strided_slice %1 {offsets = [0, 22], sizes = [4, 128], strides = [1, 1]} : vector<4x152xf32> to vector<4x128xf32>
    %93 = vector.extract_strided_slice %2 {offsets = [0, 88], sizes = [72, 4], strides = [1, 1]} : vector<72x100xf32> to vector<72x4xf32>
    %cst_26 = arith.constant dense<0.000000e+00> : vector<72x128xf32>
    %94 = tpu.matmul %93, %92, %cst_26 {dimension_numbers = #tpu.dot_dimension_numbers<[1], [0], [0], [1], [0, 0, 1, 1], [], []>} : vector<72x4xf32>, vector<4x128xf32>, vector<72x128xf32> -> vector<72x128xf32>
    %95 = arith.addf %91, %94 : vector<72x128xf32>
    %96 = vector.extract_strided_slice %1 {offsets = [0, 23], sizes = [4, 128], strides = [1, 1]} : vector<4x152xf32> to vector<4x128xf32>
    %97 = vector.extract_strided_slice %2 {offsets = [0, 92], sizes = [72, 4], strides = [1, 1]} : vector<72x100xf32> to vector<72x4xf32>
    %cst_27 = arith.constant dense<0.000000e+00> : vector<72x128xf32>
    %98 = tpu.matmul %97, %96, %cst_27 {dimension_numbers = #tpu.dot_dimension_numbers<[1], [0], [0], [1], [0, 0, 1, 1], [], []>} : vector<72x4xf32>, vector<4x128xf32>, vector<72x128xf32> -> vector<72x128xf32>
    %99 = arith.addf %95, %98 : vector<72x128xf32>
    %100 = vector.extract_strided_slice %1 {offsets = [0, 24], sizes = [4, 128], strides = [1, 1]} : vector<4x152xf32> to vector<4x128xf32>
    %101 = vector.extract_strided_slice %2 {offsets = [0, 96], sizes = [72, 4], strides = [1, 1]} : vector<72x100xf32> to vector<72x4xf32>
    %cst_28 = arith.constant dense<0.000000e+00> : vector<72x128xf32>
    %102 = tpu.matmul %101, %100, %cst_28 {dimension_numbers = #tpu.dot_dimension_numbers<[1], [0], [0], [1], [0, 0, 1, 1], [], []>} : vector<72x4xf32>, vector<4x128xf32>, vector<72x128xf32> -> vector<72x128xf32>
    %103 = arith.addf %99, %102 : vector<72x128xf32>
    %c0_29 = arith.constant 0 : index
    %c0_30 = arith.constant 0 : index
    %104 = vector.load %arg3[%c0_29, %c0_30] : memref<72x1xf32, #tpu.memory_space<vmem>>, vector<72x1xf32>
    %105 = vector.broadcast %104 : vector<72x1xf32> to vector<72x128xf32>
    %106 = arith.addf %103, %105 : vector<72x128xf32>
    %c0_31 = arith.constant 0 : index
    %c0_32 = arith.constant 0 : index
    %107 = vector.load %arg5[%c0_31, %c0_32] : memref<24x1xf32, #tpu.memory_space<vmem>>, vector<24x1xf32>
    %108 = vector.shape_cast %107 : vector<24x1xf32> to vector<24x1xf32>
    %109 = vector.broadcast %108 : vector<24x1xf32> to vector<24x128xf32>
    %110 = vector.extract_strided_slice %106 {offsets = [0, 0], sizes = [8, 128], strides = [1, 1]} : vector<72x128xf32> to vector<8x128xf32>
    %111 = vector.extract_strided_slice %106 {offsets = [8, 0], sizes = [8, 128], strides = [1, 1]} : vector<72x128xf32> to vector<8x128xf32>
    %112 = vector.extract_strided_slice %106 {offsets = [16, 0], sizes = [8, 128], strides = [1, 1]} : vector<72x128xf32> to vector<8x128xf32>
    %113 = tpu.transpose %110, [1, 0] : vector<8x128xf32> -> vector<128x8xf32>
    %cst_33 = arith.constant dense<0.000000e+00> : vector<128x128xf32>
    %114 = tpu.matmul %113, %111, %cst_33 {dimension_numbers = #tpu.dot_dimension_numbers<[1], [0], [0], [1], [0, 0, 1, 1], [], []>} : vector<128x8xf32>, vector<8x128xf32>, vector<128x128xf32> -> vector<128x128xf32>
    %cst_34 = arith.constant 0.353553385 : f32
    %115 = vector.broadcast %cst_34 : f32 to vector<128x128xf32>
    %116 = arith.mulf %114, %115 : vector<128x128xf32>
    %cst_35 = arith.constant dense<0xFF800000> : vector<128xf32>
    %117 = vector.multi_reduction <maximumf>, %116, %cst_35 [1] : vector<128x128xf32> to vector<128xf32>
    %118 = vector.shape_cast %117 : vector<128xf32> to vector<128x1xf32>
    %119 = vector.broadcast %118 : vector<128x1xf32> to vector<128x128xf32>
    %120 = arith.subf %116, %119 : vector<128x128xf32>
    %121 = math.exp %120 : vector<128x128xf32>
    %cst_36 = arith.constant dense<0.000000e+00> : vector<128xf32>
    %122 = vector.multi_reduction <add>, %121, %cst_36 [1] : vector<128x128xf32> to vector<128xf32>
    %123 = vector.shape_cast %122 : vector<128xf32> to vector<128x1xf32>
    %124 = vector.broadcast %123 : vector<128x1xf32> to vector<128x128xf32>
    %125 = arith.divf %121, %124 : vector<128x128xf32>
    %cst_37 = arith.constant dense<0.000000e+00> : vector<8x128xf32>
    %126 = tpu.matmul %112, %125, %cst_37 {dimension_numbers = #tpu.dot_dimension_numbers<[1], [1], [0], [0], [0, 0, 1, 0], [], []>} : vector<8x128xf32>, vector<128x128xf32>, vector<8x128xf32> -> vector<8x128xf32>
    %c0_38 = arith.constant 0 : index
    %c0_39 = arith.constant 0 : index
    %c0_40 = arith.constant 0 : index
    %127 = vector.load %arg4[%c0_38, %c0_39, %c0_40] : memref<3x24x8xf32, #tpu.memory_space<vmem>>, vector<1x24x8xf32>
    %128 = vector.shape_cast %127 : vector<1x24x8xf32> to vector<24x8xf32>
    %cst_41 = arith.constant dense<0.000000e+00> : vector<24x128xf32>
    %129 = tpu.matmul %128, %126, %cst_41 {dimension_numbers = #tpu.dot_dimension_numbers<[1], [0], [0], [1], [0, 0, 1, 1], [], []>} : vector<24x8xf32>, vector<8x128xf32>, vector<24x128xf32> -> vector<24x128xf32>
    %130 = arith.addf %109, %129 : vector<24x128xf32>
    %131 = vector.extract_strided_slice %106 {offsets = [24, 0], sizes = [8, 128], strides = [1, 1]} : vector<72x128xf32> to vector<8x128xf32>
    %132 = vector.extract_strided_slice %106 {offsets = [32, 0], sizes = [8, 128], strides = [1, 1]} : vector<72x128xf32> to vector<8x128xf32>
    %133 = vector.extract_strided_slice %106 {offsets = [40, 0], sizes = [8, 128], strides = [1, 1]} : vector<72x128xf32> to vector<8x128xf32>
    %134 = tpu.transpose %131, [1, 0] : vector<8x128xf32> -> vector<128x8xf32>
    %cst_42 = arith.constant dense<0.000000e+00> : vector<128x128xf32>
    %135 = tpu.matmul %134, %132, %cst_42 {dimension_numbers = #tpu.dot_dimension_numbers<[1], [0], [0], [1], [0, 0, 1, 1], [], []>} : vector<128x8xf32>, vector<8x128xf32>, vector<128x128xf32> -> vector<128x128xf32>
    %cst_43 = arith.constant 0.353553385 : f32
    %136 = vector.broadcast %cst_43 : f32 to vector<128x128xf32>
    %137 = arith.mulf %135, %136 : vector<128x128xf32>
    %cst_44 = arith.constant dense<0xFF800000> : vector<128xf32>
    %138 = vector.multi_reduction <maximumf>, %137, %cst_44 [1] : vector<128x128xf32> to vector<128xf32>
    %139 = vector.shape_cast %138 : vector<128xf32> to vector<128x1xf32>
    %140 = vector.broadcast %139 : vector<128x1xf32> to vector<128x128xf32>
    %141 = arith.subf %137, %140 : vector<128x128xf32>
    %142 = math.exp %141 : vector<128x128xf32>
    %cst_45 = arith.constant dense<0.000000e+00> : vector<128xf32>
    %143 = vector.multi_reduction <add>, %142, %cst_45 [1] : vector<128x128xf32> to vector<128xf32>
    %144 = vector.shape_cast %143 : vector<128xf32> to vector<128x1xf32>
    %145 = vector.broadcast %144 : vector<128x1xf32> to vector<128x128xf32>
    %146 = arith.divf %142, %145 : vector<128x128xf32>
    %cst_46 = arith.constant dense<0.000000e+00> : vector<8x128xf32>
    %147 = tpu.matmul %133, %146, %cst_46 {dimension_numbers = #tpu.dot_dimension_numbers<[1], [1], [0], [0], [0, 0, 1, 0], [], []>} : vector<8x128xf32>, vector<128x128xf32>, vector<8x128xf32> -> vector<8x128xf32>
    %c1 = arith.constant 1 : index
    %c0_47 = arith.constant 0 : index
    %c0_48 = arith.constant 0 : index
    %148 = vector.load %arg4[%c1, %c0_47, %c0_48] : memref<3x24x8xf32, #tpu.memory_space<vmem>>, vector<1x24x8xf32>
    %149 = vector.shape_cast %148 : vector<1x24x8xf32> to vector<24x8xf32>
    %cst_49 = arith.constant dense<0.000000e+00> : vector<24x128xf32>
    %150 = tpu.matmul %149, %147, %cst_49 {dimension_numbers = #tpu.dot_dimension_numbers<[1], [0], [0], [1], [0, 0, 1, 1], [], []>} : vector<24x8xf32>, vector<8x128xf32>, vector<24x128xf32> -> vector<24x128xf32>
    %151 = arith.addf %130, %150 : vector<24x128xf32>
    %152 = vector.extract_strided_slice %106 {offsets = [48, 0], sizes = [8, 128], strides = [1, 1]} : vector<72x128xf32> to vector<8x128xf32>
    %153 = vector.extract_strided_slice %106 {offsets = [56, 0], sizes = [8, 128], strides = [1, 1]} : vector<72x128xf32> to vector<8x128xf32>
    %154 = vector.extract_strided_slice %106 {offsets = [64, 0], sizes = [8, 128], strides = [1, 1]} : vector<72x128xf32> to vector<8x128xf32>
    %155 = tpu.transpose %152, [1, 0] : vector<8x128xf32> -> vector<128x8xf32>
    %cst_50 = arith.constant dense<0.000000e+00> : vector<128x128xf32>
    %156 = tpu.matmul %155, %153, %cst_50 {dimension_numbers = #tpu.dot_dimension_numbers<[1], [0], [0], [1], [0, 0, 1, 1], [], []>} : vector<128x8xf32>, vector<8x128xf32>, vector<128x128xf32> -> vector<128x128xf32>
    %cst_51 = arith.constant 0.353553385 : f32
    %157 = vector.broadcast %cst_51 : f32 to vector<128x128xf32>
    %158 = arith.mulf %156, %157 : vector<128x128xf32>
    %cst_52 = arith.constant dense<0xFF800000> : vector<128xf32>
    %159 = vector.multi_reduction <maximumf>, %158, %cst_52 [1] : vector<128x128xf32> to vector<128xf32>
    %160 = vector.shape_cast %159 : vector<128xf32> to vector<128x1xf32>
    %161 = vector.broadcast %160 : vector<128x1xf32> to vector<128x128xf32>
    %162 = arith.subf %158, %161 : vector<128x128xf32>
    %163 = math.exp %162 : vector<128x128xf32>
    %cst_53 = arith.constant dense<0.000000e+00> : vector<128xf32>
    %164 = vector.multi_reduction <add>, %163, %cst_53 [1] : vector<128x128xf32> to vector<128xf32>
    %165 = vector.shape_cast %164 : vector<128xf32> to vector<128x1xf32>
    %166 = vector.broadcast %165 : vector<128x1xf32> to vector<128x128xf32>
    %167 = arith.divf %163, %166 : vector<128x128xf32>
    %cst_54 = arith.constant dense<0.000000e+00> : vector<8x128xf32>
    %168 = tpu.matmul %154, %167, %cst_54 {dimension_numbers = #tpu.dot_dimension_numbers<[1], [1], [0], [0], [0, 0, 1, 0], [], []>} : vector<8x128xf32>, vector<128x128xf32>, vector<8x128xf32> -> vector<8x128xf32>
    %c2 = arith.constant 2 : index
    %c0_55 = arith.constant 0 : index
    %c0_56 = arith.constant 0 : index
    %169 = vector.load %arg4[%c2, %c0_55, %c0_56] : memref<3x24x8xf32, #tpu.memory_space<vmem>>, vector<1x24x8xf32>
    %170 = vector.shape_cast %169 : vector<1x24x8xf32> to vector<24x8xf32>
    %cst_57 = arith.constant dense<0.000000e+00> : vector<24x128xf32>
    %171 = tpu.matmul %170, %168, %cst_57 {dimension_numbers = #tpu.dot_dimension_numbers<[1], [0], [0], [1], [0, 0, 1, 1], [], []>} : vector<24x8xf32>, vector<8x128xf32>, vector<24x128xf32> -> vector<24x128xf32>
    %172 = arith.addf %151, %171 : vector<24x128xf32>
    %173 = math.tanh %172 : vector<24x128xf32>
    %c0_58 = arith.constant 0 : index
    %c0_59 = arith.constant 0 : index
    %c0_60 = arith.constant 0 : index
    %174 = vector.load %arg6[%c0_58, %c0_59, %c0_60] : memref<1x24x128xf32, #tpu.memory_space<vmem>>, vector<1x24x128xf32>
    %175 = vector.shape_cast %174 : vector<1x24x128xf32> to vector<24x128xf32>
    %176 = vector.shape_cast %173 : vector<24x128xf32> to vector<1x24x128xf32>
    tpu.vector_store %arg6[%c0_58, %c0_59, %c0_60], %176 {strides = array<i32>} : memref<1x24x128xf32, #tpu.memory_space<vmem>>, vector<1x24x128xf32>,
    return
  }
  func.func @transform_0(%arg0: i32) -> (i32, i32, i32) {
    %c0_i32 = arith.constant 0 : i32
    %c0_i32_0 = arith.constant 0 : i32
    %c0_i32_1 = arith.constant 0 : i32
    return %arg0, %c0_i32, %c0_i32_0 : i32, i32, i32
  }
  func.func @transform_1(%arg0: i32) -> (i32, i32) {
    %c0_i32 = arith.constant 0 : i32
    %c0_i32_0 = arith.constant 0 : i32
    %c0_i32_1 = arith.constant 0 : i32
    return %c0_i32, %c0_i32_0 : i32, i32
  }
  func.func @transform_2(%arg0: i32) -> (i32, i32) {
    %c0_i32 = arith.constant 0 : i32
    %c0_i32_0 = arith.constant 0 : i32
    %c0_i32_1 = arith.constant 0 : i32
    return %c0_i32, %c0_i32_0 : i32, i32
  }
  func.func @transform_3(%arg0: i32) -> (i32, i32, i32) {
    %c0_i32 = arith.constant 0 : i32
    %c0_i32_0 = arith.constant 0 : i32
    %c0_i32_1 = arith.constant 0 : i32
    %c0_i32_2 = arith.constant 0 : i32
    return %c0_i32, %c0_i32_0, %c0_i32_1 : i32, i32, i32
  }
  func.func @transform_4(%arg0: i32) -> (i32, i32) {
    %c0_i32 = arith.constant 0 : i32
    %c0_i32_0 = arith.constant 0 : i32
    %c0_i32_1 = arith.constant 0 : i32
    return %c0_i32, %c0_i32_0 : i32, i32
  }
  func.func @transform_5(%arg0: i32) -> (i32, i32, i32) {
    %c0_i32 = arith.constant 0 : i32
    %c0_i32_0 = arith.constant 0 : i32
    %c0_i32_1 = arith.constant 0 : i32
    return %arg0, %c0_i32, %c0_i32_0 : i32, i32, i32
  }
}

</mosaic_0001>

<llo_original>
// kernel: tpu_custom_call.1
$region0: #{tpu_custom_call.1}
  #allocation0 [shape = 'u32[]', space=smem, size = 0x4, offset = 0x4, fixed_abs, tag = 'smem constant byte address 0x4 - core index']
  #allocation1 [shape = 'u32[144,128]{1,0:T(1,128)}', space=vmem, size = 0x12000, scoped, tag = 'internal scratch']
  %s0 = inlined_call_operand.vmem [shape: f32[2,4,152], index: 0, kind: input, shape index: {}]
  %s1 = inlined_call_operand.vmem [shape: f32[72,100], index: 1, kind: input, shape index: {}]
  %s2 = inlined_call_operand.vmem [shape: f32[72,1], index: 2, kind: input, shape index: {}]
  %s3 = inlined_call_operand.vmem [shape: f32[3,24,8], index: 3, kind: input, shape index: {}]
  %s4 = inlined_call_operand.vmem [shape: f32[24,1], index: 4, kind: input, shape index: {}]
  %s5 = inlined_call_operand.hbm [shape: f32[2,24,128], index: 5, kind: output, shape index: {}]
  %s6 = sld [smem:[#allocation0]]
  $region53: #{tpu_custom_call.1} parent=0
    _
  %s8 = ssub.s32 1, %s6
  %s9 = scalar_select 0, %s8, %s6
  $region1: #{tpu_custom_call.1} parent=0
    #allocation2 [shape = 'u8[24576]{0}', space=vmem, size = 0x6000, scoped, tag = 'output window, operand 0']
    #allocation3 [shape = 's32[2]{0}', space=sflag, size = 0x8, scoped, tag = 'scoped memory for tpu_custom_call.1']
    %10 = vsyncpa [#allocation3], 0
    %s11 = scalar_lea.sflag [#allocation3], 1
    %12 = vsyncpa %s11, 0
    loop: start=0, step=1, limit=4
    $region2: #{tpu_custom_call.1} parent=1 // loop_pre_header
      _
    $region3: #{tpu_custom_call.1} parent=1 // loop_header
      %s14 = sphi 0, %s18
      %p15 = scmp.ge.s32.totalorder %s14, 4
      %s24 = sphi 0, %s26
      %s27 = sphi 0, %s24
      %s28 = sphi 0, %s27
      %s44 = sphi 0, %s28
      %s48 = sphi 0, %s48
      %s50 = sphi 0, %s48
      %s51 = sphi 0, %s50
      %s65 = sphi 0, %s51
      %s69 = sphi 0, %s69
      %s71 = sphi 0, %s69
      %s72 = sphi 0, %s71
      %s86 = sphi 0, %s72
      %s90 = sphi 0, %s90
      %s92 = sphi 0, %s90
      %s93 = sphi 0, %s92
      %s107 = sphi 0, %s93
      %s111 = sphi 0, %s111
      %s113 = sphi 0, %s111
      %s114 = sphi 0, %s113
      %s128 = sphi 0, %s114
      %s134 = sphi 0, %s136
      %s137 = sphi 0, %s134
      %s138 = sphi 0, %s137
      %s154 = sphi 0, %s138
    $region4: #{tpu_custom_call.1} parent=1 // loop_header_branch
      %17 = sbr.rel (%p15) target = $region8
    $region5: #{tpu_custom_call.1} parent=1 // loop_body
      %s19 = ssub.s32 %s14, 1
      %s20 = ssub.s32 %s14, 2
      %s21 = sadd.s32 %s14, 1
      %s22 = ssub.s32 %s14, %s21
      %p23 = scmp.eq.s32.totalorder %s22, 0
      %s25 = sadd.s32 %s24, 1
      %s26 = scalar_select %p23, %s24, %s25
      %p29 = pneg %p23
      %p30 = scmp.eq.s32.totalorder %s14, 1
      %p31 = por %p29, %p30
      %p32 = scmp.ne.s32.totalorder %s24, %s27
      %p33 = scmp.eq.s32.totalorder %s14, 0
      %p34 = por %p32, %p33
      %p35 = scmp.ne.s32.totalorder %s24, %s27
      %p36 = scmp.eq.s32.totalorder %s19, 1
      %p37 = por %p35, %p36
      %p38 = scmp.ne.s32.totalorder %s27, %s28
      %p39 = scmp.eq.s32.totalorder %s19, 0
      %p40 = por %p38, %p39
      %p41 = scmp.ne.s32.totalorder %s27, %s28
      %p42 = scmp.eq.s32.totalorder %s20, 1
      %p43 = por %p41, %p42
      %p45 = scmp.ne.s32.totalorder %s28, %s44
      %p46 = scmp.eq.s32.totalorder %s20, 0
      %p47 = por %p45, %p46
      %s49 = sadd.s32 %s48, 1
      %p52 = scmp.eq.s32.totalorder %s14, 1
      %p53 = scmp.ne.s32.totalorder %s48, %s50
      %p54 = scmp.eq.s32.totalorder %s14, 0
      %p55 = por %p53, %p54
      %p56 = scmp.ne.s32.totalorder %s48, %s50
      %p57 = scmp.eq.s32.totalorder %s19, 1
      %p58 = por %p56, %p57
      %p59 = scmp.ne.s32.totalorder %s50, %s51
      %p60 = scmp.eq.s32.totalorder %s19, 0
      %p61 = por %p59, %p60
      %p62 = scmp.ne.s32.totalorder %s50, %s51
      %p63 = scmp.eq.s32.totalorder %s20, 1
      %p64 = por %p62, %p63
      %p66 = scmp.ne.s32.totalorder %s51, %s65
      %p67 = scmp.eq.s32.totalorder %s20, 0
      %p68 = por %p66, %p67
      %s70 = sadd.s32 %s69, 1
      %p73 = scmp.eq.s32.totalorder %s14, 1
      %p74 = scmp.ne.s32.totalorder %s69, %s71
      %p75 = scmp.eq.s32.totalorder %s14, 0
      %p76 = por %p74, %p75
      %p77 = scmp.ne.s32.totalorder %s69, %s71
      %p78 = scmp.eq.s32.totalorder %s19, 1
      %p79 = por %p77, %p78
      %p80 = scmp.ne.s32.totalorder %s71, %s72
      %p81 = scmp.eq.s32.totalorder %s19, 0
      %p82 = por %p80, %p81
      %p83 = scmp.ne.s32.totalorder %s71, %s72
      %p84 = scmp.eq.s32.totalorder %s20, 1
      %p85 = por %p83, %p84
      %p87 = scmp.ne.s32.totalorder %s72, %s86
      %p88 = scmp.eq.s32.totalorder %s20, 0
      %p89 = por %p87, %p88
      %s91 = sadd.s32 %s90, 1
      %p94 = scmp.eq.s32.totalorder %s14, 1
      %p95 = scmp.ne.s32.totalorder %s90, %s92
      %p96 = scmp.eq.s32.totalorder %s14, 0
      %p97 = por %p95, %p96
      %p98 = scmp.ne.s32.totalorder %s90, %s92
      %p99 = scmp.eq.s32.totalorder %s19, 1
      %p100 = por %p98, %p99
      %p101 = scmp.ne.s32.totalorder %s92, %s93
      %p102 = scmp.eq.s32.totalorder %s19, 0
      %p103 = por %p101, %p102
      %p104 = scmp.ne.s32.totalorder %s92, %s93
      %p105 = scmp.eq.s32.totalorder %s20, 1
      %p106 = por %p104, %p105
      %p108 = scmp.ne.s32.totalorder %s93, %s107
      %p109 = scmp.eq.s32.totalorder %s20, 0
      %p110 = por %p108, %p109
      %s112 = sadd.s32 %s111, 1
      %p115 = scmp.eq.s32.totalorder %s14, 1
      %p116 = scmp.ne.s32.totalorder %s111, %s113
      %p117 = scmp.eq.s32.totalorder %s14, 0
      %p118 = por %p116, %p117
      %p119 = scmp.ne.s32.totalorder %s111, %s113
      %p120 = scmp.eq.s32.totalorder %s19, 1
      %p121 = por %p119, %p120
      %p122 = scmp.ne.s32.totalorder %s113, %s114
      %p123 = scmp.eq.s32.totalorder %s19, 0
      %p124 = por %p122, %p123
      %p125 = scmp.ne.s32.totalorder %s113, %s114
      %p126 = scmp.eq.s32.totalorder %s20, 1
      %p127 = por %p125, %p126
      %p129 = scmp.ne.s32.totalorder %s114, %s128
      %p130 = scmp.eq.s32.totalorder %s20, 0
      %p131 = por %p129, %p130
      %s132 = ssub.s32 %s14, %s21
      %p133 = scmp.eq.s32.totalorder %s132, 0
      %s135 = sadd.s32 %s134, 1
      %s136 = scalar_select %p133, %s134, %s135
      %p139 = pneg %p133
      %p140 = scmp.eq.s32.totalorder %s14, 1
      %p141 = por %p139, %p140
      %p142 = scmp.ne.s32.totalorder %s134, %s137
      %p143 = scmp.eq.s32.totalorder %s14, 0
      %p144 = por %p142, %p143
      %p145 = scmp.ne.s32.totalorder %s134, %s137
      %p146 = scmp.eq.s32.totalorder %s19, 1
      %p147 = por %p145, %p146
      %p148 = scmp.ne.s32.totalorder %s137, %s138
      %p149 = scmp.eq.s32.totalorder %s19, 0
      %p150 = por %p148, %p149
      %p151 = scmp.ne.s32.totalorder %s137, %s138
      %p152 = scmp.eq.s32.totalorder %s20, 1
      %p153 = por %p151, %p152
      %p155 = scmp.ne.s32.totalorder %s138, %s154
      %p156 = scmp.eq.s32.totalorder %s20, 0
      %p157 = por %p155, %p156
      %p158 = scmp.le.s32.totalorder 1, %s14
      %p159 = scmp.lt.s32.totalorder %s14, 3
      %p160 = pnand %p158, %p159
      %p161 = pneg %p160
      // Predicated region
      $region9: #{tpu_custom_call.1} parent=5 // pred_check
        _
      $region10: #{tpu_custom_call.1} parent=5 // pred_check_branch
        %163 = sbr.rel (%p160) target = $region12
      $region11: #{tpu_custom_call.1} parent=5 // pred_region
        %s164 = ssub.s32 %s14, 1
        // Predicated region
        $region13: #{tpu_custom_call.1} parent=11 // pred_check
          %p165 = pneg %p61
        $region14: #{tpu_custom_call.1} parent=11 // pred_check_branch
          %167 = sbr.rel (%p165) target = $region16
        $region15: #{tpu_custom_call.1} parent=11 // pred_region
          _
        $region16: #{tpu_custom_call.1} parent=11 // pred_fallthru
          _
        // Predicated region
        $region17: #{tpu_custom_call.1} parent=11 // pred_check
          %p168 = pneg %p82
        $region18: #{tpu_custom_call.1} parent=11 // pred_check_branch
          %170 = sbr.rel (%p168) target = $region20
        $region19: #{tpu_custom_call.1} parent=11 // pred_region
          _
        $region20: #{tpu_custom_call.1} parent=11 // pred_fallthru
          _
        // Predicated region
        $region21: #{tpu_custom_call.1} parent=11 // pred_check
          %p171 = pneg %p103
        $region22: #{tpu_custom_call.1} parent=11 // pred_check_branch
          %173 = sbr.rel (%p171) target = $region24
        $region23: #{tpu_custom_call.1} parent=11 // pred_region
          _
        $region24: #{tpu_custom_call.1} parent=11 // pred_fallthru
          _
        // Predicated region
        $region25: #{tpu_custom_call.1} parent=11 // pred_check
          %p174 = pneg %p124
        $region26: #{tpu_custom_call.1} parent=11 // pred_check_branch
          %176 = sbr.rel (%p174) target = $region28
        $region27: #{tpu_custom_call.1} parent=11 // pred_region
          _
        $region28: #{tpu_custom_call.1} parent=11 // pred_fallthru
          _
      $region12: #{tpu_custom_call.1} parent=5 // pred_fallthru
        _
      %p177 = scmp.lt.s32.totalorder %s14, 2
      // Predicated region
      $region29: #{tpu_custom_call.1} parent=5 // pred_check
        %p178 = pneg %p177
      $region30: #{tpu_custom_call.1} parent=5 // pred_check_branch
        %180 = sbr.rel (%p178) target = $region32
      $region31: #{tpu_custom_call.1} parent=5 // pred_region
        // Predicated region
        $region33: #{tpu_custom_call.1} parent=31 // pred_check
          %p181 = pneg %p34
        $region34: #{tpu_custom_call.1} parent=31 // pred_check_branch
          %183 = sbr.rel (%p181) target = $region36
        $region35: #{tpu_custom_call.1} parent=31 // pred_region
          %p184 = scmp.lt.s32.totalorder %s14, 1
          %s185 = scalar_select %p184, %s14, 1
          %s186 = smul.addr %s185, 2
          %s187 = smul.addr %s186, 4
          %s188 = scalar_lea.vmem %s0, %s187
        $region36: #{tpu_custom_call.1} parent=31 // pred_fallthru
          _
      $region32: #{tpu_custom_call.1} parent=5 // pred_fallthru
        _
      %p189 = scmp.le.s32.totalorder 1, %s14
      %p190 = scmp.lt.s32.totalorder %s14, 3
      %p191 = pnand %p189, %p190
      %p192 = pneg %p191
      // Predicated region
      $region37: #{tpu_custom_call.1} parent=5 // pred_check
        _
      $region38: #{tpu_custom_call.1} parent=5 // pred_check_branch
        %194 = sbr.rel (%p191) target = $region40
      $region39: #{tpu_custom_call.1} parent=5 // pred_region
        %s195 = ssub.s32 %s14, 1
        %p196 = scmp.lt.s32.totalorder %s19, 1
        %s197 = scalar_select %p196, %s19, 1
        %s198 = smul.addr %s197, 2
        %s199 = smul.addr %s198, 4
        %s200 = scalar_lea.vmem %s0, %s199
        %p201 = pneg %p40
        %p202 = pneg %p37
        %p203 = pneg %p61
        %p204 = pneg %p58
        %p205 = pneg %p82
        %p206 = pneg %p79
        %p207 = pneg %p103
        %p208 = pneg %p100
        %p209 = pneg %p124
        %p210 = pneg %p121
        %p211 = pneg %p150
        %p212 = pneg %p147
        %s213 = sand.u32 %s137, 1
        %s214 = scalar_lea.sflag [#allocation3], %s213
        %s215 = sand.u32 %s137, 1
        %s216 = smul.addr %s215, 24
        %s217 = scalar_lea.vmem [#allocation2], %s216
        %p218 = scmp.lt.s32.totalorder %s19, 1
        %s219 = scalar_select %p218, %s19, 1
        %s220 = smul.addr %s219, 2
        %s221 = smul.addr %s220, 4
        %s222 = scalar_lea.vmem %s0, %s221
        %v223 = vld [vmem:[%s222] sm:$0xff]
        %v224 = vld [vmem:[%s1] sm:$0xff]
        %v225 = vld [vmem:[%s1 + $0x8] sm:$0xff]
        %v226 = vld [vmem:[%s1 + $0x10] sm:$0xff]
        %v227 = vld [vmem:[%s1 + $0x18] sm:$0xff]
        %v228 = vld [vmem:[%s1 + $0x20] sm:$0xff]
        %v229 = vld [vmem:[%s1 + $0x28] sm:$0xff]
        %v230 = vld [vmem:[%s1 + $0x30] sm:$0xff]
        %v231 = vld [vmem:[%s1 + $0x38] sm:$0xff]
        %v232 = vld [vmem:[%s1 + $0x40] sm:$0xff]
        %242 = vrot.lane.b32.xlu0 %v224, 124
        %v243 = vpop.permute.xlu0 %242
        %244 = vrot.lane.b32.xlu0 %v225, 124
        %v245 = vpop.permute.xlu0 %244
        %246 = vrot.lane.b32.xlu0 %v226, 124
        %v247 = vpop.permute.xlu0 %246
        %248 = vrot.lane.b32.xlu0 %v227, 124
        %v249 = vpop.permute.xlu0 %248
        %250 = vrot.lane.b32.xlu0 %v228, 124
        %v251 = vpop.permute.xlu0 %250
        %252 = vrot.lane.b32.xlu0 %v229, 124
        %v253 = vpop.permute.xlu0 %252
        %254 = vrot.lane.b32.xlu0 %v230, 124
        %v255 = vpop.permute.xlu0 %254
        %256 = vrot.lane.b32.xlu0 %v231, 124
        %v257 = vpop.permute.xlu0 %256
        %258 = vrot.lane.b32.xlu0 %v232, 124
        %v259 = vpop.permute.xlu0 %258
        %v261 = vcombine.high %v223, %v223
        %262 = vrot.lane.b32.xlu0 %v223, 127
        %v263 = vpop.permute.xlu0 %262
        %264 = vrot.lane.b32.xlu0 %v261, 127
        %v265 = vpop.permute.xlu0 %264
        %vm266 = vcmask 1039360
        %v267 = vsel %vm266, %v263, %v265
        %vm268 = vcmask 31744
        %v269 = vsel %vm268, %v243, 0
        %v271 = vsel %vm268, %v245, 0
        %v273 = vsel %vm268, %v247, 0
        %v275 = vsel %vm268, %v249, 0
        %v277 = vsel %vm268, %v251, 0
        %v279 = vsel %vm268, %v253, 0
        %v281 = vsel %vm268, %v255, 0
        %v283 = vsel %vm268, %v257, 0
        %v285 = vsel %vm268, %v259, 0
        %vm287 = vcmask 1043456
        %v288 = vsel %vm287, %v267, 0
        %290 = vmatprep.subr.mxu0 0.0
        %291 = vmatpush1.msra.mxu0 0.0
        %292 = vmatprep.subr.mxu0 0.0
        %293 = vmatpush1.msra.mxu0 0.0
        %294 = vmatprep.subr.mxu0 0.0
        %295 = vmatpush1.msra.mxu0 0.0
        %296 = vmatprep.subr.mxu0 0.0
        %297 = vmatpush1.msra.mxu0 0.0
        %298 = vmatprep.subr.mxu0 0.0
        %299 = vmatpush1.msra.mxu0 0.0
        %300 = vmatprep.subr.mxu0 0.0
        %301 = vmatpush1.msra.mxu0 0.0
        %302 = vmatprep.subr.mxu0 0.0
        %303 = vmatpush1.msra.mxu0 0.0
        %304 = vmatprep.subr.mxu0 0.0
        %305 = vmatpush1.msra.mxu0 0.0
        %306 = vmatprep.subr.mxu0 0.0
        %307 = vmatpush1.msra.mxu0 0.0
        %308 = vmatprep.subr.mxu0 0.0
        %309 = vmatpush1.msra.mxu0 0.0
        %310 = vmatprep.subr.mxu0 0.0
        %311 = vmatpush1.msra.mxu0 0.0
        %312 = vmatprep.subr.mxu0 0.0
        %313 = vmatpush1.msra.mxu0 0.0
        %314 = vmatprep.subr.mxu0 0.0
        %315 = vmatpush1.msra.mxu0 0.0
        %316 = vmatprep.subr.mxu0 0.0
        %317 = vmatpush1.msra.mxu0 0.0
        %318 = vmatprep.subr.mxu0 0.0
        %319 = vmatpush1.msra.mxu0 0.0
        %320 = vmatprep.subr.mxu0 0.0
        %321 = vmatpush1.msra.mxu0 %v288
        %322 = vmatprep.subr.mxu0 0.0
        %323 = vmatpush2.msra.mxu0 0.0
        %324 = vmatprep.subr.mxu0 0.0
        %325 = vmatpush2.msra.mxu0 0.0
        %326 = vmatprep.subr.mxu0 0.0
        %327 = vmatpush2.msra.mxu0 0.0
        %328 = vmatprep.subr.mxu0 0.0
        %329 = vmatpush2.msra.mxu0 0.0
        %330 = vmatprep.subr.mxu0 0.0
        %331 = vmatpush2.msra.mxu0 0.0
        %332 = vmatprep.subr.mxu0 0.0
        %333 = vmatpush2.msra.mxu0 0.0
        %334 = vmatprep.subr.mxu0 0.0
        %335 = vmatpush2.msra.mxu0 0.0
        %336 = vmatprep.subr.mxu0 0.0
        %337 = vmatpush2.msra.mxu0 0.0
        %338 = vmatprep.subr.mxu0 0.0
        %339 = vmatpush2.msra.mxu0 0.0
        %340 = vmatprep.subr.mxu0 0.0
        %341 = vmatpush2.msra.mxu0 0.0
        %342 = vmatprep.subr.mxu0 0.0
        %343 = vmatpush2.msra.mxu0 0.0
        %344 = vmatprep.subr.mxu0 0.0
        %345 = vmatpush2.msra.mxu0 0.0
        %346 = vmatprep.subr.mxu0 0.0
        %347 = vmatpush2.msra.mxu0 0.0
        %348 = vmatprep.subr.mxu0 0.0
        %349 = vmatpush2.msra.mxu0 0.0
        %350 = vmatprep.subr.mxu0 0.0
        %351 = vmatpush2.msra.mxu0 0.0
        %352 = vmatprep.subr.mxu0 0.0
        %353 = vmatpush2.msra.mxu0 0.0
        %354 = vmatprep.mubr.f32.mxu0 0.0
        %355 = vmatmul.mubr.f32.gmra.mxu0 %v269
        %v356 = vpop.f32.mrf.mxu0
        %v357 = vadd.f32 0.0, %v356
        %v358 = vpop.f32.mrf.mxu0
        %359 = vmatprep.mubr.f32.mxu0 0.0
        %360 = vmatmul.mubr.f32.gmra.mxu0 %v271
        %v361 = vpop.f32.mrf.mxu0
        %v362 = vadd.f32 0.0, %v361
        %v363 = vpop.f32.mrf.mxu0
        %364 = vmatprep.mubr.f32.mxu0 0.0
        %365 = vmatmul.mubr.f32.gmra.mxu0 %v273
        %v366 = vpop.f32.mrf.mxu0
        %v367 = vadd.f32 0.0, %v366
        %v368 = vpop.f32.mrf.mxu0
        %369 = vmatprep.mubr.f32.mxu0 0.0
        %370 = vmatmul.mubr.f32.gmra.mxu0 %v275
        %v371 = vpop.f32.mrf.mxu0
        %v372 = vadd.f32 0.0, %v371
        %v373 = vpop.f32.mrf.mxu0
        %374 = vmatprep.mubr.f32.mxu0 0.0
        %375 = vmatmul.mubr.f32.gmra.mxu0 %v277
        %v376 = vpop.f32.mrf.mxu0
        %v377 = vadd.f32 0.0, %v376
        %v378 = vpop.f32.mrf.mxu0
        %379 = vmatprep.mubr.f32.mxu0 0.0
        %380 = vmatmul.mubr.f32.gmra.mxu0 %v279
        %v381 = vpop.f32.mrf.mxu0
        %v382 = vadd.f32 0.0, %v381
        %v383 = vpop.f32.mrf.mxu0
        %384 = vmatprep.mubr.f32.mxu0 0.0
        %385 = vmatmul.mubr.f32.gmra.mxu0 %v281
        %v386 = vpop.f32.mrf.mxu0
        %v387 = vadd.f32 0.0, %v386
        %v388 = vpop.f32.mrf.mxu0
        %389 = vmatprep.mubr.f32.mxu0 0.0
        %390 = vmatmul.mubr.f32.gmra.mxu0 %v283
        %v391 = vpop.f32.mrf.mxu0
        %v392 = vadd.f32 0.0, %v391
        %v393 = vpop.f32.mrf.mxu0
        %394 = vmatprep.mubr.f32.mxu0 0.0
        %395 = vmatmul.mubr.f32.gmra.mxu0 %v285
        %v396 = vpop.f32.mrf.mxu0
        %v397 = vadd.f32 0.0, %v396
        %v398 = vpop.f32.mrf.mxu0
        %399 = vdwg.mxu0
        %v400 = vsel %vm268, %v224, 0
        %v402 = vsel %vm268, %v225, 0
        %v404 = vsel %vm268, %v226, 0
        %v406 = vsel %vm268, %v227, 0
        %v408 = vsel %vm268, %v228, 0
        %v410 = vsel %vm268, %v229, 0
        %v412 = vsel %vm268, %v230, 0
        %v414 = vsel %vm268, %v231, 0
        %v416 = vsel %vm268, %v232, 0
        %v418 = vsel %vm287, %v223, 0
        %420 = vmatprep.subr.mxu0 0.0
        %421 = vmatpush1.msra.mxu0 0.0
        %422 = vmatprep.subr.mxu0 0.0
        %423 = vmatpush1.msra.mxu0 0.0
        %424 = vmatprep.subr.mxu0 0.0
        %425 = vmatpush1.msra.mxu0 0.0
        %426 = vmatprep.subr.mxu0 0.0
        %427 = vmatpush1.msra.mxu0 0.0
        %428 = vmatprep.subr.mxu0 0.0
        %429 = vmatpush1.msra.mxu0 0.0
        %430 = vmatprep.subr.mxu0 0.0
        %431 = vmatpush1.msra.mxu0 0.0
        %432 = vmatprep.subr.mxu0 0.0
        %433 = vmatpush1.msra.mxu0 0.0
        %434 = vmatprep.subr.mxu0 0.0
        %435 = vmatpush1.msra.mxu0 0.0
        %436 = vmatprep.subr.mxu0 0.0
        %437 = vmatpush1.msra.mxu0 0.0
        %438 = vmatprep.subr.mxu0 0.0
        %439 = vmatpush1.msra.mxu0 0.0
        %440 = vmatprep.subr.mxu0 0.0
        %441 = vmatpush1.msra.mxu0 0.0
        %442 = vmatprep.subr.mxu0 0.0
        %443 = vmatpush1.msra.mxu0 0.0
        %444 = vmatprep.subr.mxu0 0.0
        %445 = vmatpush1.msra.mxu0 0.0
        %446 = vmatprep.subr.mxu0 0.0
        %447 = vmatpush1.msra.mxu0 0.0
        %448 = vmatprep.subr.mxu0 0.0
        %449 = vmatpush1.msra.mxu0 0.0
        %450 = vmatprep.subr.mxu0 0.0
        %451 = vmatpush1.msra.mxu0 %v418
        %452 = vmatprep.subr.mxu0 0.0
        %453 = vmatpush2.msra.mxu0 0.0
        %454 = vmatprep.subr.mxu0 0.0
        %455 = vmatpush2.msra.mxu0 0.0
        %456 = vmatprep.subr.mxu0 0.0
        %457 = vmatpush2.msra.mxu0 0.0
        %458 = vmatprep.subr.mxu0 0.0
        %459 = vmatpush2.msra.mxu0 0.0
        %460 = vmatprep.subr.mxu0 0.0
        %461 = vmatpush2.msra.mxu0 0.0
        %462 = vmatprep.subr.mxu0 0.0
        %463 = vmatpush2.msra.mxu0 0.0
        %464 = vmatprep.subr.mxu0 0.0
        %465 = vmatpush2.msra.mxu0 0.0
        %466 = vmatprep.subr.mxu0 0.0
        %467 = vmatpush2.msra.mxu0 0.0
        %468 = vmatprep.subr.mxu0 0.0
        %469 = vmatpush2.msra.mxu0 0.0
        %470 = vmatprep.subr.mxu0 0.0
        %471 = vmatpush2.msra.mxu0 0.0
        %472 = vmatprep.subr.mxu0 0.0
        %473 = vmatpush2.msra.mxu0 0.0
        %474 = vmatprep.subr.mxu0 0.0
        %475 = vmatpush2.msra.mxu0 0.0
        %476 = vmatprep.subr.mxu0 0.0
        %477 = vmatpush2.msra.mxu0 0.0
        %478 = vmatprep.subr.mxu0 0.0
        %479 = vmatpush2.msra.mxu0 0.0
        %480 = vmatprep.subr.mxu0 0.0
        %481 = vmatpush2.msra.mxu0 0.0
        %482 = vmatprep.subr.mxu0 0.0
        %483 = vmatpush2.msra.mxu0 0.0
        %484 = vmatprep.mubr.f32.mxu0 0.0
        %485 = vmatmul.mubr.f32.gmra.mxu0 %v400
        %v486 = vpop.f32.mrf.mxu0
        %v487 = vadd.f32 %v357, %v486
        %v488 = vpop.f32.mrf.mxu0
        %489 = vmatprep.mubr.f32.mxu0 0.0
        %490 = vmatmul.mubr.f32.gmra.mxu0 %v402
        %v491 = vpop.f32.mrf.mxu0
        %v492 = vadd.f32 %v362, %v491
        %v493 = vpop.f32.mrf.mxu0
        %494 = vmatprep.mubr.f32.mxu0 0.0
        %495 = vmatmul.mubr.f32.gmra.mxu0 %v404
        %v496 = vpop.f32.mrf.mxu0
        %v497 = vadd.f32 %v367, %v496
        %v498 = vpop.f32.mrf.mxu0
        %499 = vmatprep.mubr.f32.mxu0 0.0
        %500 = vmatmul.mubr.f32.gmra.mxu0 %v406
        %v501 = vpop.f32.mrf.mxu0
        %v502 = vadd.f32 %v372, %v501
        %v503 = vpop.f32.mrf.mxu0
        %504 = vmatprep.mubr.f32.mxu0 0.0
        %505 = vmatmul.mubr.f32.gmra.mxu0 %v408
        %v506 = vpop.f32.mrf.mxu0
        %v507 = vadd.f32 %v377, %v506
        %v508 = vpop.f32.mrf.mxu0
        %509 = vmatprep.mubr.f32.mxu0 0.0
        %510 = vmatmul.mubr.f32.gmra.mxu0 %v410
        %v511 = vpop.f32.mrf.mxu0
        %v512 = vadd.f32 %v382, %v511
        %v513 = vpop.f32.mrf.mxu0
        %514 = vmatprep.mubr.f32.mxu0 0.0
        %515 = vmatmul.mubr.f32.gmra.mxu0 %v412
        %v516 = vpop.f32.mrf.mxu0
        %v517 = vadd.f32 %v387, %v516
        %v518 = vpop.f32.mrf.mxu0
        %519 = vmatprep.mubr.f32.mxu0 0.0
        %520 = vmatmul.mubr.f32.gmra.mxu0 %v414
        %v521 = vpop.f32.mrf.mxu0
        %v522 = vadd.f32 %v392, %v521
        %v523 = vpop.f32.mrf.mxu0
        %524 = vmatprep.mubr.f32.mxu0 0.0
        %525 = vmatmul.mubr.f32.gmra.mxu0 %v416
        %v526 = vpop.f32.mrf.mxu0
        %v527 = vadd.f32 %v397, %v526
        %v528 = vpop.f32.mrf.mxu0
        %529 = vdwg.mxu0
        %530 = vrot.lane.b32.xlu0 %v224, 120
        %v531 = vpop.permute.xlu0 %530
        %532 = vrot.lane.b32.xlu0 %v225, 120
        %v533 = vpop.permute.xlu0 %532
        %534 = vrot.lane.b32.xlu0 %v226, 120
        %v535 = vpop.permute.xlu0 %534
        %536 = vrot.lane.b32.xlu0 %v227, 120
        %v537 = vpop.permute.xlu0 %536
        %538 = vrot.lane.b32.xlu0 %v228, 120
        %v539 = vpop.permute.xlu0 %538
        %540 = vrot.lane.b32.xlu0 %v229, 120
        %v541 = vpop.permute.xlu0 %540
        %542 = vrot.lane.b32.xlu0 %v230, 120
        %v543 = vpop.permute.xlu0 %542
        %544 = vrot.lane.b32.xlu0 %v231, 120
        %v545 = vpop.permute.xlu0 %544
        %546 = vrot.lane.b32.xlu0 %v232, 120
        %v547 = vpop.permute.xlu0 %546
        %548 = vrot.lane.b32.xlu0 %v223, 126
        %v549 = vpop.permute.xlu0 %548
        %550 = vrot.lane.b32.xlu0 %v261, 126
        %v551 = vpop.permute.xlu0 %550
        %vm552 = vcmask 1031168
        %v553 = vsel %vm552, %v549, %v551
        %v554 = vsel %vm268, %v531, 0
        %v556 = vsel %vm268, %v533, 0
        %v558 = vsel %vm268, %v535, 0
        %v560 = vsel %vm268, %v537, 0
        %v562 = vsel %vm268, %v539, 0
        %v564 = vsel %vm268, %v541, 0
        %v566 = vsel %vm268, %v543, 0
        %v568 = vsel %vm268, %v545, 0
        %v570 = vsel %vm268, %v547, 0
        %v572 = vsel %vm287, %v553, 0
        %574 = vmatprep.subr.mxu0 0.0
        %575 = vmatpush1.msra.mxu0 0.0
        %576 = vmatprep.subr.mxu0 0.0
        %577 = vmatpush1.msra.mxu0 0.0
        %578 = vmatprep.subr.mxu0 0.0
        %579 = vmatpush1.msra.mxu0 0.0
        %580 = vmatprep.subr.mxu0 0.0
        %581 = vmatpush1.msra.mxu0 0.0
        %582 = vmatprep.subr.mxu0 0.0
        %583 = vmatpush1.msra.mxu0 0.0
        %584 = vmatprep.subr.mxu0 0.0
        %585 = vmatpush1.msra.mxu0 0.0
        %586 = vmatprep.subr.mxu0 0.0
        %587 = vmatpush1.msra.mxu0 0.0
        %588 = vmatprep.subr.mxu0 0.0
        %589 = vmatpush1.msra.mxu0 0.0
        %590 = vmatprep.subr.mxu0 0.0
        %591 = vmatpush1.msra.mxu0 0.0
        %592 = vmatprep.subr.mxu0 0.0
        %593 = vmatpush1.msra.mxu0 0.0
        %594 = vmatprep.subr.mxu0 0.0
        %595 = vmatpush1.msra.mxu0 0.0
        %596 = vmatprep.subr.mxu0 0.0
        %597 = vmatpush1.msra.mxu0 0.0
        %598 = vmatprep.subr.mxu0 0.0
        %599 = vmatpush1.msra.mxu0 0.0
        %600 = vmatprep.subr.mxu0 0.0
        %601 = vmatpush1.msra.mxu0 0.0
        %602 = vmatprep.subr.mxu0 0.0
        %603 = vmatpush1.msra.mxu0 0.0
        %604 = vmatprep.subr.mxu0 0.0
        %605 = vmatpush1.msra.mxu0 %v572
        %606 = vmatprep.subr.mxu0 0.0
        %607 = vmatpush2.msra.mxu0 0.0
        %608 = vmatprep.subr.mxu0 0.0
        %609 = vmatpush2.msra.mxu0 0.0
        %610 = vmatprep.subr.mxu0 0.0
        %611 = vmatpush2.msra.mxu0 0.0
        %612 = vmatprep.subr.mxu0 0.0
        %613 = vmatpush2.msra.mxu0 0.0
        %614 = vmatprep.subr.mxu0 0.0
        %615 = vmatpush2.msra.mxu0 0.0
        %616 = vmatprep.subr.mxu0 0.0
        %617 = vmatpush2.msra.mxu0 0.0
        %618 = vmatprep.subr.mxu0 0.0
        %619 = vmatpush2.msra.mxu0 0.0
        %620 = vmatprep.subr.mxu0 0.0
        %621 = vmatpush2.msra.mxu0 0.0
        %622 = vmatprep.subr.mxu0 0.0
        %623 = vmatpush2.msra.mxu0 0.0
        %624 = vmatprep.subr.mxu0 0.0
        %625 = vmatpush2.msra.mxu0 0.0
        %626 = vmatprep.subr.mxu0 0.0
        %627 = vmatpush2.msra.mxu0 0.0
        %628 = vmatprep.subr.mxu0 0.0
        %629 = vmatpush2.msra.mxu0 0.0
        %630 = vmatprep.subr.mxu0 0.0
        %631 = vmatpush2.msra.mxu0 0.0
        %632 = vmatprep.subr.mxu0 0.0
        %633 = vmatpush2.msra.mxu0 0.0
        %634 = vmatprep.subr.mxu0 0.0
        %635 = vmatpush2.msra.mxu0 0.0
        %636 = vmatprep.subr.mxu0 0.0
        %637 = vmatpush2.msra.mxu0 0.0
        %638 = vmatprep.mubr.f32.mxu0 0.0
        %639 = vmatmul.mubr.f32.gmra.mxu0 %v554
        %v640 = vpop.f32.mrf.mxu0
        %v641 = vadd.f32 0.0, %v640
        %v642 = vpop.f32.mrf.mxu0
        %643 = vmatprep.mubr.f32.mxu0 0.0
        %644 = vmatmul.mubr.f32.gmra.mxu0 %v556
        %v645 = vpop.f32.mrf.mxu0
        %v646 = vadd.f32 0.0, %v645
        %v647 = vpop.f32.mrf.mxu0
        %648 = vmatprep.mubr.f32.mxu0 0.0
        %649 = vmatmul.mubr.f32.gmra.mxu0 %v558
        %v650 = vpop.f32.mrf.mxu0
        %v651 = vadd.f32 0.0, %v650
        %v652 = vpop.f32.mrf.mxu0
        %653 = vmatprep.mubr.f32.mxu0 0.0
        %654 = vmatmul.mubr.f32.gmra.mxu0 %v560
        %v655 = vpop.f32.mrf.mxu0
        %v656 = vadd.f32 0.0, %v655
        %v657 = vpop.f32.mrf.mxu0
        %658 = vmatprep.mubr.f32.mxu0 0.0
        %659 = vmatmul.mubr.f32.gmra.mxu0 %v562
        %v660 = vpop.f32.mrf.mxu0
        %v661 = vadd.f32 0.0, %v660
        %v662 = vpop.f32.mrf.mxu0
        %663 = vmatprep.mubr.f32.mxu0 0.0
        %664 = vmatmul.mubr.f32.gmra.mxu0 %v564
        %v665 = vpop.f32.mrf.mxu0
        %v666 = vadd.f32 0.0, %v665
        %v667 = vpop.f32.mrf.mxu0
        %668 = vmatprep.mubr.f32.mxu0 0.0
        %669 = vmatmul.mubr.f32.gmra.mxu0 %v566
        %v670 = vpop.f32.mrf.mxu0
        %v671 = vadd.f32 0.0, %v670
        %v672 = vpop.f32.mrf.mxu0
        %673 = vmatprep.mubr.f32.mxu0 0.0
        %674 = vmatmul.mubr.f32.gmra.mxu0 %v568
        %v675 = vpop.f32.mrf.mxu0
        %v676 = vadd.f32 0.0, %v675
        %v677 = vpop.f32.mrf.mxu0
        %678 = vmatprep.mubr.f32.mxu0 0.0
        %679 = vmatmul.mubr.f32.gmra.mxu0 %v570
        %v680 = vpop.f32.mrf.mxu0
        %v681 = vadd.f32 0.0, %v680
        %v682 = vpop.f32.mrf.mxu0
        %683 = vdwg.mxu0
        %v684 = vadd.f32 %v487, %v641
        %v685 = vadd.f32 %v492, %v646
        %v686 = vadd.f32 %v497, %v651
        %v687 = vadd.f32 %v502, %v656
        %v688 = vadd.f32 %v507, %v661
        %v689 = vadd.f32 %v512, %v666
        %v690 = vadd.f32 %v517, %v671
        %v691 = vadd.f32 %v522, %v676
        %v692 = vadd.f32 %v527, %v681
        %693 = vrot.lane.b32.xlu0 %v224, 116
        %v694 = vpop.permute.xlu0 %693
        %695 = vrot.lane.b32.xlu0 %v225, 116
        %v696 = vpop.permute.xlu0 %695
        %697 = vrot.lane.b32.xlu0 %v226, 116
        %v698 = vpop.permute.xlu0 %697
        %699 = vrot.lane.b32.xlu0 %v227, 116
        %v700 = vpop.permute.xlu0 %699
        %701 = vrot.lane.b32.xlu0 %v228, 116
        %v702 = vpop.permute.xlu0 %701
        %703 = vrot.lane.b32.xlu0 %v229, 116
        %v704 = vpop.permute.xlu0 %703
        %705 = vrot.lane.b32.xlu0 %v230, 116
        %v706 = vpop.permute.xlu0 %705
        %707 = vrot.lane.b32.xlu0 %v231, 116
        %v708 = vpop.permute.xlu0 %707
        %709 = vrot.lane.b32.xlu0 %v232, 116
        %v710 = vpop.permute.xlu0 %709
        %711 = vrot.lane.b32.xlu0 %v223, 125
        %v712 = vpop.permute.xlu0 %711
        %713 = vrot.lane.b32.xlu0 %v261, 125
        %v714 = vpop.permute.xlu0 %713
        %vm715 = vcmask 1022976
        %v716 = vsel %vm715, %v712, %v714
        %v717 = vsel %vm268, %v694, 0
        %v719 = vsel %vm268, %v696, 0
        %v721 = vsel %vm268, %v698, 0
        %v723 = vsel %vm268, %v700, 0
        %v725 = vsel %vm268, %v702, 0
        %v727 = vsel %vm268, %v704, 0
        %v729 = vsel %vm268, %v706, 0
        %v731 = vsel %vm268, %v708, 0
        %v733 = vsel %vm268, %v710, 0
        %v735 = vsel %vm287, %v716, 0
        %737 = vmatprep.subr.mxu0 0.0
        %738 = vmatpush1.msra.mxu0 0.0
        %739 = vmatprep.subr.mxu0 0.0
        %740 = vmatpush1.msra.mxu0 0.0
        %741 = vmatprep.subr.mxu0 0.0
        %742 = vmatpush1.msra.mxu0 0.0
        %743 = vmatprep.subr.mxu0 0.0
        %744 = vmatpush1.msra.mxu0 0.0
        %745 = vmatprep.subr.mxu0 0.0
        %746 = vmatpush1.msra.mxu0 0.0
        %747 = vmatprep.subr.mxu0 0.0
        %748 = vmatpush1.msra.mxu0 0.0
        %749 = vmatprep.subr.mxu0 0.0
        %750 = vmatpush1.msra.mxu0 0.0
        %751 = vmatprep.subr.mxu0 0.0
        %752 = vmatpush1.msra.mxu0 0.0
        %753 = vmatprep.subr.mxu0 0.0
        %754 = vmatpush1.msra.mxu0 0.0
        %755 = vmatprep.subr.mxu0 0.0
        %756 = vmatpush1.msra.mxu0 0.0
        %757 = vmatprep.subr.mxu0 0.0
        %758 = vmatpush1.msra.mxu0 0.0
        %759 = vmatprep.subr.mxu0 0.0
        %760 = vmatpush1.msra.mxu0 0.0
        %761 = vmatprep.subr.mxu0 0.0
        %762 = vmatpush1.msra.mxu0 0.0
        %763 = vmatprep.subr.mxu0 0.0
        %764 = vmatpush1.msra.mxu0 0.0
        %765 = vmatprep.subr.mxu0 0.0
        %766 = vmatpush1.msra.mxu0 0.0
        %767 = vmatprep.subr.mxu0 0.0
        %768 = vmatpush1.msra.mxu0 %v735
        %769 = vmatprep.subr.mxu0 0.0
        %770 = vmatpush2.msra.mxu0 0.0
        %771 = vmatprep.subr.mxu0 0.0
        %772 = vmatpush2.msra.mxu0 0.0
        %773 = vmatprep.subr.mxu0 0.0
        %774 = vmatpush2.msra.mxu0 0.0
        %775 = vmatprep.subr.mxu0 0.0
        %776 = vmatpush2.msra.mxu0 0.0
        %777 = vmatprep.subr.mxu0 0.0
        %778 = vmatpush2.msra.mxu0 0.0
        %779 = vmatprep.subr.mxu0 0.0
        %780 = vmatpush2.msra.mxu0 0.0
        %781 = vmatprep.subr.mxu0 0.0
        %782 = vmatpush2.msra.mxu0 0.0
        %783 = vmatprep.subr.mxu0 0.0
        %784 = vmatpush2.msra.mxu0 0.0
        %785 = vmatprep.subr.mxu0 0.0
        %786 = vmatpush2.msra.mxu0 0.0
        %787 = vmatprep.subr.mxu0 0.0
        %788 = vmatpush2.msra.mxu0 0.0
        %789 = vmatprep.subr.mxu0 0.0
        %790 = vmatpush2.msra.mxu0 0.0
        %791 = vmatprep.subr.mxu0 0.0
        %792 = vmatpush2.msra.mxu0 0.0
        %793 = vmatprep.subr.mxu0 0.0
        %794 = vmatpush2.msra.mxu0 0.0
        %795 = vmatprep.subr.mxu0 0.0
        %796 = vmatpush2.msra.mxu0 0.0
        %797 = vmatprep.subr.mxu0 0.0
        %798 = vmatpush2.msra.mxu0 0.0
        %799 = vmatprep.subr.mxu0 0.0
        %800 = vmatpush2.msra.mxu0 0.0
        %801 = vmatprep.mubr.f32.mxu0 0.0
        %802 = vmatmul.mubr.f32.gmra.mxu0 %v717
        %v803 = vpop.f32.mrf.mxu0
        %v804 = vadd.f32 0.0, %v803
        %v805 = vpop.f32.mrf.mxu0
        %806 = vmatprep.mubr.f32.mxu0 0.0
        %807 = vmatmul.mubr.f32.gmra.mxu0 %v719
        %v808 = vpop.f32.mrf.mxu0
        %v809 = vadd.f32 0.0, %v808
        %v810 = vpop.f32.mrf.mxu0
        %811 = vmatprep.mubr.f32.mxu0 0.0
        %812 = vmatmul.mubr.f32.gmra.mxu0 %v721
        %v813 = vpop.f32.mrf.mxu0
        %v814 = vadd.f32 0.0, %v813
        %v815 = vpop.f32.mrf.mxu0
        %816 = vmatprep.mubr.f32.mxu0 0.0
        %817 = vmatmul.mubr.f32.gmra.mxu0 %v723
        %v818 = vpop.f32.mrf.mxu0
        %v819 = vadd.f32 0.0, %v818
        %v820 = vpop.f32.mrf.mxu0
        %821 = vmatprep.mubr.f32.mxu0 0.0
        %822 = vmatmul.mubr.f32.gmra.mxu0 %v725
        %v823 = vpop.f32.mrf.mxu0
        %v824 = vadd.f32 0.0, %v823
        %v825 = vpop.f32.mrf.mxu0
        %826 = vmatprep.mubr.f32.mxu0 0.0
        %827 = vmatmul.mubr.f32.gmra.mxu0 %v727
        %v828 = vpop.f32.mrf.mxu0
        %v829 = vadd.f32 0.0, %v828
        %v830 = vpop.f32.mrf.mxu0
        %831 = vmatprep.mubr.f32.mxu0 0.0
        %832 = vmatmul.mubr.f32.gmra.mxu0 %v729
        %v833 = vpop.f32.mrf.mxu0
        %v834 = vadd.f32 0.0, %v833
        %v835 = vpop.f32.mrf.mxu0
        %836 = vmatprep.mubr.f32.mxu0 0.0
        %837 = vmatmul.mubr.f32.gmra.mxu0 %v731
        %v838 = vpop.f32.mrf.mxu0
        %v839 = vadd.f32 0.0, %v838
        %v840 = vpop.f32.mrf.mxu0
        %841 = vmatprep.mubr.f32.mxu0 0.0
        %842 = vmatmul.mubr.f32.gmra.mxu0 %v733
        %v843 = vpop.f32.mrf.mxu0
        %v844 = vadd.f32 0.0, %v843
        %v845 = vpop.f32.mrf.mxu0
        %846 = vdwg.mxu0
        %v847 = vadd.f32 %v684, %v804
        %v848 = vadd.f32 %v685, %v809
        %v849 = vadd.f32 %v686, %v814
        %v850 = vadd.f32 %v687, %v819
        %v851 = vadd.f32 %v688, %v824
        %v852 = vadd.f32 %v689, %v829
        %v853 = vadd.f32 %v690, %v834
        %v854 = vadd.f32 %v691, %v839
        %v855 = vadd.f32 %v692, %v844
        %856 = vrot.lane.b32.xlu0 %v224, 112
        %v857 = vpop.permute.xlu0 %856
        %858 = vrot.lane.b32.xlu0 %v225, 112
        %v859 = vpop.permute.xlu0 %858
        %860 = vrot.lane.b32.xlu0 %v226, 112
        %v861 = vpop.permute.xlu0 %860
        %862 = vrot.lane.b32.xlu0 %v227, 112
        %v863 = vpop.permute.xlu0 %862
        %864 = vrot.lane.b32.xlu0 %v228, 112
        %v865 = vpop.permute.xlu0 %864
        %866 = vrot.lane.b32.xlu0 %v229, 112
        %v867 = vpop.permute.xlu0 %866
        %868 = vrot.lane.b32.xlu0 %v230, 112
        %v869 = vpop.permute.xlu0 %868
        %870 = vrot.lane.b32.xlu0 %v231, 112
        %v871 = vpop.permute.xlu0 %870
        %872 = vrot.lane.b32.xlu0 %v232, 112
        %v873 = vpop.permute.xlu0 %872
        %874 = vrot.lane.b32.xlu0 %v223, 124
        %v875 = vpop.permute.xlu0 %874
        %876 = vrot.lane.b32.xlu0 %v261, 124
        %v877 = vpop.permute.xlu0 %876
        %vm878 = vcmask 1014784
        %v879 = vsel %vm878, %v875, %v877
        %v880 = vsel %vm268, %v857, 0
        %v882 = vsel %vm268, %v859, 0
        %v884 = vsel %vm268, %v861, 0
        %v886 = vsel %vm268, %v863, 0
        %v888 = vsel %vm268, %v865, 0
        %v890 = vsel %vm268, %v867, 0
        %v892 = vsel %vm268, %v869, 0
        %v894 = vsel %vm268, %v871, 0
        %v896 = vsel %vm268, %v873, 0
        %v898 = vsel %vm287, %v879, 0
        %900 = vmatprep.subr.mxu0 0.0
        %901 = vmatpush1.msra.mxu0 0.0
        %902 = vmatprep.subr.mxu0 0.0
        %903 = vmatpush1.msra.mxu0 0.0
        %904 = vmatprep.subr.mxu0 0.0
        %905 = vmatpush1.msra.mxu0 0.0
        %906 = vmatprep.subr.mxu0 0.0
        %907 = vmatpush1.msra.mxu0 0.0
        %908 = vmatprep.subr.mxu0 0.0
        %909 = vmatpush1.msra.mxu0 0.0
        %910 = vmatprep.subr.mxu0 0.0
        %911 = vmatpush1.msra.mxu0 0.0
        %912 = vmatprep.subr.mxu0 0.0
        %913 = vmatpush1.msra.mxu0 0.0
        %914 = vmatprep.subr.mxu0 0.0
        %915 = vmatpush1.msra.mxu0 0.0
        %916 = vmatprep.subr.mxu0 0.0
        %917 = vmatpush1.msra.mxu0 0.0
        %918 = vmatprep.subr.mxu0 0.0
        %919 = vmatpush1.msra.mxu0 0.0
        %920 = vmatprep.subr.mxu0 0.0
        %921 = vmatpush1.msra.mxu0 0.0
        %922 = vmatprep.subr.mxu0 0.0
        %923 = vmatpush1.msra.mxu0 0.0
        %924 = vmatprep.subr.mxu0 0.0
        %925 = vmatpush1.msra.mxu0 0.0
        %926 = vmatprep.subr.mxu0 0.0
        %927 = vmatpush1.msra.mxu0 0.0
        %928 = vmatprep.subr.mxu0 0.0
        %929 = vmatpush1.msra.mxu0 0.0
        %930 = vmatprep.subr.mxu0 0.0
        %931 = vmatpush1.msra.mxu0 %v898
        %932 = vmatprep.subr.mxu0 0.0
        %933 = vmatpush2.msra.mxu0 0.0
        %934 = vmatprep.subr.mxu0 0.0
        %935 = vmatpush2.msra.mxu0 0.0
        %936 = vmatprep.subr.mxu0 0.0
        %937 = vmatpush2.msra.mxu0 0.0
        %938 = vmatprep.subr.mxu0 0.0
        %939 = vmatpush2.msra.mxu0 0.0
        %940 = vmatprep.subr.mxu0 0.0
        %941 = vmatpush2.msra.mxu0 0.0
        %942 = vmatprep.subr.mxu0 0.0
        %943 = vmatpush2.msra.mxu0 0.0
        %944 = vmatprep.subr.mxu0 0.0
        %945 = vmatpush2.msra.mxu0 0.0
        %946 = vmatprep.subr.mxu0 0.0
        %947 = vmatpush2.msra.mxu0 0.0
        %948 = vmatprep.subr.mxu0 0.0
        %949 = vmatpush2.msra.mxu0 0.0
        %950 = vmatprep.subr.mxu0 0.0
        %951 = vmatpush2.msra.mxu0 0.0
        %952 = vmatprep.subr.mxu0 0.0
        %953 = vmatpush2.msra.mxu0 0.0
        %954 = vmatprep.subr.mxu0 0.0
        %955 = vmatpush2.msra.mxu0 0.0
        %956 = vmatprep.subr.mxu0 0.0
        %957 = vmatpush2.msra.mxu0 0.0
        %958 = vmatprep.subr.mxu0 0.0
        %959 = vmatpush2.msra.mxu0 0.0
        %960 = vmatprep.subr.mxu0 0.0
        %961 = vmatpush2.msra.mxu0 0.0
        %962 = vmatprep.subr.mxu0 0.0
        %963 = vmatpush2.msra.mxu0 0.0
        %964 = vmatprep.mubr.f32.mxu0 0.0
        %965 = vmatmul.mubr.f32.gmra.mxu0 %v880
        %v966 = vpop.f32.mrf.mxu0
        %v967 = vadd.f32 0.0, %v966
        %v968 = vpop.f32.mrf.mxu0
        %969 = vmatprep.mubr.f32.mxu0 0.0
        %970 = vmatmul.mubr.f32.gmra.mxu0 %v882
        %v971 = vpop.f32.mrf.mxu0
        %v972 = vadd.f32 0.0, %v971
        %v973 = vpop.f32.mrf.mxu0
        %974 = vmatprep.mubr.f32.mxu0 0.0
        %975 = vmatmul.mubr.f32.gmra.mxu0 %v884
        %v976 = vpop.f32.mrf.mxu0
        %v977 = vadd.f32 0.0, %v976
        %v978 = vpop.f32.mrf.mxu0
        %979 = vmatprep.mubr.f32.mxu0 0.0
        %980 = vmatmul.mubr.f32.gmra.mxu0 %v886
        %v981 = vpop.f32.mrf.mxu0
        %v982 = vadd.f32 0.0, %v981
        %v983 = vpop.f32.mrf.mxu0
        %984 = vmatprep.mubr.f32.mxu0 0.0
        %985 = vmatmul.mubr.f32.gmra.mxu0 %v888
        %v986 = vpop.f32.mrf.mxu0
        %v987 = vadd.f32 0.0, %v986
        %v988 = vpop.f32.mrf.mxu0
        %989 = vmatprep.mubr.f32.mxu0 0.0
        %990 = vmatmul.mubr.f32.gmra.mxu0 %v890
        %v991 = vpop.f32.mrf.mxu0
        %v992 = vadd.f32 0.0, %v991
        %v993 = vpop.f32.mrf.mxu0
        %994 = vmatprep.mubr.f32.mxu0 0.0
        %995 = vmatmul.mubr.f32.gmra.mxu0 %v892
        %v996 = vpop.f32.mrf.mxu0
        %v997 = vadd.f32 0.0, %v996
        %v998 = vpop.f32.mrf.mxu0
        %999 = vmatprep.mubr.f32.mxu0 0.0
        %1000 = vmatmul.mubr.f32.gmra.mxu0 %v894
        %v1001 = vpop.f32.mrf.mxu0
        %v1002 = vadd.f32 0.0, %v1001
        %v1003 = vpop.f32.mrf.mxu0
        %1004 = vmatprep.mubr.f32.mxu0 0.0
        %1005 = vmatmul.mubr.f32.gmra.mxu0 %v896
        %v1006 = vpop.f32.mrf.mxu0
        %v1007 = vadd.f32 0.0, %v1006
        %v1008 = vpop.f32.mrf.mxu0
        %1009 = vdwg.mxu0
        %v1010 = vadd.f32 %v847, %v967
        %v1011 = vadd.f32 %v848, %v972
        %v1012 = vadd.f32 %v849, %v977
        %v1013 = vadd.f32 %v850, %v982
        %v1014 = vadd.f32 %v851, %v987
        %v1015 = vadd.f32 %v852, %v992
        %v1016 = vadd.f32 %v853, %v997
        %v1017 = vadd.f32 %v854, %v1002
        %v1018 = vadd.f32 %v855, %v1007
        %1019 = vrot.lane.b32.xlu0 %v224, 108
        %v1020 = vpop.permute.xlu0 %1019
        %1021 = vrot.lane.b32.xlu0 %v225, 108
        %v1022 = vpop.permute.xlu0 %1021
        %1023 = vrot.lane.b32.xlu0 %v226, 108
        %v1024 = vpop.permute.xlu0 %1023
        %1025 = vrot.lane.b32.xlu0 %v227, 108
        %v1026 = vpop.permute.xlu0 %1025
        %1027 = vrot.lane.b32.xlu0 %v228, 108
        %v1028 = vpop.permute.xlu0 %1027
        %1029 = vrot.lane.b32.xlu0 %v229, 108
        %v1030 = vpop.permute.xlu0 %1029
        %1031 = vrot.lane.b32.xlu0 %v230, 108
        %v1032 = vpop.permute.xlu0 %1031
        %1033 = vrot.lane.b32.xlu0 %v231, 108
        %v1034 = vpop.permute.xlu0 %1033
        %1035 = vrot.lane.b32.xlu0 %v232, 108
        %v1036 = vpop.permute.xlu0 %1035
        %1037 = vrot.lane.b32.xlu0 %v223, 123
        %v1038 = vpop.permute.xlu0 %1037
        %1039 = vrot.lane.b32.xlu0 %v261, 123
        %v1040 = vpop.permute.xlu0 %1039
        %vm1041 = vcmask 1006592
        %v1042 = vsel %vm1041, %v1038, %v1040
        %v1043 = vsel %vm268, %v1020, 0
        %v1045 = vsel %vm268, %v1022, 0
        %v1047 = vsel %vm268, %v1024, 0
        %v1049 = vsel %vm268, %v1026, 0
        %v1051 = vsel %vm268, %v1028, 0
        %v1053 = vsel %vm268, %v1030, 0
        %v1055 = vsel %vm268, %v1032, 0
        %v1057 = vsel %vm268, %v1034, 0
        %v1059 = vsel %vm268, %v1036, 0
        %v1061 = vsel %vm287, %v1042, 0
        %1063 = vmatprep.subr.mxu0 0.0
        %1064 = vmatpush1.msra.mxu0 0.0
        %1065 = vmatprep.subr.mxu0 0.0
        %1066 = vmatpush1.msra.mxu0 0.0
        %1067 = vmatprep.subr.mxu0 0.0
        %1068 = vmatpush1.msra.mxu0 0.0
        %1069 = vmatprep.subr.mxu0 0.0
        %1070 = vmatpush1.msra.mxu0 0.0
        %1071 = vmatprep.subr.mxu0 0.0
        %1072 = vmatpush1.msra.mxu0 0.0
        %1073 = vmatprep.subr.mxu0 0.0
        %1074 = vmatpush1.msra.mxu0 0.0
        %1075 = vmatprep.subr.mxu0 0.0
        %1076 = vmatpush1.msra.mxu0 0.0
        %1077 = vmatprep.subr.mxu0 0.0
        %1078 = vmatpush1.msra.mxu0 0.0
        %1079 = vmatprep.subr.mxu0 0.0
        %1080 = vmatpush1.msra.mxu0 0.0
        %1081 = vmatprep.subr.mxu0 0.0
        %1082 = vmatpush1.msra.mxu0 0.0
        %1083 = vmatprep.subr.mxu0 0.0
        %1084 = vmatpush1.msra.mxu0 0.0
        %1085 = vmatprep.subr.mxu0 0.0
        %1086 = vmatpush1.msra.mxu0 0.0
        %1087 = vmatprep.subr.mxu0 0.0
        %1088 = vmatpush1.msra.mxu0 0.0
        %1089 = vmatprep.subr.mxu0 0.0
        %1090 = vmatpush1.msra.mxu0 0.0
        %1091 = vmatprep.subr.mxu0 0.0
        %1092 = vmatpush1.msra.mxu0 0.0
        %1093 = vmatprep.subr.mxu0 0.0
        %1094 = vmatpush1.msra.mxu0 %v1061
        %1095 = vmatprep.subr.mxu0 0.0
        %1096 = vmatpush2.msra.mxu0 0.0
        %1097 = vmatprep.subr.mxu0 0.0
        %1098 = vmatpush2.msra.mxu0 0.0
        %1099 = vmatprep.subr.mxu0 0.0
        %1100 = vmatpush2.msra.mxu0 0.0
        %1101 = vmatprep.subr.mxu0 0.0
        %1102 = vmatpush2.msra.mxu0 0.0
        %1103 = vmatprep.subr.mxu0 0.0
        %1104 = vmatpush2.msra.mxu0 0.0
        %1105 = vmatprep.subr.mxu0 0.0
        %1106 = vmatpush2.msra.mxu0 0.0
        %1107 = vmatprep.subr.mxu0 0.0
        %1108 = vmatpush2.msra.mxu0 0.0
        %1109 = vmatprep.subr.mxu0 0.0
        %1110 = vmatpush2.msra.mxu0 0.0
        %1111 = vmatprep.subr.mxu0 0.0
        %1112 = vmatpush2.msra.mxu0 0.0
        %1113 = vmatprep.subr.mxu0 0.0
        %1114 = vmatpush2.msra.mxu0 0.0
        %1115 = vmatprep.subr.mxu0 0.0
        %1116 = vmatpush2.msra.mxu0 0.0
        %1117 = vmatprep.subr.mxu0 0.0
        %1118 = vmatpush2.msra.mxu0 0.0
        %1119 = vmatprep.subr.mxu0 0.0
        %1120 = vmatpush2.msra.mxu0 0.0
        %1121 = vmatprep.subr.mxu0 0.0
        %1122 = vmatpush2.msra.mxu0 0.0
        %1123 = vmatprep.subr.mxu0 0.0
        %1124 = vmatpush2.msra.mxu0 0.0
        %1125 = vmatprep.subr.mxu0 0.0
        %1126 = vmatpush2.msra.mxu0 0.0
        %1127 = vmatprep.mubr.f32.mxu0 0.0
        %1128 = vmatmul.mubr.f32.gmra.mxu0 %v1043
        %v1129 = vpop.f32.mrf.mxu0
        %v1130 = vadd.f32 0.0, %v1129
        %v1131 = vpop.f32.mrf.mxu0
        %1132 = vmatprep.mubr.f32.mxu0 0.0
        %1133 = vmatmul.mubr.f32.gmra.mxu0 %v1045
        %v1134 = vpop.f32.mrf.mxu0
        %v1135 = vadd.f32 0.0, %v1134
        %v1136 = vpop.f32.mrf.mxu0
        %1137 = vmatprep.mubr.f32.mxu0 0.0
        %1138 = vmatmul.mubr.f32.gmra.mxu0 %v1047
        %v1139 = vpop.f32.mrf.mxu0
        %v1140 = vadd.f32 0.0, %v1139
        %v1141 = vpop.f32.mrf.mxu0
        %1142 = vmatprep.mubr.f32.mxu0 0.0
        %1143 = vmatmul.mubr.f32.gmra.mxu0 %v1049
        %v1144 = vpop.f32.mrf.mxu0
        %v1145 = vadd.f32 0.0, %v1144
        %v1146 = vpop.f32.mrf.mxu0
        %1147 = vmatprep.mubr.f32.mxu0 0.0
        %1148 = vmatmul.mubr.f32.gmra.mxu0 %v1051
        %v1149 = vpop.f32.mrf.mxu0
        %v1150 = vadd.f32 0.0, %v1149
        %v1151 = vpop.f32.mrf.mxu0
        %1152 = vmatprep.mubr.f32.mxu0 0.0
        %1153 = vmatmul.mubr.f32.gmra.mxu0 %v1053
        %v1154 = vpop.f32.mrf.mxu0
        %v1155 = vadd.f32 0.0, %v1154
        %v1156 = vpop.f32.mrf.mxu0
        %1157 = vmatprep.mubr.f32.mxu0 0.0
        %1158 = vmatmul.mubr.f32.gmra.mxu0 %v1055
        %v1159 = vpop.f32.mrf.mxu0
        %v1160 = vadd.f32 0.0, %v1159
        %v1161 = vpop.f32.mrf.mxu0
        %1162 = vmatprep.mubr.f32.mxu0 0.0
        %1163 = vmatmul.mubr.f32.gmra.mxu0 %v1057
        %v1164 = vpop.f32.mrf.mxu0
        %v1165 = vadd.f32 0.0, %v1164
        %v1166 = vpop.f32.mrf.mxu0
        %1167 = vmatprep.mubr.f32.mxu0 0.0
        %1168 = vmatmul.mubr.f32.gmra.mxu0 %v1059
        %v1169 = vpop.f32.mrf.mxu0
        %v1170 = vadd.f32 0.0, %v1169
        %v1171 = vpop.f32.mrf.mxu0
        %1172 = vdwg.mxu0
        %v1173 = vadd.f32 %v1010, %v1130
        %v1174 = vadd.f32 %v1011, %v1135
        %v1175 = vadd.f32 %v1012, %v1140
        %v1176 = vadd.f32 %v1013, %v1145
        %v1177 = vadd.f32 %v1014, %v1150
        %v1178 = vadd.f32 %v1015, %v1155
        %v1179 = vadd.f32 %v1016, %v1160
        %v1180 = vadd.f32 %v1017, %v1165
        %v1181 = vadd.f32 %v1018, %v1170
        %1182 = vrot.lane.b32.xlu0 %v224, 104
        %v1183 = vpop.permute.xlu0 %1182
        %1184 = vrot.lane.b32.xlu0 %v225, 104
        %v1185 = vpop.permute.xlu0 %1184
        %1186 = vrot.lane.b32.xlu0 %v226, 104
        %v1187 = vpop.permute.xlu0 %1186
        %1188 = vrot.lane.b32.xlu0 %v227, 104
        %v1189 = vpop.permute.xlu0 %1188
        %1190 = vrot.lane.b32.xlu0 %v228, 104
        %v1191 = vpop.permute.xlu0 %1190
        %1192 = vrot.lane.b32.xlu0 %v229, 104
        %v1193 = vpop.permute.xlu0 %1192
        %1194 = vrot.lane.b32.xlu0 %v230, 104
        %v1195 = vpop.permute.xlu0 %1194
        %1196 = vrot.lane.b32.xlu0 %v231, 104
        %v1197 = vpop.permute.xlu0 %1196
        %1198 = vrot.lane.b32.xlu0 %v232, 104
        %v1199 = vpop.permute.xlu0 %1198
        %1200 = vrot.lane.b32.xlu0 %v223, 122
        %v1201 = vpop.permute.xlu0 %1200
        %1202 = vrot.lane.b32.xlu0 %v261, 122
        %v1203 = vpop.permute.xlu0 %1202
        %vm1204 = vcmask 998400
        %v1205 = vsel %vm1204, %v1201, %v1203
        %v1206 = vsel %vm268, %v1183, 0
        %v1208 = vsel %vm268, %v1185, 0
        %v1210 = vsel %vm268, %v1187, 0
        %v1212 = vsel %vm268, %v1189, 0
        %v1214 = vsel %vm268, %v1191, 0
        %v1216 = vsel %vm268, %v1193, 0
        %v1218 = vsel %vm268, %v1195, 0
        %v1220 = vsel %vm268, %v1197, 0
        %v1222 = vsel %vm268, %v1199, 0
        %v1224 = vsel %vm287, %v1205, 0
        %1226 = vmatprep.subr.mxu0 0.0
        %1227 = vmatpush1.msra.mxu0 0.0
        %1228 = vmatprep.subr.mxu0 0.0
        %1229 = vmatpush1.msra.mxu0 0.0
        %1230 = vmatprep.subr.mxu0 0.0
        %1231 = vmatpush1.msra.mxu0 0.0
        %1232 = vmatprep.subr.mxu0 0.0
        %1233 = vmatpush1.msra.mxu0 0.0
        %1234 = vmatprep.subr.mxu0 0.0
        %1235 = vmatpush1.msra.mxu0 0.0
        %1236 = vmatprep.subr.mxu0 0.0
        %1237 = vmatpush1.msra.mxu0 0.0
        %1238 = vmatprep.subr.mxu0 0.0
        %1239 = vmatpush1.msra.mxu0 0.0
        %1240 = vmatprep.subr.mxu0 0.0
        %1241 = vmatpush1.msra.mxu0 0.0
        %1242 = vmatprep.subr.mxu0 0.0
        %1243 = vmatpush1.msra.mxu0 0.0
        %1244 = vmatprep.subr.mxu0 0.0
        %1245 = vmatpush1.msra.mxu0 0.0
        %1246 = vmatprep.subr.mxu0 0.0
        %1247 = vmatpush1.msra.mxu0 0.0
        %1248 = vmatprep.subr.mxu0 0.0
        %1249 = vmatpush1.msra.mxu0 0.0
        %1250 = vmatprep.subr.mxu0 0.0
        %1251 = vmatpush1.msra.mxu0 0.0
        %1252 = vmatprep.subr.mxu0 0.0
        %1253 = vmatpush1.msra.mxu0 0.0
        %1254 = vmatprep.subr.mxu0 0.0
        %1255 = vmatpush1.msra.mxu0 0.0
        %1256 = vmatprep.subr.mxu0 0.0
        %1257 = vmatpush1.msra.mxu0 %v1224
        %1258 = vmatprep.subr.mxu0 0.0
        %1259 = vmatpush2.msra.mxu0 0.0
        %1260 = vmatprep.subr.mxu0 0.0
        %1261 = vmatpush2.msra.mxu0 0.0
        %1262 = vmatprep.subr.mxu0 0.0
        %1263 = vmatpush2.msra.mxu0 0.0
        %1264 = vmatprep.subr.mxu0 0.0
        %1265 = vmatpush2.msra.mxu0 0.0
        %1266 = vmatprep.subr.mxu0 0.0
        %1267 = vmatpush2.msra.mxu0 0.0
        %1268 = vmatprep.subr.mxu0 0.0
        %1269 = vmatpush2.msra.mxu0 0.0
        %1270 = vmatprep.subr.mxu0 0.0
        %1271 = vmatpush2.msra.mxu0 0.0
        %1272 = vmatprep.subr.mxu0 0.0
        %1273 = vmatpush2.msra.mxu0 0.0
        %1274 = vmatprep.subr.mxu0 0.0
        %1275 = vmatpush2.msra.mxu0 0.0
        %1276 = vmatprep.subr.mxu0 0.0
        %1277 = vmatpush2.msra.mxu0 0.0
        %1278 = vmatprep.subr.mxu0 0.0
        %1279 = vmatpush2.msra.mxu0 0.0
        %1280 = vmatprep.subr.mxu0 0.0
        %1281 = vmatpush2.msra.mxu0 0.0
        %1282 = vmatprep.subr.mxu0 0.0
        %1283 = vmatpush2.msra.mxu0 0.0
        %1284 = vmatprep.subr.mxu0 0.0
        %1285 = vmatpush2.msra.mxu0 0.0
        %1286 = vmatprep.subr.mxu0 0.0
        %1287 = vmatpush2.msra.mxu0 0.0
        %1288 = vmatprep.subr.mxu0 0.0
        %1289 = vmatpush2.msra.mxu0 0.0
        %1290 = vmatprep.mubr.f32.mxu0 0.0
        %1291 = vmatmul.mubr.f32.gmra.mxu0 %v1206
        %v1292 = vpop.f32.mrf.mxu0
        %v1293 = vadd.f32 0.0, %v1292
        %v1294 = vpop.f32.mrf.mxu0
        %1295 = vmatprep.mubr.f32.mxu0 0.0
        %1296 = vmatmul.mubr.f32.gmra.mxu0 %v1208
        %v1297 = vpop.f32.mrf.mxu0
        %v1298 = vadd.f32 0.0, %v1297
        %v1299 = vpop.f32.mrf.mxu0
        %1300 = vmatprep.mubr.f32.mxu0 0.0
        %1301 = vmatmul.mubr.f32.gmra.mxu0 %v1210
        %v1302 = vpop.f32.mrf.mxu0
        %v1303 = vadd.f32 0.0, %v1302
        %v1304 = vpop.f32.mrf.mxu0
        %1305 = vmatprep.mubr.f32.mxu0 0.0
        %1306 = vmatmul.mubr.f32.gmra.mxu0 %v1212
        %v1307 = vpop.f32.mrf.mxu0
        %v1308 = vadd.f32 0.0, %v1307
        %v1309 = vpop.f32.mrf.mxu0
        %1310 = vmatprep.mubr.f32.mxu0 0.0
        %1311 = vmatmul.mubr.f32.gmra.mxu0 %v1214
        %v1312 = vpop.f32.mrf.mxu0
        %v1313 = vadd.f32 0.0, %v1312
        %v1314 = vpop.f32.mrf.mxu0
        %1315 = vmatprep.mubr.f32.mxu0 0.0
        %1316 = vmatmul.mubr.f32.gmra.mxu0 %v1216
        %v1317 = vpop.f32.mrf.mxu0
        %v1318 = vadd.f32 0.0, %v1317
        %v1319 = vpop.f32.mrf.mxu0
        %1320 = vmatprep.mubr.f32.mxu0 0.0
        %1321 = vmatmul.mubr.f32.gmra.mxu0 %v1218
        %v1322 = vpop.f32.mrf.mxu0
        %v1323 = vadd.f32 0.0, %v1322
        %v1324 = vpop.f32.mrf.mxu0
        %1325 = vmatprep.mubr.f32.mxu0 0.0
        %1326 = vmatmul.mubr.f32.gmra.mxu0 %v1220
        %v1327 = vpop.f32.mrf.mxu0
        %v1328 = vadd.f32 0.0, %v1327
        %v1329 = vpop.f32.mrf.mxu0
        %1330 = vmatprep.mubr.f32.mxu0 0.0
        %1331 = vmatmul.mubr.f32.gmra.mxu0 %v1222
        %v1332 = vpop.f32.mrf.mxu0
        %v1333 = vadd.f32 0.0, %v1332
        %v1334 = vpop.f32.mrf.mxu0
        %1335 = vdwg.mxu0
        %v1336 = vadd.f32 %v1173, %v1293
        %v1337 = vadd.f32 %v1174, %v1298
        %v1338 = vadd.f32 %v1175, %v1303
        %v1339 = vadd.f32 %v1176, %v1308
        %v1340 = vadd.f32 %v1177, %v1313
        %v1341 = vadd.f32 %v1178, %v1318
        %v1342 = vadd.f32 %v1179, %v1323
        %v1343 = vadd.f32 %v1180, %v1328
        %v1344 = vadd.f32 %v1181, %v1333
        %1345 = vrot.lane.b32.xlu0 %v224, 100
        %v1346 = vpop.permute.xlu0 %1345
        %1347 = vrot.lane.b32.xlu0 %v225, 100
        %v1348 = vpop.permute.xlu0 %1347
        %1349 = vrot.lane.b32.xlu0 %v226, 100
        %v1350 = vpop.permute.xlu0 %1349
        %1351 = vrot.lane.b32.xlu0 %v227, 100
        %v1352 = vpop.permute.xlu0 %1351
        %1353 = vrot.lane.b32.xlu0 %v228, 100
        %v1354 = vpop.permute.xlu0 %1353
        %1355 = vrot.lane.b32.xlu0 %v229, 100
        %v1356 = vpop.permute.xlu0 %1355
        %1357 = vrot.lane.b32.xlu0 %v230, 100
        %v1358 = vpop.permute.xlu0 %1357
        %1359 = vrot.lane.b32.xlu0 %v231, 100
        %v1360 = vpop.permute.xlu0 %1359
        %1361 = vrot.lane.b32.xlu0 %v232, 100
        %v1362 = vpop.permute.xlu0 %1361
        %1363 = vrot.lane.b32.xlu0 %v223, 121
        %v1364 = vpop.permute.xlu0 %1363
        %1365 = vrot.lane.b32.xlu0 %v261, 121
        %v1366 = vpop.permute.xlu0 %1365
        %vm1367 = vcmask 990208
        %v1368 = vsel %vm1367, %v1364, %v1366
        %v1369 = vsel %vm268, %v1346, 0
        %v1371 = vsel %vm268, %v1348, 0
        %v1373 = vsel %vm268, %v1350, 0
        %v1375 = vsel %vm268, %v1352, 0
        %v1377 = vsel %vm268, %v1354, 0
        %v1379 = vsel %vm268, %v1356, 0
        %v1381 = vsel %vm268, %v1358, 0
        %v1383 = vsel %vm268, %v1360, 0
        %v1385 = vsel %vm268, %v1362, 0
        %v1387 = vsel %vm287, %v1368, 0
        %1389 = vmatprep.subr.mxu0 0.0
        %1390 = vmatpush1.msra.mxu0 0.0
        %1391 = vmatprep.subr.mxu0 0.0
        %1392 = vmatpush1.msra.mxu0 0.0
        %1393 = vmatprep.subr.mxu0 0.0
        %1394 = vmatpush1.msra.mxu0 0.0
        %1395 = vmatprep.subr.mxu0 0.0
        %1396 = vmatpush1.msra.mxu0 0.0
        %1397 = vmatprep.subr.mxu0 0.0
        %1398 = vmatpush1.msra.mxu0 0.0
        %1399 = vmatprep.subr.mxu0 0.0
        %1400 = vmatpush1.msra.mxu0 0.0
        %1401 = vmatprep.subr.mxu0 0.0
        %1402 = vmatpush1.msra.mxu0 0.0
        %1403 = vmatprep.subr.mxu0 0.0
        %1404 = vmatpush1.msra.mxu0 0.0
        %1405 = vmatprep.subr.mxu0 0.0
        %1406 = vmatpush1.msra.mxu0 0.0
        %1407 = vmatprep.subr.mxu0 0.0
        %1408 = vmatpush1.msra.mxu0 0.0
        %1409 = vmatprep.subr.mxu0 0.0
        %1410 = vmatpush1.msra.mxu0 0.0
        %1411 = vmatprep.subr.mxu0 0.0
        %1412 = vmatpush1.msra.mxu0 0.0
        %1413 = vmatprep.subr.mxu0 0.0
        %1414 = vmatpush1.msra.mxu0 0.0
        %1415 = vmatprep.subr.mxu0 0.0
        %1416 = vmatpush1.msra.mxu0 0.0
        %1417 = vmatprep.subr.mxu0 0.0
        %1418 = vmatpush1.msra.mxu0 0.0
        %1419 = vmatprep.subr.mxu0 0.0
        %1420 = vmatpush1.msra.mxu0 %v1387
        %1421 = vmatprep.subr.mxu0 0.0
        %1422 = vmatpush2.msra.mxu0 0.0
        %1423 = vmatprep.subr.mxu0 0.0
        %1424 = vmatpush2.msra.mxu0 0.0
        %1425 = vmatprep.subr.mxu0 0.0
        %1426 = vmatpush2.msra.mxu0 0.0
        %1427 = vmatprep.subr.mxu0 0.0
        %1428 = vmatpush2.msra.mxu0 0.0
        %1429 = vmatprep.subr.mxu0 0.0
        %1430 = vmatpush2.msra.mxu0 0.0
        %1431 = vmatprep.subr.mxu0 0.0
        %1432 = vmatpush2.msra.mxu0 0.0
        %1433 = vmatprep.subr.mxu0 0.0
        %1434 = vmatpush2.msra.mxu0 0.0
        %1435 = vmatprep.subr.mxu0 0.0
        %1436 = vmatpush2.msra.mxu0 0.0
        %1437 = vmatprep.subr.mxu0 0.0
        %1438 = vmatpush2.msra.mxu0 0.0
        %1439 = vmatprep.subr.mxu0 0.0
        %1440 = vmatpush2.msra.mxu0 0.0
        %1441 = vmatprep.subr.mxu0 0.0
        %1442 = vmatpush2.msra.mxu0 0.0
        %1443 = vmatprep.subr.mxu0 0.0
        %1444 = vmatpush2.msra.mxu0 0.0
        %1445 = vmatprep.subr.mxu0 0.0
        %1446 = vmatpush2.msra.mxu0 0.0
        %1447 = vmatprep.subr.mxu0 0.0
        %1448 = vmatpush2.msra.mxu0 0.0
        %1449 = vmatprep.subr.mxu0 0.0
        %1450 = vmatpush2.msra.mxu0 0.0
        %1451 = vmatprep.subr.mxu0 0.0
        %1452 = vmatpush2.msra.mxu0 0.0
        %1453 = vmatprep.mubr.f32.mxu0 0.0
        %1454 = vmatmul.mubr.f32.gmra.mxu0 %v1369
        %v1455 = vpop.f32.mrf.mxu0
        %v1456 = vadd.f32 0.0, %v1455
        %v1457 = vpop.f32.mrf.mxu0
        %1458 = vmatprep.mubr.f32.mxu0 0.0
        %1459 = vmatmul.mubr.f32.gmra.mxu0 %v1371
        %v1460 = vpop.f32.mrf.mxu0
        %v1461 = vadd.f32 0.0, %v1460
        %v1462 = vpop.f32.mrf.mxu0
        %1463 = vmatprep.mubr.f32.mxu0 0.0
        %1464 = vmatmul.mubr.f32.gmra.mxu0 %v1373
        %v1465 = vpop.f32.mrf.mxu0
        %v1466 = vadd.f32 0.0, %v1465
        %v1467 = vpop.f32.mrf.mxu0
        %1468 = vmatprep.mubr.f32.mxu0 0.0
        %1469 = vmatmul.mubr.f32.gmra.mxu0 %v1375
        %v1470 = vpop.f32.mrf.mxu0
        %v1471 = vadd.f32 0.0, %v1470
        %v1472 = vpop.f32.mrf.mxu0
        %1473 = vmatprep.mubr.f32.mxu0 0.0
        %1474 = vmatmul.mubr.f32.gmra.mxu0 %v1377
        %v1475 = vpop.f32.mrf.mxu0
        %v1476 = vadd.f32 0.0, %v1475
        %v1477 = vpop.f32.mrf.mxu0
        %1478 = vmatprep.mubr.f32.mxu0 0.0
        %1479 = vmatmul.mubr.f32.gmra.mxu0 %v1379
        %v1480 = vpop.f32.mrf.mxu0
        %v1481 = vadd.f32 0.0, %v1480
        %v1482 = vpop.f32.mrf.mxu0
        %1483 = vmatprep.mubr.f32.mxu0 0.0
        %1484 = vmatmul.mubr.f32.gmra.mxu0 %v1381
        %v1485 = vpop.f32.mrf.mxu0
        %v1486 = vadd.f32 0.0, %v1485
        %v1487 = vpop.f32.mrf.mxu0
        %1488 = vmatprep.mubr.f32.mxu0 0.0
        %1489 = vmatmul.mubr.f32.gmra.mxu0 %v1383
        %v1490 = vpop.f32.mrf.mxu0
        %v1491 = vadd.f32 0.0, %v1490
        %v1492 = vpop.f32.mrf.mxu0
        %1493 = vmatprep.mubr.f32.mxu0 0.0
        %1494 = vmatmul.mubr.f32.gmra.mxu0 %v1385
        %v1495 = vpop.f32.mrf.mxu0
        %v1496 = vadd.f32 0.0, %v1495
        %v1497 = vpop.f32.mrf.mxu0
        %1498 = vdwg.mxu0
        %v1499 = vadd.f32 %v1336, %v1456
        %v1500 = vadd.f32 %v1337, %v1461
        %v1501 = vadd.f32 %v1338, %v1466
        %v1502 = vadd.f32 %v1339, %v1471
        %v1503 = vadd.f32 %v1340, %v1476
        %v1504 = vadd.f32 %v1341, %v1481
        %v1505 = vadd.f32 %v1342, %v1486
        %v1506 = vadd.f32 %v1343, %v1491
        %v1507 = vadd.f32 %v1344, %v1496
        %1508 = vrot.lane.b32.xlu0 %v224, 96
        %v1509 = vpop.permute.xlu0 %1508
        %1510 = vrot.lane.b32.xlu0 %v225, 96
        %v1511 = vpop.permute.xlu0 %1510
        %1512 = vrot.lane.b32.xlu0 %v226, 96
        %v1513 = vpop.permute.xlu0 %1512
        %1514 = vrot.lane.b32.xlu0 %v227, 96
        %v1515 = vpop.permute.xlu0 %1514
        %1516 = vrot.lane.b32.xlu0 %v228, 96
        %v1517 = vpop.permute.xlu0 %1516
        %1518 = vrot.lane.b32.xlu0 %v229, 96
        %v1519 = vpop.permute.xlu0 %1518
        %1520 = vrot.lane.b32.xlu0 %v230, 96
        %v1521 = vpop.permute.xlu0 %1520
        %1522 = vrot.lane.b32.xlu0 %v231, 96
        %v1523 = vpop.permute.xlu0 %1522
        %1524 = vrot.lane.b32.xlu0 %v232, 96
        %v1525 = vpop.permute.xlu0 %1524
        %1526 = vrot.lane.b32.xlu0 %v223, 120
        %v1527 = vpop.permute.xlu0 %1526
        %1528 = vrot.lane.b32.xlu0 %v261, 120
        %v1529 = vpop.permute.xlu0 %1528
        %vm1530 = vcmask 982016
        %v1531 = vsel %vm1530, %v1527, %v1529
        %v1532 = vsel %vm268, %v1509, 0
        %v1534 = vsel %vm268, %v1511, 0
        %v1536 = vsel %vm268, %v1513, 0
        %v1538 = vsel %vm268, %v1515, 0
        %v1540 = vsel %vm268, %v1517, 0
        %v1542 = vsel %vm268, %v1519, 0
        %v1544 = vsel %vm268, %v1521, 0
        %v1546 = vsel %vm268, %v1523, 0
        %v1548 = vsel %vm268, %v1525, 0
        %v1550 = vsel %vm287, %v1531, 0
        %1552 = vmatprep.subr.mxu0 0.0
        %1553 = vmatpush1.msra.mxu0 0.0
        %1554 = vmatprep.subr.mxu0 0.0
        %1555 = vmatpush1.msra.mxu0 0.0
        %1556 = vmatprep.subr.mxu0 0.0
        %1557 = vmatpush1.msra.mxu0 0.0
        %1558 = vmatprep.subr.mxu0 0.0
        %1559 = vmatpush1.msra.mxu0 0.0
        %1560 = vmatprep.subr.mxu0 0.0
        %1561 = vmatpush1.msra.mxu0 0.0
        %1562 = vmatprep.subr.mxu0 0.0
        %1563 = vmatpush1.msra.mxu0 0.0
        %1564 = vmatprep.subr.mxu0 0.0
        %1565 = vmatpush1.msra.mxu0 0.0
        %1566 = vmatprep.subr.mxu0 0.0
        %1567 = vmatpush1.msra.mxu0 0.0
        %1568 = vmatprep.subr.mxu0 0.0
        %1569 = vmatpush1.msra.mxu0 0.0
        %1570 = vmatprep.subr.mxu0 0.0
        %1571 = vmatpush1.msra.mxu0 0.0
        %1572 = vmatprep.subr.mxu0 0.0
        %1573 = vmatpush1.msra.mxu0 0.0
        %1574 = vmatprep.subr.mxu0 0.0
        %1575 = vmatpush1.msra.mxu0 0.0
        %1576 = vmatprep.subr.mxu0 0.0
        %1577 = vmatpush1.msra.mxu0 0.0
        %1578 = vmatprep.subr.mxu0 0.0
        %1579 = vmatpush1.msra.mxu0 0.0
        %1580 = vmatprep.subr.mxu0 0.0
        %1581 = vmatpush1.msra.mxu0 0.0
        %1582 = vmatprep.subr.mxu0 0.0
        %1583 = vmatpush1.msra.mxu0 %v1550
        %1584 = vmatprep.subr.mxu0 0.0
        %1585 = vmatpush2.msra.mxu0 0.0
        %1586 = vmatprep.subr.mxu0 0.0
        %1587 = vmatpush2.msra.mxu0 0.0
        %1588 = vmatprep.subr.mxu0 0.0
        %1589 = vmatpush2.msra.mxu0 0.0
        %1590 = vmatprep.subr.mxu0 0.0
        %1591 = vmatpush2.msra.mxu0 0.0
        %1592 = vmatprep.subr.mxu0 0.0
        %1593 = vmatpush2.msra.mxu0 0.0
        %1594 = vmatprep.subr.mxu0 0.0
        %1595 = vmatpush2.msra.mxu0 0.0
        %1596 = vmatprep.subr.mxu0 0.0
        %1597 = vmatpush2.msra.mxu0 0.0
        %1598 = vmatprep.subr.mxu0 0.0
        %1599 = vmatpush2.msra.mxu0 0.0
        %1600 = vmatprep.subr.mxu0 0.0
        %1601 = vmatpush2.msra.mxu0 0.0
        %1602 = vmatprep.subr.mxu0 0.0
        %1603 = vmatpush2.msra.mxu0 0.0
        %1604 = vmatprep.subr.mxu0 0.0
        %1605 = vmatpush2.msra.mxu0 0.0
        %1606 = vmatprep.subr.mxu0 0.0
        %1607 = vmatpush2.msra.mxu0 0.0
        %1608 = vmatprep.subr.mxu0 0.0
        %1609 = vmatpush2.msra.mxu0 0.0
        %1610 = vmatprep.subr.mxu0 0.0
        %1611 = vmatpush2.msra.mxu0 0.0
        %1612 = vmatprep.subr.mxu0 0.0
        %1613 = vmatpush2.msra.mxu0 0.0
        %1614 = vmatprep.subr.mxu0 0.0
        %1615 = vmatpush2.msra.mxu0 0.0
        %1616 = vmatprep.mubr.f32.mxu0 0.0
        %1617 = vmatmul.mubr.f32.gmra.mxu0 %v1532
        %v1618 = vpop.f32.mrf.mxu0
        %v1619 = vadd.f32 0.0, %v1618
        %v1620 = vpop.f32.mrf.mxu0
        %1621 = vmatprep.mubr.f32.mxu0 0.0
        %1622 = vmatmul.mubr.f32.gmra.mxu0 %v1534
        %v1623 = vpop.f32.mrf.mxu0
        %v1624 = vadd.f32 0.0, %v1623
        %v1625 = vpop.f32.mrf.mxu0
        %1626 = vmatprep.mubr.f32.mxu0 0.0
        %1627 = vmatmul.mubr.f32.gmra.mxu0 %v1536
        %v1628 = vpop.f32.mrf.mxu0
        %v1629 = vadd.f32 0.0, %v1628
        %v1630 = vpop.f32.mrf.mxu0
        %1631 = vmatprep.mubr.f32.mxu0 0.0
        %1632 = vmatmul.mubr.f32.gmra.mxu0 %v1538
        %v1633 = vpop.f32.mrf.mxu0
        %v1634 = vadd.f32 0.0, %v1633
        %v1635 = vpop.f32.mrf.mxu0
        %1636 = vmatprep.mubr.f32.mxu0 0.0
        %1637 = vmatmul.mubr.f32.gmra.mxu0 %v1540
        %v1638 = vpop.f32.mrf.mxu0
        %v1639 = vadd.f32 0.0, %v1638
        %v1640 = vpop.f32.mrf.mxu0
        %1641 = vmatprep.mubr.f32.mxu0 0.0
        %1642 = vmatmul.mubr.f32.gmra.mxu0 %v1542
        %v1643 = vpop.f32.mrf.mxu0
        %v1644 = vadd.f32 0.0, %v1643
        %v1645 = vpop.f32.mrf.mxu0
        %1646 = vmatprep.mubr.f32.mxu0 0.0
        %1647 = vmatmul.mubr.f32.gmra.mxu0 %v1544
        %v1648 = vpop.f32.mrf.mxu0
        %v1649 = vadd.f32 0.0, %v1648
        %v1650 = vpop.f32.mrf.mxu0
        %1651 = vmatprep.mubr.f32.mxu0 0.0
        %1652 = vmatmul.mubr.f32.gmra.mxu0 %v1546
        %v1653 = vpop.f32.mrf.mxu0
        %v1654 = vadd.f32 0.0, %v1653
        %v1655 = vpop.f32.mrf.mxu0
        %1656 = vmatprep.mubr.f32.mxu0 0.0
        %1657 = vmatmul.mubr.f32.gmra.mxu0 %v1548
        %v1658 = vpop.f32.mrf.mxu0
        %v1659 = vadd.f32 0.0, %v1658
        %v1660 = vpop.f32.mrf.mxu0
        %1661 = vdwg.mxu0
        %v1662 = vadd.f32 %v1499, %v1619
        %v1663 = vadd.f32 %v1500, %v1624
        %v1664 = vadd.f32 %v1501, %v1629
        %v1665 = vadd.f32 %v1502, %v1634
        %v1666 = vadd.f32 %v1503, %v1639
        %v1667 = vadd.f32 %v1504, %v1644
        %v1668 = vadd.f32 %v1505, %v1649
        %v1669 = vadd.f32 %v1506, %v1654
        %v1670 = vadd.f32 %v1507, %v1659
        %1671 = vrot.lane.b32.xlu0 %v224, 92
        %v1672 = vpop.permute.xlu0 %1671
        %1673 = vrot.lane.b32.xlu0 %v225, 92
        %v1674 = vpop.permute.xlu0 %1673
        %1675 = vrot.lane.b32.xlu0 %v226, 92
        %v1676 = vpop.permute.xlu0 %1675
        %1677 = vrot.lane.b32.xlu0 %v227, 92
        %v1678 = vpop.permute.xlu0 %1677
        %1679 = vrot.lane.b32.xlu0 %v228, 92
        %v1680 = vpop.permute.xlu0 %1679
        %1681 = vrot.lane.b32.xlu0 %v229, 92
        %v1682 = vpop.permute.xlu0 %1681
        %1683 = vrot.lane.b32.xlu0 %v230, 92
        %v1684 = vpop.permute.xlu0 %1683
        %1685 = vrot.lane.b32.xlu0 %v231, 92
        %v1686 = vpop.permute.xlu0 %1685
        %1687 = vrot.lane.b32.xlu0 %v232, 92
        %v1688 = vpop.permute.xlu0 %1687
        %1689 = vrot.lane.b32.xlu0 %v223, 119
        %v1690 = vpop.permute.xlu0 %1689
        %1691 = vrot.lane.b32.xlu0 %v261, 119
        %v1692 = vpop.permute.xlu0 %1691
        %vm1693 = vcmask 973824
        %v1694 = vsel %vm1693, %v1690, %v1692
        %v1695 = vsel %vm268, %v1672, 0
        %v1697 = vsel %vm268, %v1674, 0
        %v1699 = vsel %vm268, %v1676, 0
        %v1701 = vsel %vm268, %v1678, 0
        %v1703 = vsel %vm268, %v1680, 0
        %v1705 = vsel %vm268, %v1682, 0
        %v1707 = vsel %vm268, %v1684, 0
        %v1709 = vsel %vm268, %v1686, 0
        %v1711 = vsel %vm268, %v1688, 0
        %v1713 = vsel %vm287, %v1694, 0
        %1715 = vmatprep.subr.mxu0 0.0
        %1716 = vmatpush1.msra.mxu0 0.0
        %1717 = vmatprep.subr.mxu0 0.0
        %1718 = vmatpush1.msra.mxu0 0.0
        %1719 = vmatprep.subr.mxu0 0.0
        %1720 = vmatpush1.msra.mxu0 0.0
        %1721 = vmatprep.subr.mxu0 0.0
        %1722 = vmatpush1.msra.mxu0 0.0
        %1723 = vmatprep.subr.mxu0 0.0
        %1724 = vmatpush1.msra.mxu0 0.0
        %1725 = vmatprep.subr.mxu0 0.0
        %1726 = vmatpush1.msra.mxu0 0.0
        %1727 = vmatprep.subr.mxu0 0.0
        %1728 = vmatpush1.msra.mxu0 0.0
        %1729 = vmatprep.subr.mxu0 0.0
        %1730 = vmatpush1.msra.mxu0 0.0
        %1731 = vmatprep.subr.mxu0 0.0
        %1732 = vmatpush1.msra.mxu0 0.0
        %1733 = vmatprep.subr.mxu0 0.0
        %1734 = vmatpush1.msra.mxu0 0.0
        %1735 = vmatprep.subr.mxu0 0.0
        %1736 = vmatpush1.msra.mxu0 0.0
        %1737 = vmatprep.subr.mxu0 0.0
        %1738 = vmatpush1.msra.mxu0 0.0
        %1739 = vmatprep.subr.mxu0 0.0
        %1740 = vmatpush1.msra.mxu0 0.0
        %1741 = vmatprep.subr.mxu0 0.0
        %1742 = vmatpush1.msra.mxu0 0.0
        %1743 = vmatprep.subr.mxu0 0.0
        %1744 = vmatpush1.msra.mxu0 0.0
        %1745 = vmatprep.subr.mxu0 0.0
        %1746 = vmatpush1.msra.mxu0 %v1713
        %1747 = vmatprep.subr.mxu0 0.0
        %1748 = vmatpush2.msra.mxu0 0.0
        %1749 = vmatprep.subr.mxu0 0.0
        %1750 = vmatpush2.msra.mxu0 0.0
        %1751 = vmatprep.subr.mxu0 0.0
        %1752 = vmatpush2.msra.mxu0 0.0
        %1753 = vmatprep.subr.mxu0 0.0
        %1754 = vmatpush2.msra.mxu0 0.0
        %1755 = vmatprep.subr.mxu0 0.0
        %1756 = vmatpush2.msra.mxu0 0.0
        %1757 = vmatprep.subr.mxu0 0.0
        %1758 = vmatpush2.msra.mxu0 0.0
        %1759 = vmatprep.subr.mxu0 0.0
        %1760 = vmatpush2.msra.mxu0 0.0
        %1761 = vmatprep.subr.mxu0 0.0
        %1762 = vmatpush2.msra.mxu0 0.0
        %1763 = vmatprep.subr.mxu0 0.0
        %1764 = vmatpush2.msra.mxu0 0.0
        %1765 = vmatprep.subr.mxu0 0.0
        %1766 = vmatpush2.msra.mxu0 0.0
        %1767 = vmatprep.subr.mxu0 0.0
        %1768 = vmatpush2.msra.mxu0 0.0
        %1769 = vmatprep.subr.mxu0 0.0
        %1770 = vmatpush2.msra.mxu0 0.0
        %1771 = vmatprep.subr.mxu0 0.0
        %1772 = vmatpush2.msra.mxu0 0.0
        %1773 = vmatprep.subr.mxu0 0.0
        %1774 = vmatpush2.msra.mxu0 0.0
        %1775 = vmatprep.subr.mxu0 0.0
        %1776 = vmatpush2.msra.mxu0 0.0
        %1777 = vmatprep.subr.mxu0 0.0
        %1778 = vmatpush2.msra.mxu0 0.0
        %1779 = vmatprep.mubr.f32.mxu0 0.0
        %1780 = vmatmul.mubr.f32.gmra.mxu0 %v1695
        %v1781 = vpop.f32.mrf.mxu0
        %v1782 = vadd.f32 0.0, %v1781
        %v1783 = vpop.f32.mrf.mxu0
        %1784 = vmatprep.mubr.f32.mxu0 0.0
        %1785 = vmatmul.mubr.f32.gmra.mxu0 %v1697
        %v1786 = vpop.f32.mrf.mxu0
        %v1787 = vadd.f32 0.0, %v1786
        %v1788 = vpop.f32.mrf.mxu0
        %1789 = vmatprep.mubr.f32.mxu0 0.0
        %1790 = vmatmul.mubr.f32.gmra.mxu0 %v1699
        %v1791 = vpop.f32.mrf.mxu0
        %v1792 = vadd.f32 0.0, %v1791
        %v1793 = vpop.f32.mrf.mxu0
        %1794 = vmatprep.mubr.f32.mxu0 0.0
        %1795 = vmatmul.mubr.f32.gmra.mxu0 %v1701
        %v1796 = vpop.f32.mrf.mxu0
        %v1797 = vadd.f32 0.0, %v1796
        %v1798 = vpop.f32.mrf.mxu0
        %1799 = vmatprep.mubr.f32.mxu0 0.0
        %1800 = vmatmul.mubr.f32.gmra.mxu0 %v1703
        %v1801 = vpop.f32.mrf.mxu0
        %v1802 = vadd.f32 0.0, %v1801
        %v1803 = vpop.f32.mrf.mxu0
        %1804 = vmatprep.mubr.f32.mxu0 0.0
        %1805 = vmatmul.mubr.f32.gmra.mxu0 %v1705
        %v1806 = vpop.f32.mrf.mxu0
        %v1807 = vadd.f32 0.0, %v1806
        %v1808 = vpop.f32.mrf.mxu0
        %1809 = vmatprep.mubr.f32.mxu0 0.0
        %1810 = vmatmul.mubr.f32.gmra.mxu0 %v1707
        %v1811 = vpop.f32.mrf.mxu0
        %v1812 = vadd.f32 0.0, %v1811
        %v1813 = vpop.f32.mrf.mxu0
        %1814 = vmatprep.mubr.f32.mxu0 0.0
        %1815 = vmatmul.mubr.f32.gmra.mxu0 %v1709
        %v1816 = vpop.f32.mrf.mxu0
        %v1817 = vadd.f32 0.0, %v1816
        %v1818 = vpop.f32.mrf.mxu0
        %1819 = vmatprep.mubr.f32.mxu0 0.0
        %1820 = vmatmul.mubr.f32.gmra.mxu0 %v1711
        %v1821 = vpop.f32.mrf.mxu0
        %v1822 = vadd.f32 0.0, %v1821
        %v1823 = vpop.f32.mrf.mxu0
        %1824 = vdwg.mxu0
        %v1825 = vadd.f32 %v1662, %v1782
        %v1826 = vadd.f32 %v1663, %v1787
        %v1827 = vadd.f32 %v1664, %v1792
        %v1828 = vadd.f32 %v1665, %v1797
        %v1829 = vadd.f32 %v1666, %v1802
        %v1830 = vadd.f32 %v1667, %v1807
        %v1831 = vadd.f32 %v1668, %v1812
        %v1832 = vadd.f32 %v1669, %v1817
        %v1833 = vadd.f32 %v1670, %v1822
        %1834 = vrot.lane.b32.xlu0 %v224, 88
        %v1835 = vpop.permute.xlu0 %1834
        %1836 = vrot.lane.b32.xlu0 %v225, 88
        %v1837 = vpop.permute.xlu0 %1836
        %1838 = vrot.lane.b32.xlu0 %v226, 88
        %v1839 = vpop.permute.xlu0 %1838
        %1840 = vrot.lane.b32.xlu0 %v227, 88
        %v1841 = vpop.permute.xlu0 %1840
        %1842 = vrot.lane.b32.xlu0 %v228, 88
        %v1843 = vpop.permute.xlu0 %1842
        %1844 = vrot.lane.b32.xlu0 %v229, 88
        %v1845 = vpop.permute.xlu0 %1844
        %1846 = vrot.lane.b32.xlu0 %v230, 88
        %v1847 = vpop.permute.xlu0 %1846
        %1848 = vrot.lane.b32.xlu0 %v231, 88
        %v1849 = vpop.permute.xlu0 %1848
        %1850 = vrot.lane.b32.xlu0 %v232, 88
        %v1851 = vpop.permute.xlu0 %1850
        %1852 = vrot.lane.b32.xlu0 %v223, 118
        %v1853 = vpop.permute.xlu0 %1852
        %1854 = vrot.lane.b32.xlu0 %v261, 118
        %v1855 = vpop.permute.xlu0 %1854
        %vm1856 = vcmask 965632
        %v1857 = vsel %vm1856, %v1853, %v1855
        %v1858 = vsel %vm268, %v1835, 0
        %v1860 = vsel %vm268, %v1837, 0
        %v1862 = vsel %vm268, %v1839, 0
        %v1864 = vsel %vm268, %v1841, 0
        %v1866 = vsel %vm268, %v1843, 0
        %v1868 = vsel %vm268, %v1845, 0
        %v1870 = vsel %vm268, %v1847, 0
        %v1872 = vsel %vm268, %v1849, 0
        %v1874 = vsel %vm268, %v1851, 0
        %v1876 = vsel %vm287, %v1857, 0
        %1878 = vmatprep.subr.mxu0 0.0
        %1879 = vmatpush1.msra.mxu0 0.0
        %1880 = vmatprep.subr.mxu0 0.0
        %1881 = vmatpush1.msra.mxu0 0.0
        %1882 = vmatprep.subr.mxu0 0.0
        %1883 = vmatpush1.msra.mxu0 0.0
        %1884 = vmatprep.subr.mxu0 0.0
        %1885 = vmatpush1.msra.mxu0 0.0
        %1886 = vmatprep.subr.mxu0 0.0
        %1887 = vmatpush1.msra.mxu0 0.0
        %1888 = vmatprep.subr.mxu0 0.0
        %1889 = vmatpush1.msra.mxu0 0.0
        %1890 = vmatprep.subr.mxu0 0.0
        %1891 = vmatpush1.msra.mxu0 0.0
        %1892 = vmatprep.subr.mxu0 0.0
        %1893 = vmatpush1.msra.mxu0 0.0
        %1894 = vmatprep.subr.mxu0 0.0
        %1895 = vmatpush1.msra.mxu0 0.0
        %1896 = vmatprep.subr.mxu0 0.0
        %1897 = vmatpush1.msra.mxu0 0.0
        %1898 = vmatprep.subr.mxu0 0.0
        %1899 = vmatpush1.msra.mxu0 0.0
        %1900 = vmatprep.subr.mxu0 0.0
        %1901 = vmatpush1.msra.mxu0 0.0
        %1902 = vmatprep.subr.mxu0 0.0
        %1903 = vmatpush1.msra.mxu0 0.0
        %1904 = vmatprep.subr.mxu0 0.0
        %1905 = vmatpush1.msra.mxu0 0.0
        %1906 = vmatprep.subr.mxu0 0.0
        %1907 = vmatpush1.msra.mxu0 0.0
        %1908 = vmatprep.subr.mxu0 0.0
        %1909 = vmatpush1.msra.mxu0 %v1876
        %1910 = vmatprep.subr.mxu0 0.0
        %1911 = vmatpush2.msra.mxu0 0.0
        %1912 = vmatprep.subr.mxu0 0.0
        %1913 = vmatpush2.msra.mxu0 0.0
        %1914 = vmatprep.subr.mxu0 0.0
        %1915 = vmatpush2.msra.mxu0 0.0
        %1916 = vmatprep.subr.mxu0 0.0
        %1917 = vmatpush2.msra.mxu0 0.0
        %1918 = vmatprep.subr.mxu0 0.0
        %1919 = vmatpush2.msra.mxu0 0.0
        %1920 = vmatprep.subr.mxu0 0.0
        %1921 = vmatpush2.msra.mxu0 0.0
        %1922 = vmatprep.subr.mxu0 0.0
        %1923 = vmatpush2.msra.mxu0 0.0
        %1924 = vmatprep.subr.mxu0 0.0
        %1925 = vmatpush2.msra.mxu0 0.0
        %1926 = vmatprep.subr.mxu0 0.0
        %1927 = vmatpush2.msra.mxu0 0.0
        %1928 = vmatprep.subr.mxu0 0.0
        %1929 = vmatpush2.msra.mxu0 0.0
        %1930 = vmatprep.subr.mxu0 0.0
        %1931 = vmatpush2.msra.mxu0 0.0
        %1932 = vmatprep.subr.mxu0 0.0
        %1933 = vmatpush2.msra.mxu0 0.0
        %1934 = vmatprep.subr.mxu0 0.0
        %1935 = vmatpush2.msra.mxu0 0.0
        %1936 = vmatprep.subr.mxu0 0.0
        %1937 = vmatpush2.msra.mxu0 0.0
        %1938 = vmatprep.subr.mxu0 0.0
        %1939 = vmatpush2.msra.mxu0 0.0
        %1940 = vmatprep.subr.mxu0 0.0
        %1941 = vmatpush2.msra.mxu0 0.0
        %1942 = vmatprep.mubr.f32.mxu0 0.0
        %1943 = vmatmul.mubr.f32.gmra.mxu0 %v1858
        %v1944 = vpop.f32.mrf.mxu0
        %v1945 = vadd.f32 0.0, %v1944
        %v1946 = vpop.f32.mrf.mxu0
        %1947 = vmatprep.mubr.f32.mxu0 0.0
        %1948 = vmatmul.mubr.f32.gmra.mxu0 %v1860
        %v1949 = vpop.f32.mrf.mxu0
        %v1950 = vadd.f32 0.0, %v1949
        %v1951 = vpop.f32.mrf.mxu0
        %1952 = vmatprep.mubr.f32.mxu0 0.0
        %1953 = vmatmul.mubr.f32.gmra.mxu0 %v1862
        %v1954 = vpop.f32.mrf.mxu0
        %v1955 = vadd.f32 0.0, %v1954
        %v1956 = vpop.f32.mrf.mxu0
        %1957 = vmatprep.mubr.f32.mxu0 0.0
        %1958 = vmatmul.mubr.f32.gmra.mxu0 %v1864
        %v1959 = vpop.f32.mrf.mxu0
        %v1960 = vadd.f32 0.0, %v1959
        %v1961 = vpop.f32.mrf.mxu0
        %1962 = vmatprep.mubr.f32.mxu0 0.0
        %1963 = vmatmul.mubr.f32.gmra.mxu0 %v1866
        %v1964 = vpop.f32.mrf.mxu0
        %v1965 = vadd.f32 0.0, %v1964
        %v1966 = vpop.f32.mrf.mxu0
        %1967 = vmatprep.mubr.f32.mxu0 0.0
        %1968 = vmatmul.mubr.f32.gmra.mxu0 %v1868
        %v1969 = vpop.f32.mrf.mxu0
        %v1970 = vadd.f32 0.0, %v1969
        %v1971 = vpop.f32.mrf.mxu0
        %1972 = vmatprep.mubr.f32.mxu0 0.0
        %1973 = vmatmul.mubr.f32.gmra.mxu0 %v1870
        %v1974 = vpop.f32.mrf.mxu0
        %v1975 = vadd.f32 0.0, %v1974
        %v1976 = vpop.f32.mrf.mxu0
        %1977 = vmatprep.mubr.f32.mxu0 0.0
        %1978 = vmatmul.mubr.f32.gmra.mxu0 %v1872
        %v1979 = vpop.f32.mrf.mxu0
        %v1980 = vadd.f32 0.0, %v1979
        %v1981 = vpop.f32.mrf.mxu0
        %1982 = vmatprep.mubr.f32.mxu0 0.0
        %1983 = vmatmul.mubr.f32.gmra.mxu0 %v1874
        %v1984 = vpop.f32.mrf.mxu0
        %v1985 = vadd.f32 0.0, %v1984
        %v1986 = vpop.f32.mrf.mxu0
        %1987 = vdwg.mxu0
        %v1988 = vadd.f32 %v1825, %v1945
        %v1989 = vadd.f32 %v1826, %v1950
        %v1990 = vadd.f32 %v1827, %v1955
        %v1991 = vadd.f32 %v1828, %v1960
        %v1992 = vadd.f32 %v1829, %v1965
        %v1993 = vadd.f32 %v1830, %v1970
        %v1994 = vadd.f32 %v1831, %v1975
        %v1995 = vadd.f32 %v1832, %v1980
        %v1996 = vadd.f32 %v1833, %v1985
        %1997 = vrot.lane.b32.xlu0 %v224, 84
        %v1998 = vpop.permute.xlu0 %1997
        %1999 = vrot.lane.b32.xlu0 %v225, 84
        %v2000 = vpop.permute.xlu0 %1999
        %2001 = vrot.lane.b32.xlu0 %v226, 84
        %v2002 = vpop.permute.xlu0 %2001
        %2003 = vrot.lane.b32.xlu0 %v227, 84
        %v2004 = vpop.permute.xlu0 %2003
        %2005 = vrot.lane.b32.xlu0 %v228, 84
        %v2006 = vpop.permute.xlu0 %2005
        %2007 = vrot.lane.b32.xlu0 %v229, 84
        %v2008 = vpop.permute.xlu0 %2007
        %2009 = vrot.lane.b32.xlu0 %v230, 84
        %v2010 = vpop.permute.xlu0 %2009
        %2011 = vrot.lane.b32.xlu0 %v231, 84
        %v2012 = vpop.permute.xlu0 %2011
        %2013 = vrot.lane.b32.xlu0 %v232, 84
        %v2014 = vpop.permute.xlu0 %2013
        %2015 = vrot.lane.b32.xlu0 %v223, 117
        %v2016 = vpop.permute.xlu0 %2015
        %2017 = vrot.lane.b32.xlu0 %v261, 117
        %v2018 = vpop.permute.xlu0 %2017
        %vm2019 = vcmask 957440
        %v2020 = vsel %vm2019, %v2016, %v2018
        %v2021 = vsel %vm268, %v1998, 0
        %v2023 = vsel %vm268, %v2000, 0
        %v2025 = vsel %vm268, %v2002, 0
        %v2027 = vsel %vm268, %v2004, 0
        %v2029 = vsel %vm268, %v2006, 0
        %v2031 = vsel %vm268, %v2008, 0
        %v2033 = vsel %vm268, %v2010, 0
        %v2035 = vsel %vm268, %v2012, 0
        %v2037 = vsel %vm268, %v2014, 0
        %v2039 = vsel %vm287, %v2020, 0
        %2041 = vmatprep.subr.mxu0 0.0
        %2042 = vmatpush1.msra.mxu0 0.0
        %2043 = vmatprep.subr.mxu0 0.0
        %2044 = vmatpush1.msra.mxu0 0.0
        %2045 = vmatprep.subr.mxu0 0.0
        %2046 = vmatpush1.msra.mxu0 0.0
        %2047 = vmatprep.subr.mxu0 0.0
        %2048 = vmatpush1.msra.mxu0 0.0
        %2049 = vmatprep.subr.mxu0 0.0
        %2050 = vmatpush1.msra.mxu0 0.0
        %2051 = vmatprep.subr.mxu0 0.0
        %2052 = vmatpush1.msra.mxu0 0.0
        %2053 = vmatprep.subr.mxu0 0.0
        %2054 = vmatpush1.msra.mxu0 0.0
        %2055 = vmatprep.subr.mxu0 0.0
        %2056 = vmatpush1.msra.mxu0 0.0
        %2057 = vmatprep.subr.mxu0 0.0
        %2058 = vmatpush1.msra.mxu0 0.0
        %2059 = vmatprep.subr.mxu0 0.0
        %2060 = vmatpush1.msra.mxu0 0.0
        %2061 = vmatprep.subr.mxu0 0.0
        %2062 = vmatpush1.msra.mxu0 0.0
        %2063 = vmatprep.subr.mxu0 0.0
        %2064 = vmatpush1.msra.mxu0 0.0
        %2065 = vmatprep.subr.mxu0 0.0
        %2066 = vmatpush1.msra.mxu0 0.0
        %2067 = vmatprep.subr.mxu0 0.0
        %2068 = vmatpush1.msra.mxu0 0.0
        %2069 = vmatprep.subr.mxu0 0.0
        %2070 = vmatpush1.msra.mxu0 0.0
        %2071 = vmatprep.subr.mxu0 0.0
        %2072 = vmatpush1.msra.mxu0 %v2039
        %2073 = vmatprep.subr.mxu0 0.0
        %2074 = vmatpush2.msra.mxu0 0.0
        %2075 = vmatprep.subr.mxu0 0.0
        %2076 = vmatpush2.msra.mxu0 0.0
        %2077 = vmatprep.subr.mxu0 0.0
        %2078 = vmatpush2.msra.mxu0 0.0
        %2079 = vmatprep.subr.mxu0 0.0
        %2080 = vmatpush2.msra.mxu0 0.0
        %2081 = vmatprep.subr.mxu0 0.0
        %2082 = vmatpush2.msra.mxu0 0.0
        %2083 = vmatprep.subr.mxu0 0.0
        %2084 = vmatpush2.msra.mxu0 0.0
        %2085 = vmatprep.subr.mxu0 0.0
        %2086 = vmatpush2.msra.mxu0 0.0
        %2087 = vmatprep.subr.mxu0 0.0
        %2088 = vmatpush2.msra.mxu0 0.0
        %2089 = vmatprep.subr.mxu0 0.0
        %2090 = vmatpush2.msra.mxu0 0.0
        %2091 = vmatprep.subr.mxu0 0.0
        %2092 = vmatpush2.msra.mxu0 0.0
        %2093 = vmatprep.subr.mxu0 0.0
        %2094 = vmatpush2.msra.mxu0 0.0
        %2095 = vmatprep.subr.mxu0 0.0
        %2096 = vmatpush2.msra.mxu0 0.0
        %2097 = vmatprep.subr.mxu0 0.0
        %2098 = vmatpush2.msra.mxu0 0.0
        %2099 = vmatprep.subr.mxu0 0.0
        %2100 = vmatpush2.msra.mxu0 0.0
        %2101 = vmatprep.subr.mxu0 0.0
        %2102 = vmatpush2.msra.mxu0 0.0
        %2103 = vmatprep.subr.mxu0 0.0
        %2104 = vmatpush2.msra.mxu0 0.0
        %2105 = vmatprep.mubr.f32.mxu0 0.0
        %2106 = vmatmul.mubr.f32.gmra.mxu0 %v2021
        %v2107 = vpop.f32.mrf.mxu0
        %v2108 = vadd.f32 0.0, %v2107
        %v2109 = vpop.f32.mrf.mxu0
        %2110 = vmatprep.mubr.f32.mxu0 0.0
        %2111 = vmatmul.mubr.f32.gmra.mxu0 %v2023
        %v2112 = vpop.f32.mrf.mxu0
        %v2113 = vadd.f32 0.0, %v2112
        %v2114 = vpop.f32.mrf.mxu0
        %2115 = vmatprep.mubr.f32.mxu0 0.0
        %2116 = vmatmul.mubr.f32.gmra.mxu0 %v2025
        %v2117 = vpop.f32.mrf.mxu0
        %v2118 = vadd.f32 0.0, %v2117
        %v2119 = vpop.f32.mrf.mxu0
        %2120 = vmatprep.mubr.f32.mxu0 0.0
        %2121 = vmatmul.mubr.f32.gmra.mxu0 %v2027
        %v2122 = vpop.f32.mrf.mxu0
        %v2123 = vadd.f32 0.0, %v2122
        %v2124 = vpop.f32.mrf.mxu0
        %2125 = vmatprep.mubr.f32.mxu0 0.0
        %2126 = vmatmul.mubr.f32.gmra.mxu0 %v2029
        %v2127 = vpop.f32.mrf.mxu0
        %v2128 = vadd.f32 0.0, %v2127
        %v2129 = vpop.f32.mrf.mxu0
        %2130 = vmatprep.mubr.f32.mxu0 0.0
        %2131 = vmatmul.mubr.f32.gmra.mxu0 %v2031
        %v2132 = vpop.f32.mrf.mxu0
        %v2133 = vadd.f32 0.0, %v2132
        %v2134 = vpop.f32.mrf.mxu0
        %2135 = vmatprep.mubr.f32.mxu0 0.0
        %2136 = vmatmul.mubr.f32.gmra.mxu0 %v2033
        %v2137 = vpop.f32.mrf.mxu0
        %v2138 = vadd.f32 0.0, %v2137
        %v2139 = vpop.f32.mrf.mxu0
        %2140 = vmatprep.mubr.f32.mxu0 0.0
        %2141 = vmatmul.mubr.f32.gmra.mxu0 %v2035
        %v2142 = vpop.f32.mrf.mxu0
        %v2143 = vadd.f32 0.0, %v2142
        %v2144 = vpop.f32.mrf.mxu0
        %2145 = vmatprep.mubr.f32.mxu0 0.0
        %2146 = vmatmul.mubr.f32.gmra.mxu0 %v2037
        %v2147 = vpop.f32.mrf.mxu0
        %v2148 = vadd.f32 0.0, %v2147
        %v2149 = vpop.f32.mrf.mxu0
        %2150 = vdwg.mxu0
        %v2151 = vadd.f32 %v1988, %v2108
        %v2152 = vadd.f32 %v1989, %v2113
        %v2153 = vadd.f32 %v1990, %v2118
        %v2154 = vadd.f32 %v1991, %v2123
        %v2155 = vadd.f32 %v1992, %v2128
        %v2156 = vadd.f32 %v1993, %v2133
        %v2157 = vadd.f32 %v1994, %v2138
        %v2158 = vadd.f32 %v1995, %v2143
        %v2159 = vadd.f32 %v1996, %v2148
        %2160 = vrot.lane.b32.xlu0 %v224, 80
        %v2161 = vpop.permute.xlu0 %2160
        %2162 = vrot.lane.b32.xlu0 %v225, 80
        %v2163 = vpop.permute.xlu0 %2162
        %2164 = vrot.lane.b32.xlu0 %v226, 80
        %v2165 = vpop.permute.xlu0 %2164
        %2166 = vrot.lane.b32.xlu0 %v227, 80
        %v2167 = vpop.permute.xlu0 %2166
        %2168 = vrot.lane.b32.xlu0 %v228, 80
        %v2169 = vpop.permute.xlu0 %2168
        %2170 = vrot.lane.b32.xlu0 %v229, 80
        %v2171 = vpop.permute.xlu0 %2170
        %2172 = vrot.lane.b32.xlu0 %v230, 80
        %v2173 = vpop.permute.xlu0 %2172
        %2174 = vrot.lane.b32.xlu0 %v231, 80
        %v2175 = vpop.permute.xlu0 %2174
        %2176 = vrot.lane.b32.xlu0 %v232, 80
        %v2177 = vpop.permute.xlu0 %2176
        %2178 = vrot.lane.b32.xlu0 %v223, 116
        %v2179 = vpop.permute.xlu0 %2178
        %2180 = vrot.lane.b32.xlu0 %v261, 116
        %v2181 = vpop.permute.xlu0 %2180
        %vm2182 = vcmask 949248
        %v2183 = vsel %vm2182, %v2179, %v2181
        %v2184 = vsel %vm268, %v2161, 0
        %v2186 = vsel %vm268, %v2163, 0
        %v2188 = vsel %vm268, %v2165, 0
        %v2190 = vsel %vm268, %v2167, 0
        %v2192 = vsel %vm268, %v2169, 0
        %v2194 = vsel %vm268, %v2171, 0
        %v2196 = vsel %vm268, %v2173, 0
        %v2198 = vsel %vm268, %v2175, 0
        %v2200 = vsel %vm268, %v2177, 0
        %v2202 = vsel %vm287, %v2183, 0
        %2204 = vmatprep.subr.mxu0 0.0
        %2205 = vmatpush1.msra.mxu0 0.0
        %2206 = vmatprep.subr.mxu0 0.0
        %2207 = vmatpush1.msra.mxu0 0.0
        %2208 = vmatprep.subr.mxu0 0.0
        %2209 = vmatpush1.msra.mxu0 0.0
        %2210 = vmatprep.subr.mxu0 0.0
        %2211 = vmatpush1.msra.mxu0 0.0
        %2212 = vmatprep.subr.mxu0 0.0
        %2213 = vmatpush1.msra.mxu0 0.0
        %2214 = vmatprep.subr.mxu0 0.0
        %2215 = vmatpush1.msra.mxu0 0.0
        %2216 = vmatprep.subr.mxu0 0.0
        %2217 = vmatpush1.msra.mxu0 0.0
        %2218 = vmatprep.subr.mxu0 0.0
        %2219 = vmatpush1.msra.mxu0 0.0
        %2220 = vmatprep.subr.mxu0 0.0
        %2221 = vmatpush1.msra.mxu0 0.0
        %2222 = vmatprep.subr.mxu0 0.0
        %2223 = vmatpush1.msra.mxu0 0.0
        %2224 = vmatprep.subr.mxu0 0.0
        %2225 = vmatpush1.msra.mxu0 0.0
        %2226 = vmatprep.subr.mxu0 0.0
        %2227 = vmatpush1.msra.mxu0 0.0
        %2228 = vmatprep.subr.mxu0 0.0
        %2229 = vmatpush1.msra.mxu0 0.0
        %2230 = vmatprep.subr.mxu0 0.0
        %2231 = vmatpush1.msra.mxu0 0.0
        %2232 = vmatprep.subr.mxu0 0.0
        %2233 = vmatpush1.msra.mxu0 0.0
        %2234 = vmatprep.subr.mxu0 0.0
        %2235 = vmatpush1.msra.mxu0 %v2202
        %2236 = vmatprep.subr.mxu0 0.0
        %2237 = vmatpush2.msra.mxu0 0.0
        %2238 = vmatprep.subr.mxu0 0.0
        %2239 = vmatpush2.msra.mxu0 0.0
        %2240 = vmatprep.subr.mxu0 0.0
        %2241 = vmatpush2.msra.mxu0 0.0
        %2242 = vmatprep.subr.mxu0 0.0
        %2243 = vmatpush2.msra.mxu0 0.0
        %2244 = vmatprep.subr.mxu0 0.0
        %2245 = vmatpush2.msra.mxu0 0.0
        %2246 = vmatprep.subr.mxu0 0.0
        %2247 = vmatpush2.msra.mxu0 0.0
        %2248 = vmatprep.subr.mxu0 0.0
        %2249 = vmatpush2.msra.mxu0 0.0
        %2250 = vmatprep.subr.mxu0 0.0
        %2251 = vmatpush2.msra.mxu0 0.0
        %2252 = vmatprep.subr.mxu0 0.0
        %2253 = vmatpush2.msra.mxu0 0.0
        %2254 = vmatprep.subr.mxu0 0.0
        %2255 = vmatpush2.msra.mxu0 0.0
        %2256 = vmatprep.subr.mxu0 0.0
        %2257 = vmatpush2.msra.mxu0 0.0
        %2258 = vmatprep.subr.mxu0 0.0
        %2259 = vmatpush2.msra.mxu0 0.0
        %2260 = vmatprep.subr.mxu0 0.0
        %2261 = vmatpush2.msra.mxu0 0.0
        %2262 = vmatprep.subr.mxu0 0.0
        %2263 = vmatpush2.msra.mxu0 0.0
        %2264 = vmatprep.subr.mxu0 0.0
        %2265 = vmatpush2.msra.mxu0 0.0
        %2266 = vmatprep.subr.mxu0 0.0
        %2267 = vmatpush2.msra.mxu0 0.0
        %2268 = vmatprep.mubr.f32.mxu0 0.0
        %2269 = vmatmul.mubr.f32.gmra.mxu0 %v2184
        %v2270 = vpop.f32.mrf.mxu0
        %v2271 = vadd.f32 0.0, %v2270
        %v2272 = vpop.f32.mrf.mxu0
        %2273 = vmatprep.mubr.f32.mxu0 0.0
        %2274 = vmatmul.mubr.f32.gmra.mxu0 %v2186
        %v2275 = vpop.f32.mrf.mxu0
        %v2276 = vadd.f32 0.0, %v2275
        %v2277 = vpop.f32.mrf.mxu0
        %2278 = vmatprep.mubr.f32.mxu0 0.0
        %2279 = vmatmul.mubr.f32.gmra.mxu0 %v2188
        %v2280 = vpop.f32.mrf.mxu0
        %v2281 = vadd.f32 0.0, %v2280
        %v2282 = vpop.f32.mrf.mxu0
        %2283 = vmatprep.mubr.f32.mxu0 0.0
        %2284 = vmatmul.mubr.f32.gmra.mxu0 %v2190
        %v2285 = vpop.f32.mrf.mxu0
        %v2286 = vadd.f32 0.0, %v2285
        %v2287 = vpop.f32.mrf.mxu0
        %2288 = vmatprep.mubr.f32.mxu0 0.0
        %2289 = vmatmul.mubr.f32.gmra.mxu0 %v2192
        %v2290 = vpop.f32.mrf.mxu0
        %v2291 = vadd.f32 0.0, %v2290
        %v2292 = vpop.f32.mrf.mxu0
        %2293 = vmatprep.mubr.f32.mxu0 0.0
        %2294 = vmatmul.mubr.f32.gmra.mxu0 %v2194
        %v2295 = vpop.f32.mrf.mxu0
        %v2296 = vadd.f32 0.0, %v2295
        %v2297 = vpop.f32.mrf.mxu0
        %2298 = vmatprep.mubr.f32.mxu0 0.0
        %2299 = vmatmul.mubr.f32.gmra.mxu0 %v2196
        %v2300 = vpop.f32.mrf.mxu0
        %v2301 = vadd.f32 0.0, %v2300
        %v2302 = vpop.f32.mrf.mxu0
        %2303 = vmatprep.mubr.f32.mxu0 0.0
        %2304 = vmatmul.mubr.f32.gmra.mxu0 %v2198
        %v2305 = vpop.f32.mrf.mxu0
        %v2306 = vadd.f32 0.0, %v2305
        %v2307 = vpop.f32.mrf.mxu0
        %2308 = vmatprep.mubr.f32.mxu0 0.0
        %2309 = vmatmul.mubr.f32.gmra.mxu0 %v2200
        %v2310 = vpop.f32.mrf.mxu0
        %v2311 = vadd.f32 0.0, %v2310
        %v2312 = vpop.f32.mrf.mxu0
        %2313 = vdwg.mxu0
        %v2314 = vadd.f32 %v2151, %v2271
        %v2315 = vadd.f32 %v2152, %v2276
        %v2316 = vadd.f32 %v2153, %v2281
        %v2317 = vadd.f32 %v2154, %v2286
        %v2318 = vadd.f32 %v2155, %v2291
        %v2319 = vadd.f32 %v2156, %v2296
        %v2320 = vadd.f32 %v2157, %v2301
        %v2321 = vadd.f32 %v2158, %v2306
        %v2322 = vadd.f32 %v2159, %v2311
        %2323 = vrot.lane.b32.xlu0 %v224, 76
        %v2324 = vpop.permute.xlu0 %2323
        %2325 = vrot.lane.b32.xlu0 %v225, 76
        %v2326 = vpop.permute.xlu0 %2325
        %2327 = vrot.lane.b32.xlu0 %v226, 76
        %v2328 = vpop.permute.xlu0 %2327
        %2329 = vrot.lane.b32.xlu0 %v227, 76
        %v2330 = vpop.permute.xlu0 %2329
        %2331 = vrot.lane.b32.xlu0 %v228, 76
        %v2332 = vpop.permute.xlu0 %2331
        %2333 = vrot.lane.b32.xlu0 %v229, 76
        %v2334 = vpop.permute.xlu0 %2333
        %2335 = vrot.lane.b32.xlu0 %v230, 76
        %v2336 = vpop.permute.xlu0 %2335
        %2337 = vrot.lane.b32.xlu0 %v231, 76
        %v2338 = vpop.permute.xlu0 %2337
        %2339 = vrot.lane.b32.xlu0 %v232, 76
        %v2340 = vpop.permute.xlu0 %2339
        %2341 = vrot.lane.b32.xlu0 %v223, 115
        %v2342 = vpop.permute.xlu0 %2341
        %2343 = vrot.lane.b32.xlu0 %v261, 115
        %v2344 = vpop.permute.xlu0 %2343
        %vm2345 = vcmask 941056
        %v2346 = vsel %vm2345, %v2342, %v2344
        %v2347 = vsel %vm268, %v2324, 0
        %v2349 = vsel %vm268, %v2326, 0
        %v2351 = vsel %vm268, %v2328, 0
        %v2353 = vsel %vm268, %v2330, 0
        %v2355 = vsel %vm268, %v2332, 0
        %v2357 = vsel %vm268, %v2334, 0
        %v2359 = vsel %vm268, %v2336, 0
        %v2361 = vsel %vm268, %v2338, 0
        %v2363 = vsel %vm268, %v2340, 0
        %v2365 = vsel %vm287, %v2346, 0
        %2367 = vmatprep.subr.mxu0 0.0
        %2368 = vmatpush1.msra.mxu0 0.0
        %2369 = vmatprep.subr.mxu0 0.0
        %2370 = vmatpush1.msra.mxu0 0.0
        %2371 = vmatprep.subr.mxu0 0.0
        %2372 = vmatpush1.msra.mxu0 0.0
        %2373 = vmatprep.subr.mxu0 0.0
        %2374 = vmatpush1.msra.mxu0 0.0
        %2375 = vmatprep.subr.mxu0 0.0
        %2376 = vmatpush1.msra.mxu0 0.0
        %2377 = vmatprep.subr.mxu0 0.0
        %2378 = vmatpush1.msra.mxu0 0.0
        %2379 = vmatprep.subr.mxu0 0.0
        %2380 = vmatpush1.msra.mxu0 0.0
        %2381 = vmatprep.subr.mxu0 0.0
        %2382 = vmatpush1.msra.mxu0 0.0
        %2383 = vmatprep.subr.mxu0 0.0
        %2384 = vmatpush1.msra.mxu0 0.0
        %2385 = vmatprep.subr.mxu0 0.0
        %2386 = vmatpush1.msra.mxu0 0.0
        %2387 = vmatprep.subr.mxu0 0.0
        %2388 = vmatpush1.msra.mxu0 0.0
        %2389 = vmatprep.subr.mxu0 0.0
        %2390 = vmatpush1.msra.mxu0 0.0
        %2391 = vmatprep.subr.mxu0 0.0
        %2392 = vmatpush1.msra.mxu0 0.0
        %2393 = vmatprep.subr.mxu0 0.0
        %2394 = vmatpush1.msra.mxu0 0.0
        %2395 = vmatprep.subr.mxu0 0.0
        %2396 = vmatpush1.msra.mxu0 0.0
        %2397 = vmatprep.subr.mxu0 0.0
        %2398 = vmatpush1.msra.mxu0 %v2365
        %2399 = vmatprep.subr.mxu0 0.0
        %2400 = vmatpush2.msra.mxu0 0.0
        %2401 = vmatprep.subr.mxu0 0.0
        %2402 = vmatpush2.msra.mxu0 0.0
        %2403 = vmatprep.subr.mxu0 0.0
        %2404 = vmatpush2.msra.mxu0 0.0
        %2405 = vmatprep.subr.mxu0 0.0
        %2406 = vmatpush2.msra.mxu0 0.0
        %2407 = vmatprep.subr.mxu0 0.0
        %2408 = vmatpush2.msra.mxu0 0.0
        %2409 = vmatprep.subr.mxu0 0.0
        %2410 = vmatpush2.msra.mxu0 0.0
        %2411 = vmatprep.subr.mxu0 0.0
        %2412 = vmatpush2.msra.mxu0 0.0
        %2413 = vmatprep.subr.mxu0 0.0
        %2414 = vmatpush2.msra.mxu0 0.0
        %2415 = vmatprep.subr.mxu0 0.0
        %2416 = vmatpush2.msra.mxu0 0.0
        %2417 = vmatprep.subr.mxu0 0.0
        %2418 = vmatpush2.msra.mxu0 0.0
        %2419 = vmatprep.subr.mxu0 0.0
        %2420 = vmatpush2.msra.mxu0 0.0
        %2421 = vmatprep.subr.mxu0 0.0
        %2422 = vmatpush2.msra.mxu0 0.0
        %2423 = vmatprep.subr.mxu0 0.0
        %2424 = vmatpush2.msra.mxu0 0.0
        %2425 = vmatprep.subr.mxu0 0.0
        %2426 = vmatpush2.msra.mxu0 0.0
        %2427 = vmatprep.subr.mxu0 0.0
        %2428 = vmatpush2.msra.mxu0 0.0
        %2429 = vmatprep.subr.mxu0 0.0
        %2430 = vmatpush2.msra.mxu0 0.0
        %2431 = vmatprep.mubr.f32.mxu0 0.0
        %2432 = vmatmul.mubr.f32.gmra.mxu0 %v2347
        %v2433 = vpop.f32.mrf.mxu0
        %v2434 = vadd.f32 0.0, %v2433
        %v2435 = vpop.f32.mrf.mxu0
        %2436 = vmatprep.mubr.f32.mxu0 0.0
        %2437 = vmatmul.mubr.f32.gmra.mxu0 %v2349
        %v2438 = vpop.f32.mrf.mxu0
        %v2439 = vadd.f32 0.0, %v2438
        %v2440 = vpop.f32.mrf.mxu0
        %2441 = vmatprep.mubr.f32.mxu0 0.0
        %2442 = vmatmul.mubr.f32.gmra.mxu0 %v2351
        %v2443 = vpop.f32.mrf.mxu0
        %v2444 = vadd.f32 0.0, %v2443
        %v2445 = vpop.f32.mrf.mxu0
        %2446 = vmatprep.mubr.f32.mxu0 0.0
        %2447 = vmatmul.mubr.f32.gmra.mxu0 %v2353
        %v2448 = vpop.f32.mrf.mxu0
        %v2449 = vadd.f32 0.0, %v2448
        %v2450 = vpop.f32.mrf.mxu0
        %2451 = vmatprep.mubr.f32.mxu0 0.0
        %2452 = vmatmul.mubr.f32.gmra.mxu0 %v2355
        %v2453 = vpop.f32.mrf.mxu0
        %v2454 = vadd.f32 0.0, %v2453
        %v2455 = vpop.f32.mrf.mxu0
        %2456 = vmatprep.mubr.f32.mxu0 0.0
        %2457 = vmatmul.mubr.f32.gmra.mxu0 %v2357
        %v2458 = vpop.f32.mrf.mxu0
        %v2459 = vadd.f32 0.0, %v2458
        %v2460 = vpop.f32.mrf.mxu0
        %2461 = vmatprep.mubr.f32.mxu0 0.0
        %2462 = vmatmul.mubr.f32.gmra.mxu0 %v2359
        %v2463 = vpop.f32.mrf.mxu0
        %v2464 = vadd.f32 0.0, %v2463
        %v2465 = vpop.f32.mrf.mxu0
        %2466 = vmatprep.mubr.f32.mxu0 0.0
        %2467 = vmatmul.mubr.f32.gmra.mxu0 %v2361
        %v2468 = vpop.f32.mrf.mxu0
        %v2469 = vadd.f32 0.0, %v2468
        %v2470 = vpop.f32.mrf.mxu0
        %2471 = vmatprep.mubr.f32.mxu0 0.0
        %2472 = vmatmul.mubr.f32.gmra.mxu0 %v2363
        %v2473 = vpop.f32.mrf.mxu0
        %v2474 = vadd.f32 0.0, %v2473
        %v2475 = vpop.f32.mrf.mxu0
        %2476 = vdwg.mxu0
        %v2477 = vadd.f32 %v2314, %v2434
        %v2478 = vadd.f32 %v2315, %v2439
        %v2479 = vadd.f32 %v2316, %v2444
        %v2480 = vadd.f32 %v2317, %v2449
        %v2481 = vadd.f32 %v2318, %v2454
        %v2482 = vadd.f32 %v2319, %v2459
        %v2483 = vadd.f32 %v2320, %v2464
        %v2484 = vadd.f32 %v2321, %v2469
        %v2485 = vadd.f32 %v2322, %v2474
        %2486 = vrot.lane.b32.xlu0 %v224, 72
        %v2487 = vpop.permute.xlu0 %2486
        %2488 = vrot.lane.b32.xlu0 %v225, 72
        %v2489 = vpop.permute.xlu0 %2488
        %2490 = vrot.lane.b32.xlu0 %v226, 72
        %v2491 = vpop.permute.xlu0 %2490
        %2492 = vrot.lane.b32.xlu0 %v227, 72
        %v2493 = vpop.permute.xlu0 %2492
        %2494 = vrot.lane.b32.xlu0 %v228, 72
        %v2495 = vpop.permute.xlu0 %2494
        %2496 = vrot.lane.b32.xlu0 %v229, 72
        %v2497 = vpop.permute.xlu0 %2496
        %2498 = vrot.lane.b32.xlu0 %v230, 72
        %v2499 = vpop.permute.xlu0 %2498
        %2500 = vrot.lane.b32.xlu0 %v231, 72
        %v2501 = vpop.permute.xlu0 %2500
        %2502 = vrot.lane.b32.xlu0 %v232, 72
        %v2503 = vpop.permute.xlu0 %2502
        %2504 = vrot.lane.b32.xlu0 %v223, 114
        %v2505 = vpop.permute.xlu0 %2504
        %2506 = vrot.lane.b32.xlu0 %v261, 114
        %v2507 = vpop.permute.xlu0 %2506
        %vm2508 = vcmask 932864
        %v2509 = vsel %vm2508, %v2505, %v2507
        %v2510 = vsel %vm268, %v2487, 0
        %v2512 = vsel %vm268, %v2489, 0
        %v2514 = vsel %vm268, %v2491, 0
        %v2516 = vsel %vm268, %v2493, 0
        %v2518 = vsel %vm268, %v2495, 0
        %v2520 = vsel %vm268, %v2497, 0
        %v2522 = vsel %vm268, %v2499, 0
        %v2524 = vsel %vm268, %v2501, 0
        %v2526 = vsel %vm268, %v2503, 0
        %v2528 = vsel %vm287, %v2509, 0
        %2530 = vmatprep.subr.mxu0 0.0
        %2531 = vmatpush1.msra.mxu0 0.0
        %2532 = vmatprep.subr.mxu0 0.0
        %2533 = vmatpush1.msra.mxu0 0.0
        %2534 = vmatprep.subr.mxu0 0.0
        %2535 = vmatpush1.msra.mxu0 0.0
        %2536 = vmatprep.subr.mxu0 0.0
        %2537 = vmatpush1.msra.mxu0 0.0
        %2538 = vmatprep.subr.mxu0 0.0
        %2539 = vmatpush1.msra.mxu0 0.0
        %2540 = vmatprep.subr.mxu0 0.0
        %2541 = vmatpush1.msra.mxu0 0.0
        %2542 = vmatprep.subr.mxu0 0.0
        %2543 = vmatpush1.msra.mxu0 0.0
        %2544 = vmatprep.subr.mxu0 0.0
        %2545 = vmatpush1.msra.mxu0 0.0
        %2546 = vmatprep.subr.mxu0 0.0
        %2547 = vmatpush1.msra.mxu0 0.0
        %2548 = vmatprep.subr.mxu0 0.0
        %2549 = vmatpush1.msra.mxu0 0.0
        %2550 = vmatprep.subr.mxu0 0.0
        %2551 = vmatpush1.msra.mxu0 0.0
        %2552 = vmatprep.subr.mxu0 0.0
        %2553 = vmatpush1.msra.mxu0 0.0
        %2554 = vmatprep.subr.mxu0 0.0
        %2555 = vmatpush1.msra.mxu0 0.0
        %2556 = vmatprep.subr.mxu0 0.0
        %2557 = vmatpush1.msra.mxu0 0.0
        %2558 = vmatprep.subr.mxu0 0.0
        %2559 = vmatpush1.msra.mxu0 0.0
        %2560 = vmatprep.subr.mxu0 0.0
        %2561 = vmatpush1.msra.mxu0 %v2528
        %2562 = vmatprep.subr.mxu0 0.0
        %2563 = vmatpush2.msra.mxu0 0.0
        %2564 = vmatprep.subr.mxu0 0.0
        %2565 = vmatpush2.msra.mxu0 0.0
        %2566 = vmatprep.subr.mxu0 0.0
        %2567 = vmatpush2.msra.mxu0 0.0
        %2568 = vmatprep.subr.mxu0 0.0
        %2569 = vmatpush2.msra.mxu0 0.0
        %2570 = vmatprep.subr.mxu0 0.0
        %2571 = vmatpush2.msra.mxu0 0.0
        %2572 = vmatprep.subr.mxu0 0.0
        %2573 = vmatpush2.msra.mxu0 0.0
        %2574 = vmatprep.subr.mxu0 0.0
        %2575 = vmatpush2.msra.mxu0 0.0
        %2576 = vmatprep.subr.mxu0 0.0
        %2577 = vmatpush2.msra.mxu0 0.0
        %2578 = vmatprep.subr.mxu0 0.0
        %2579 = vmatpush2.msra.mxu0 0.0
        %2580 = vmatprep.subr.mxu0 0.0
        %2581 = vmatpush2.msra.mxu0 0.0
        %2582 = vmatprep.subr.mxu0 0.0
        %2583 = vmatpush2.msra.mxu0 0.0
        %2584 = vmatprep.subr.mxu0 0.0
        %2585 = vmatpush2.msra.mxu0 0.0
        %2586 = vmatprep.subr.mxu0 0.0
        %2587 = vmatpush2.msra.mxu0 0.0
        %2588 = vmatprep.subr.mxu0 0.0
        %2589 = vmatpush2.msra.mxu0 0.0
        %2590 = vmatprep.subr.mxu0 0.0
        %2591 = vmatpush2.msra.mxu0 0.0
        %2592 = vmatprep.subr.mxu0 0.0
        %2593 = vmatpush2.msra.mxu0 0.0
        %2594 = vmatprep.mubr.f32.mxu0 0.0
        %2595 = vmatmul.mubr.f32.gmra.mxu0 %v2510
        %v2596 = vpop.f32.mrf.mxu0
        %v2597 = vadd.f32 0.0, %v2596
        %v2598 = vpop.f32.mrf.mxu0
        %2599 = vmatprep.mubr.f32.mxu0 0.0
        %2600 = vmatmul.mubr.f32.gmra.mxu0 %v2512
        %v2601 = vpop.f32.mrf.mxu0
        %v2602 = vadd.f32 0.0, %v2601
        %v2603 = vpop.f32.mrf.mxu0
        %2604 = vmatprep.mubr.f32.mxu0 0.0
        %2605 = vmatmul.mubr.f32.gmra.mxu0 %v2514
        %v2606 = vpop.f32.mrf.mxu0
        %v2607 = vadd.f32 0.0, %v2606
        %v2608 = vpop.f32.mrf.mxu0
        %2609 = vmatprep.mubr.f32.mxu0 0.0
        %2610 = vmatmul.mubr.f32.gmra.mxu0 %v2516
        %v2611 = vpop.f32.mrf.mxu0
        %v2612 = vadd.f32 0.0, %v2611
        %v2613 = vpop.f32.mrf.mxu0
        %2614 = vmatprep.mubr.f32.mxu0 0.0
        %2615 = vmatmul.mubr.f32.gmra.mxu0 %v2518
        %v2616 = vpop.f32.mrf.mxu0
        %v2617 = vadd.f32 0.0, %v2616
        %v2618 = vpop.f32.mrf.mxu0
        %2619 = vmatprep.mubr.f32.mxu0 0.0
        %2620 = vmatmul.mubr.f32.gmra.mxu0 %v2520
        %v2621 = vpop.f32.mrf.mxu0
        %v2622 = vadd.f32 0.0, %v2621
        %v2623 = vpop.f32.mrf.mxu0
        %2624 = vmatprep.mubr.f32.mxu0 0.0
        %2625 = vmatmul.mubr.f32.gmra.mxu0 %v2522
        %v2626 = vpop.f32.mrf.mxu0
        %v2627 = vadd.f32 0.0, %v2626
        %v2628 = vpop.f32.mrf.mxu0
        %2629 = vmatprep.mubr.f32.mxu0 0.0
        %2630 = vmatmul.mubr.f32.gmra.mxu0 %v2524
        %v2631 = vpop.f32.mrf.mxu0
        %v2632 = vadd.f32 0.0, %v2631
        %v2633 = vpop.f32.mrf.mxu0
        %2634 = vmatprep.mubr.f32.mxu0 0.0
        %2635 = vmatmul.mubr.f32.gmra.mxu0 %v2526
        %v2636 = vpop.f32.mrf.mxu0
        %v2637 = vadd.f32 0.0, %v2636
        %v2638 = vpop.f32.mrf.mxu0
        %2639 = vdwg.mxu0
        %v2640 = vadd.f32 %v2477, %v2597
        %v2641 = vadd.f32 %v2478, %v2602
        %v2642 = vadd.f32 %v2479, %v2607
        %v2643 = vadd.f32 %v2480, %v2612
        %v2644 = vadd.f32 %v2481, %v2617
        %v2645 = vadd.f32 %v2482, %v2622
        %v2646 = vadd.f32 %v2483, %v2627
        %v2647 = vadd.f32 %v2484, %v2632
        %v2648 = vadd.f32 %v2485, %v2637
        %2649 = vrot.lane.b32.xlu0 %v224, 68
        %v2650 = vpop.permute.xlu0 %2649
        %2651 = vrot.lane.b32.xlu0 %v225, 68
        %v2652 = vpop.permute.xlu0 %2651
        %2653 = vrot.lane.b32.xlu0 %v226, 68
        %v2654 = vpop.permute.xlu0 %2653
        %2655 = vrot.lane.b32.xlu0 %v227, 68
        %v2656 = vpop.permute.xlu0 %2655
        %2657 = vrot.lane.b32.xlu0 %v228, 68
        %v2658 = vpop.permute.xlu0 %2657
        %2659 = vrot.lane.b32.xlu0 %v229, 68
        %v2660 = vpop.permute.xlu0 %2659
        %2661 = vrot.lane.b32.xlu0 %v230, 68
        %v2662 = vpop.permute.xlu0 %2661
        %2663 = vrot.lane.b32.xlu0 %v231, 68
        %v2664 = vpop.permute.xlu0 %2663
        %2665 = vrot.lane.b32.xlu0 %v232, 68
        %v2666 = vpop.permute.xlu0 %2665
        %2667 = vrot.lane.b32.xlu0 %v223, 113
        %v2668 = vpop.permute.xlu0 %2667
        %2669 = vrot.lane.b32.xlu0 %v261, 113
        %v2670 = vpop.permute.xlu0 %2669
        %vm2671 = vcmask 924672
        %v2672 = vsel %vm2671, %v2668, %v2670
        %v2673 = vsel %vm268, %v2650, 0
        %v2675 = vsel %vm268, %v2652, 0
        %v2677 = vsel %vm268, %v2654, 0
        %v2679 = vsel %vm268, %v2656, 0
        %v2681 = vsel %vm268, %v2658, 0
        %v2683 = vsel %vm268, %v2660, 0
        %v2685 = vsel %vm268, %v2662, 0
        %v2687 = vsel %vm268, %v2664, 0
        %v2689 = vsel %vm268, %v2666, 0
        %v2691 = vsel %vm287, %v2672, 0
        %2693 = vmatprep.subr.mxu0 0.0
        %2694 = vmatpush1.msra.mxu0 0.0
        %2695 = vmatprep.subr.mxu0 0.0
        %2696 = vmatpush1.msra.mxu0 0.0
        %2697 = vmatprep.subr.mxu0 0.0
        %2698 = vmatpush1.msra.mxu0 0.0
        %2699 = vmatprep.subr.mxu0 0.0
        %2700 = vmatpush1.msra.mxu0 0.0
        %2701 = vmatprep.subr.mxu0 0.0
        %2702 = vmatpush1.msra.mxu0 0.0
        %2703 = vmatprep.subr.mxu0 0.0
        %2704 = vmatpush1.msra.mxu0 0.0
        %2705 = vmatprep.subr.mxu0 0.0
        %2706 = vmatpush1.msra.mxu0 0.0
        %2707 = vmatprep.subr.mxu0 0.0
        %2708 = vmatpush1.msra.mxu0 0.0
        %2709 = vmatprep.subr.mxu0 0.0
        %2710 = vmatpush1.msra.mxu0 0.0
        %2711 = vmatprep.subr.mxu0 0.0
        %2712 = vmatpush1.msra.mxu0 0.0
        %2713 = vmatprep.subr.mxu0 0.0
        %2714 = vmatpush1.msra.mxu0 0.0
        %2715 = vmatprep.subr.mxu0 0.0
        %2716 = vmatpush1.msra.mxu0 0.0
        %2717 = vmatprep.subr.mxu0 0.0
        %2718 = vmatpush1.msra.mxu0 0.0
        %2719 = vmatprep.subr.mxu0 0.0
        %2720 = vmatpush1.msra.mxu0 0.0
        %2721 = vmatprep.subr.mxu0 0.0
        %2722 = vmatpush1.msra.mxu0 0.0
        %2723 = vmatprep.subr.mxu0 0.0
        %2724 = vmatpush1.msra.mxu0 %v2691
        %2725 = vmatprep.subr.mxu0 0.0
        %2726 = vmatpush2.msra.mxu0 0.0
        %2727 = vmatprep.subr.mxu0 0.0
        %2728 = vmatpush2.msra.mxu0 0.0
        %2729 = vmatprep.subr.mxu0 0.0
        %2730 = vmatpush2.msra.mxu0 0.0
        %2731 = vmatprep.subr.mxu0 0.0
        %2732 = vmatpush2.msra.mxu0 0.0
        %2733 = vmatprep.subr.mxu0 0.0
        %2734 = vmatpush2.msra.mxu0 0.0
        %2735 = vmatprep.subr.mxu0 0.0
        %2736 = vmatpush2.msra.mxu0 0.0
        %2737 = vmatprep.subr.mxu0 0.0
        %2738 = vmatpush2.msra.mxu0 0.0
        %2739 = vmatprep.subr.mxu0 0.0
        %2740 = vmatpush2.msra.mxu0 0.0
        %2741 = vmatprep.subr.mxu0 0.0
        %2742 = vmatpush2.msra.mxu0 0.0
        %2743 = vmatprep.subr.mxu0 0.0
        %2744 = vmatpush2.msra.mxu0 0.0
        %2745 = vmatprep.subr.mxu0 0.0
        %2746 = vmatpush2.msra.mxu0 0.0
        %2747 = vmatprep.subr.mxu0 0.0
        %2748 = vmatpush2.msra.mxu0 0.0
        %2749 = vmatprep.subr.mxu0 0.0
        %2750 = vmatpush2.msra.mxu0 0.0
        %2751 = vmatprep.subr.mxu0 0.0
        %2752 = vmatpush2.msra.mxu0 0.0
        %2753 = vmatprep.subr.mxu0 0.0
        %2754 = vmatpush2.msra.mxu0 0.0
        %2755 = vmatprep.subr.mxu0 0.0
        %2756 = vmatpush2.msra.mxu0 0.0
        %2757 = vmatprep.mubr.f32.mxu0 0.0
        %2758 = vmatmul.mubr.f32.gmra.mxu0 %v2673
        %v2759 = vpop.f32.mrf.mxu0
        %v2760 = vadd.f32 0.0, %v2759
        %v2761 = vpop.f32.mrf.mxu0
        %2762 = vmatprep.mubr.f32.mxu0 0.0
        %2763 = vmatmul.mubr.f32.gmra.mxu0 %v2675
        %v2764 = vpop.f32.mrf.mxu0
        %v2765 = vadd.f32 0.0, %v2764
        %v2766 = vpop.f32.mrf.mxu0
        %2767 = vmatprep.mubr.f32.mxu0 0.0
        %2768 = vmatmul.mubr.f32.gmra.mxu0 %v2677
        %v2769 = vpop.f32.mrf.mxu0
        %v2770 = vadd.f32 0.0, %v2769
        %v2771 = vpop.f32.mrf.mxu0
        %2772 = vmatprep.mubr.f32.mxu0 0.0
        %2773 = vmatmul.mubr.f32.gmra.mxu0 %v2679
        %v2774 = vpop.f32.mrf.mxu0
        %v2775 = vadd.f32 0.0, %v2774
        %v2776 = vpop.f32.mrf.mxu0
        %2777 = vmatprep.mubr.f32.mxu0 0.0
        %2778 = vmatmul.mubr.f32.gmra.mxu0 %v2681
        %v2779 = vpop.f32.mrf.mxu0
        %v2780 = vadd.f32 0.0, %v2779
        %v2781 = vpop.f32.mrf.mxu0
        %2782 = vmatprep.mubr.f32.mxu0 0.0
        %2783 = vmatmul.mubr.f32.gmra.mxu0 %v2683
        %v2784 = vpop.f32.mrf.mxu0
        %v2785 = vadd.f32 0.0, %v2784
        %v2786 = vpop.f32.mrf.mxu0
        %2787 = vmatprep.mubr.f32.mxu0 0.0
        %2788 = vmatmul.mubr.f32.gmra.mxu0 %v2685
        %v2789 = vpop.f32.mrf.mxu0
        %v2790 = vadd.f32 0.0, %v2789
        %v2791 = vpop.f32.mrf.mxu0
        %2792 = vmatprep.mubr.f32.mxu0 0.0
        %2793 = vmatmul.mubr.f32.gmra.mxu0 %v2687
        %v2794 = vpop.f32.mrf.mxu0
        %v2795 = vadd.f32 0.0, %v2794
        %v2796 = vpop.f32.mrf.mxu0
        %2797 = vmatprep.mubr.f32.mxu0 0.0
        %2798 = vmatmul.mubr.f32.gmra.mxu0 %v2689
        %v2799 = vpop.f32.mrf.mxu0
        %v2800 = vadd.f32 0.0, %v2799
        %v2801 = vpop.f32.mrf.mxu0
        %2802 = vdwg.mxu0
        %v2803 = vadd.f32 %v2640, %v2760
        %v2804 = vadd.f32 %v2641, %v2765
        %v2805 = vadd.f32 %v2642, %v2770
        %v2806 = vadd.f32 %v2643, %v2775
        %v2807 = vadd.f32 %v2644, %v2780
        %v2808 = vadd.f32 %v2645, %v2785
        %v2809 = vadd.f32 %v2646, %v2790
        %v2810 = vadd.f32 %v2647, %v2795
        %v2811 = vadd.f32 %v2648, %v2800
        %2812 = vrot.lane.b32.xlu0 %v224, 64
        %v2813 = vpop.permute.xlu0 %2812
        %2814 = vrot.lane.b32.xlu0 %v225, 64
        %v2815 = vpop.permute.xlu0 %2814
        %2816 = vrot.lane.b32.xlu0 %v226, 64
        %v2817 = vpop.permute.xlu0 %2816
        %2818 = vrot.lane.b32.xlu0 %v227, 64
        %v2819 = vpop.permute.xlu0 %2818
        %2820 = vrot.lane.b32.xlu0 %v228, 64
        %v2821 = vpop.permute.xlu0 %2820
        %2822 = vrot.lane.b32.xlu0 %v229, 64
        %v2823 = vpop.permute.xlu0 %2822
        %2824 = vrot.lane.b32.xlu0 %v230, 64
        %v2825 = vpop.permute.xlu0 %2824
        %2826 = vrot.lane.b32.xlu0 %v231, 64
        %v2827 = vpop.permute.xlu0 %2826
        %2828 = vrot.lane.b32.xlu0 %v232, 64
        %v2829 = vpop.permute.xlu0 %2828
        %2830 = vrot.lane.b32.xlu0 %v223, 112
        %v2831 = vpop.permute.xlu0 %2830
        %2832 = vrot.lane.b32.xlu0 %v261, 112
        %v2833 = vpop.permute.xlu0 %2832
        %vm2834 = vcmask 916480
        %v2835 = vsel %vm2834, %v2831, %v2833
        %v2836 = vsel %vm268, %v2813, 0
        %v2838 = vsel %vm268, %v2815, 0
        %v2840 = vsel %vm268, %v2817, 0
        %v2842 = vsel %vm268, %v2819, 0
        %v2844 = vsel %vm268, %v2821, 0
        %v2846 = vsel %vm268, %v2823, 0
        %v2848 = vsel %vm268, %v2825, 0
        %v2850 = vsel %vm268, %v2827, 0
        %v2852 = vsel %vm268, %v2829, 0
        %v2854 = vsel %vm287, %v2835, 0
        %2856 = vmatprep.subr.mxu0 0.0
        %2857 = vmatpush1.msra.mxu0 0.0
        %2858 = vmatprep.subr.mxu0 0.0
        %2859 = vmatpush1.msra.mxu0 0.0
        %2860 = vmatprep.subr.mxu0 0.0
        %2861 = vmatpush1.msra.mxu0 0.0
        %2862 = vmatprep.subr.mxu0 0.0
        %2863 = vmatpush1.msra.mxu0 0.0
        %2864 = vmatprep.subr.mxu0 0.0
        %2865 = vmatpush1.msra.mxu0 0.0
        %2866 = vmatprep.subr.mxu0 0.0
        %2867 = vmatpush1.msra.mxu0 0.0
        %2868 = vmatprep.subr.mxu0 0.0
        %2869 = vmatpush1.msra.mxu0 0.0
        %2870 = vmatprep.subr.mxu0 0.0
        %2871 = vmatpush1.msra.mxu0 0.0
        %2872 = vmatprep.subr.mxu0 0.0
        %2873 = vmatpush1.msra.mxu0 0.0
        %2874 = vmatprep.subr.mxu0 0.0
        %2875 = vmatpush1.msra.mxu0 0.0
        %2876 = vmatprep.subr.mxu0 0.0
        %2877 = vmatpush1.msra.mxu0 0.0
        %2878 = vmatprep.subr.mxu0 0.0
        %2879 = vmatpush1.msra.mxu0 0.0
        %2880 = vmatprep.subr.mxu0 0.0
        %2881 = vmatpush1.msra.mxu0 0.0
        %2882 = vmatprep.subr.mxu0 0.0
        %2883 = vmatpush1.msra.mxu0 0.0
        %2884 = vmatprep.subr.mxu0 0.0
        %2885 = vmatpush1.msra.mxu0 0.0
        %2886 = vmatprep.subr.mxu0 0.0
        %2887 = vmatpush1.msra.mxu0 %v2854
        %2888 = vmatprep.subr.mxu0 0.0
        %2889 = vmatpush2.msra.mxu0 0.0
        %2890 = vmatprep.subr.mxu0 0.0
        %2891 = vmatpush2.msra.mxu0 0.0
        %2892 = vmatprep.subr.mxu0 0.0
        %2893 = vmatpush2.msra.mxu0 0.0
        %2894 = vmatprep.subr.mxu0 0.0
        %2895 = vmatpush2.msra.mxu0 0.0
        %2896 = vmatprep.subr.mxu0 0.0
        %2897 = vmatpush2.msra.mxu0 0.0
        %2898 = vmatprep.subr.mxu0 0.0
        %2899 = vmatpush2.msra.mxu0 0.0
        %2900 = vmatprep.subr.mxu0 0.0
        %2901 = vmatpush2.msra.mxu0 0.0
        %2902 = vmatprep.subr.mxu0 0.0
        %2903 = vmatpush2.msra.mxu0 0.0
        %2904 = vmatprep.subr.mxu0 0.0
        %2905 = vmatpush2.msra.mxu0 0.0
        %2906 = vmatprep.subr.mxu0 0.0
        %2907 = vmatpush2.msra.mxu0 0.0
        %2908 = vmatprep.subr.mxu0 0.0
        %2909 = vmatpush2.msra.mxu0 0.0
        %2910 = vmatprep.subr.mxu0 0.0
        %2911 = vmatpush2.msra.mxu0 0.0
        %2912 = vmatprep.subr.mxu0 0.0
        %2913 = vmatpush2.msra.mxu0 0.0
        %2914 = vmatprep.subr.mxu0 0.0
        %2915 = vmatpush2.msra.mxu0 0.0
        %2916 = vmatprep.subr.mxu0 0.0
        %2917 = vmatpush2.msra.mxu0 0.0
        %2918 = vmatprep.subr.mxu0 0.0
        %2919 = vmatpush2.msra.mxu0 0.0
        %2920 = vmatprep.mubr.f32.mxu0 0.0
        %2921 = vmatmul.mubr.f32.gmra.mxu0 %v2836
        %v2922 = vpop.f32.mrf.mxu0
        %v2923 = vadd.f32 0.0, %v2922
        %v2924 = vpop.f32.mrf.mxu0
        %2925 = vmatprep.mubr.f32.mxu0 0.0
        %2926 = vmatmul.mubr.f32.gmra.mxu0 %v2838
        %v2927 = vpop.f32.mrf.mxu0
        %v2928 = vadd.f32 0.0, %v2927
        %v2929 = vpop.f32.mrf.mxu0
        %2930 = vmatprep.mubr.f32.mxu0 0.0
        %2931 = vmatmul.mubr.f32.gmra.mxu0 %v2840
        %v2932 = vpop.f32.mrf.mxu0
        %v2933 = vadd.f32 0.0, %v2932
        %v2934 = vpop.f32.mrf.mxu0
        %2935 = vmatprep.mubr.f32.mxu0 0.0
        %2936 = vmatmul.mubr.f32.gmra.mxu0 %v2842
        %v2937 = vpop.f32.mrf.mxu0
        %v2938 = vadd.f32 0.0, %v2937
        %v2939 = vpop.f32.mrf.mxu0
        %2940 = vmatprep.mubr.f32.mxu0 0.0
        %2941 = vmatmul.mubr.f32.gmra.mxu0 %v2844
        %v2942 = vpop.f32.mrf.mxu0
        %v2943 = vadd.f32 0.0, %v2942
        %v2944 = vpop.f32.mrf.mxu0
        %2945 = vmatprep.mubr.f32.mxu0 0.0
        %2946 = vmatmul.mubr.f32.gmra.mxu0 %v2846
        %v2947 = vpop.f32.mrf.mxu0
        %v2948 = vadd.f32 0.0, %v2947
        %v2949 = vpop.f32.mrf.mxu0
        %2950 = vmatprep.mubr.f32.mxu0 0.0
        %2951 = vmatmul.mubr.f32.gmra.mxu0 %v2848
        %v2952 = vpop.f32.mrf.mxu0
        %v2953 = vadd.f32 0.0, %v2952
        %v2954 = vpop.f32.mrf.mxu0
        %2955 = vmatprep.mubr.f32.mxu0 0.0
        %2956 = vmatmul.mubr.f32.gmra.mxu0 %v2850
        %v2957 = vpop.f32.mrf.mxu0
        %v2958 = vadd.f32 0.0, %v2957
        %v2959 = vpop.f32.mrf.mxu0
        %2960 = vmatprep.mubr.f32.mxu0 0.0
        %2961 = vmatmul.mubr.f32.gmra.mxu0 %v2852
        %v2962 = vpop.f32.mrf.mxu0
        %v2963 = vadd.f32 0.0, %v2962
        %v2964 = vpop.f32.mrf.mxu0
        %2965 = vdwg.mxu0
        %v2966 = vadd.f32 %v2803, %v2923
        %v2967 = vadd.f32 %v2804, %v2928
        %v2968 = vadd.f32 %v2805, %v2933
        %v2969 = vadd.f32 %v2806, %v2938
        %v2970 = vadd.f32 %v2807, %v2943
        %v2971 = vadd.f32 %v2808, %v2948
        %v2972 = vadd.f32 %v2809, %v2953
        %v2973 = vadd.f32 %v2810, %v2958
        %v2974 = vadd.f32 %v2811, %v2963
        %2975 = vrot.lane.b32.xlu0 %v224, 60
        %v2976 = vpop.permute.xlu0 %2975
        %2977 = vrot.lane.b32.xlu0 %v225, 60
        %v2978 = vpop.permute.xlu0 %2977
        %2979 = vrot.lane.b32.xlu0 %v226, 60
        %v2980 = vpop.permute.xlu0 %2979
        %2981 = vrot.lane.b32.xlu0 %v227, 60
        %v2982 = vpop.permute.xlu0 %2981
        %2983 = vrot.lane.b32.xlu0 %v228, 60
        %v2984 = vpop.permute.xlu0 %2983
        %2985 = vrot.lane.b32.xlu0 %v229, 60
        %v2986 = vpop.permute.xlu0 %2985
        %2987 = vrot.lane.b32.xlu0 %v230, 60
        %v2988 = vpop.permute.xlu0 %2987
        %2989 = vrot.lane.b32.xlu0 %v231, 60
        %v2990 = vpop.permute.xlu0 %2989
        %2991 = vrot.lane.b32.xlu0 %v232, 60
        %v2992 = vpop.permute.xlu0 %2991
        %2993 = vrot.lane.b32.xlu0 %v223, 111
        %v2994 = vpop.permute.xlu0 %2993
        %2995 = vrot.lane.b32.xlu0 %v261, 111
        %v2996 = vpop.permute.xlu0 %2995
        %vm2997 = vcmask 908288
        %v2998 = vsel %vm2997, %v2994, %v2996
        %v2999 = vsel %vm268, %v2976, 0
        %v3001 = vsel %vm268, %v2978, 0
        %v3003 = vsel %vm268, %v2980, 0
        %v3005 = vsel %vm268, %v2982, 0
        %v3007 = vsel %vm268, %v2984, 0
        %v3009 = vsel %vm268, %v2986, 0
        %v3011 = vsel %vm268, %v2988, 0
        %v3013 = vsel %vm268, %v2990, 0
        %v3015 = vsel %vm268, %v2992, 0
        %v3017 = vsel %vm287, %v2998, 0
        %3019 = vmatprep.subr.mxu0 0.0
        %3020 = vmatpush1.msra.mxu0 0.0
        %3021 = vmatprep.subr.mxu0 0.0
        %3022 = vmatpush1.msra.mxu0 0.0
        %3023 = vmatprep.subr.mxu0 0.0
        %3024 = vmatpush1.msra.mxu0 0.0
        %3025 = vmatprep.subr.mxu0 0.0
        %3026 = vmatpush1.msra.mxu0 0.0
        %3027 = vmatprep.subr.mxu0 0.0
        %3028 = vmatpush1.msra.mxu0 0.0
        %3029 = vmatprep.subr.mxu0 0.0
        %3030 = vmatpush1.msra.mxu0 0.0
        %3031 = vmatprep.subr.mxu0 0.0
        %3032 = vmatpush1.msra.mxu0 0.0
        %3033 = vmatprep.subr.mxu0 0.0
        %3034 = vmatpush1.msra.mxu0 0.0
        %3035 = vmatprep.subr.mxu0 0.0
        %3036 = vmatpush1.msra.mxu0 0.0
        %3037 = vmatprep.subr.mxu0 0.0
        %3038 = vmatpush1.msra.mxu0 0.0
        %3039 = vmatprep.subr.mxu0 0.0
        %3040 = vmatpush1.msra.mxu0 0.0
        %3041 = vmatprep.subr.mxu0 0.0
        %3042 = vmatpush1.msra.mxu0 0.0
        %3043 = vmatprep.subr.mxu0 0.0
        %3044 = vmatpush1.msra.mxu0 0.0
        %3045 = vmatprep.subr.mxu0 0.0
        %3046 = vmatpush1.msra.mxu0 0.0
        %3047 = vmatprep.subr.mxu0 0.0
        %3048 = vmatpush1.msra.mxu0 0.0
        %3049 = vmatprep.subr.mxu0 0.0
        %3050 = vmatpush1.msra.mxu0 %v3017
        %3051 = vmatprep.subr.mxu0 0.0
        %3052 = vmatpush2.msra.mxu0 0.0
        %3053 = vmatprep.subr.mxu0 0.0
        %3054 = vmatpush2.msra.mxu0 0.0
        %3055 = vmatprep.subr.mxu0 0.0
        %3056 = vmatpush2.msra.mxu0 0.0
        %3057 = vmatprep.subr.mxu0 0.0
        %3058 = vmatpush2.msra.mxu0 0.0
        %3059 = vmatprep.subr.mxu0 0.0
        %3060 = vmatpush2.msra.mxu0 0.0
        %3061 = vmatprep.subr.mxu0 0.0
        %3062 = vmatpush2.msra.mxu0 0.0
        %3063 = vmatprep.subr.mxu0 0.0
        %3064 = vmatpush2.msra.mxu0 0.0
        %3065 = vmatprep.subr.mxu0 0.0
        %3066 = vmatpush2.msra.mxu0 0.0
        %3067 = vmatprep.subr.mxu0 0.0
        %3068 = vmatpush2.msra.mxu0 0.0
        %3069 = vmatprep.subr.mxu0 0.0
        %3070 = vmatpush2.msra.mxu0 0.0
        %3071 = vmatprep.subr.mxu0 0.0
        %3072 = vmatpush2.msra.mxu0 0.0
        %3073 = vmatprep.subr.mxu0 0.0
        %3074 = vmatpush2.msra.mxu0 0.0
        %3075 = vmatprep.subr.mxu0 0.0
        %3076 = vmatpush2.msra.mxu0 0.0
        %3077 = vmatprep.subr.mxu0 0.0
        %3078 = vmatpush2.msra.mxu0 0.0
        %3079 = vmatprep.subr.mxu0 0.0
        %3080 = vmatpush2.msra.mxu0 0.0
        %3081 = vmatprep.subr.mxu0 0.0
        %3082 = vmatpush2.msra.mxu0 0.0
        %3083 = vmatprep.mubr.f32.mxu0 0.0
        %3084 = vmatmul.mubr.f32.gmra.mxu0 %v2999
        %v3085 = vpop.f32.mrf.mxu0
        %v3086 = vadd.f32 0.0, %v3085
        %v3087 = vpop.f32.mrf.mxu0
        %3088 = vmatprep.mubr.f32.mxu0 0.0
        %3089 = vmatmul.mubr.f32.gmra.mxu0 %v3001
        %v3090 = vpop.f32.mrf.mxu0
        %v3091 = vadd.f32 0.0, %v3090
        %v3092 = vpop.f32.mrf.mxu0
        %3093 = vmatprep.mubr.f32.mxu0 0.0
        %3094 = vmatmul.mubr.f32.gmra.mxu0 %v3003
        %v3095 = vpop.f32.mrf.mxu0
        %v3096 = vadd.f32 0.0, %v3095
        %v3097 = vpop.f32.mrf.mxu0
        %3098 = vmatprep.mubr.f32.mxu0 0.0
        %3099 = vmatmul.mubr.f32.gmra.mxu0 %v3005
        %v3100 = vpop.f32.mrf.mxu0
        %v3101 = vadd.f32 0.0, %v3100
        %v3102 = vpop.f32.mrf.mxu0
        %3103 = vmatprep.mubr.f32.mxu0 0.0
        %3104 = vmatmul.mubr.f32.gmra.mxu0 %v3007
        %v3105 = vpop.f32.mrf.mxu0
        %v3106 = vadd.f32 0.0, %v3105
        %v3107 = vpop.f32.mrf.mxu0
        %3108 = vmatprep.mubr.f32.mxu0 0.0
        %3109 = vmatmul.mubr.f32.gmra.mxu0 %v3009
        %v3110 = vpop.f32.mrf.mxu0
        %v3111 = vadd.f32 0.0, %v3110
        %v3112 = vpop.f32.mrf.mxu0
        %3113 = vmatprep.mubr.f32.mxu0 0.0
        %3114 = vmatmul.mubr.f32.gmra.mxu0 %v3011
        %v3115 = vpop.f32.mrf.mxu0
        %v3116 = vadd.f32 0.0, %v3115
        %v3117 = vpop.f32.mrf.mxu0
        %3118 = vmatprep.mubr.f32.mxu0 0.0
        %3119 = vmatmul.mubr.f32.gmra.mxu0 %v3013
        %v3120 = vpop.f32.mrf.mxu0
        %v3121 = vadd.f32 0.0, %v3120
        %v3122 = vpop.f32.mrf.mxu0
        %3123 = vmatprep.mubr.f32.mxu0 0.0
        %3124 = vmatmul.mubr.f32.gmra.mxu0 %v3015
        %v3125 = vpop.f32.mrf.mxu0
        %v3126 = vadd.f32 0.0, %v3125
        %v3127 = vpop.f32.mrf.mxu0
        %3128 = vdwg.mxu0
        %v3129 = vadd.f32 %v2966, %v3086
        %v3130 = vadd.f32 %v2967, %v3091
        %v3131 = vadd.f32 %v2968, %v3096
        %v3132 = vadd.f32 %v2969, %v3101
        %v3133 = vadd.f32 %v2970, %v3106
        %v3134 = vadd.f32 %v2971, %v3111
        %v3135 = vadd.f32 %v2972, %v3116
        %v3136 = vadd.f32 %v2973, %v3121
        %v3137 = vadd.f32 %v2974, %v3126
        %3138 = vrot.lane.b32.xlu0 %v224, 56
        %v3139 = vpop.permute.xlu0 %3138
        %3140 = vrot.lane.b32.xlu0 %v225, 56
        %v3141 = vpop.permute.xlu0 %3140
        %3142 = vrot.lane.b32.xlu0 %v226, 56
        %v3143 = vpop.permute.xlu0 %3142
        %3144 = vrot.lane.b32.xlu0 %v227, 56
        %v3145 = vpop.permute.xlu0 %3144
        %3146 = vrot.lane.b32.xlu0 %v228, 56
        %v3147 = vpop.permute.xlu0 %3146
        %3148 = vrot.lane.b32.xlu0 %v229, 56
        %v3149 = vpop.permute.xlu0 %3148
        %3150 = vrot.lane.b32.xlu0 %v230, 56
        %v3151 = vpop.permute.xlu0 %3150
        %3152 = vrot.lane.b32.xlu0 %v231, 56
        %v3153 = vpop.permute.xlu0 %3152
        %3154 = vrot.lane.b32.xlu0 %v232, 56
        %v3155 = vpop.permute.xlu0 %3154
        %3156 = vrot.lane.b32.xlu0 %v223, 110
        %v3157 = vpop.permute.xlu0 %3156
        %3158 = vrot.lane.b32.xlu0 %v261, 110
        %v3159 = vpop.permute.xlu0 %3158
        %vm3160 = vcmask 900096
        %v3161 = vsel %vm3160, %v3157, %v3159
        %v3162 = vsel %vm268, %v3139, 0
        %v3164 = vsel %vm268, %v3141, 0
        %v3166 = vsel %vm268, %v3143, 0
        %v3168 = vsel %vm268, %v3145, 0
        %v3170 = vsel %vm268, %v3147, 0
        %v3172 = vsel %vm268, %v3149, 0
        %v3174 = vsel %vm268, %v3151, 0
        %v3176 = vsel %vm268, %v3153, 0
        %v3178 = vsel %vm268, %v3155, 0
        %v3180 = vsel %vm287, %v3161, 0
        %3182 = vmatprep.subr.mxu0 0.0
        %3183 = vmatpush1.msra.mxu0 0.0
        %3184 = vmatprep.subr.mxu0 0.0
        %3185 = vmatpush1.msra.mxu0 0.0
        %3186 = vmatprep.subr.mxu0 0.0
        %3187 = vmatpush1.msra.mxu0 0.0
        %3188 = vmatprep.subr.mxu0 0.0
        %3189 = vmatpush1.msra.mxu0 0.0
        %3190 = vmatprep.subr.mxu0 0.0
        %3191 = vmatpush1.msra.mxu0 0.0
        %3192 = vmatprep.subr.mxu0 0.0
        %3193 = vmatpush1.msra.mxu0 0.0
        %3194 = vmatprep.subr.mxu0 0.0
        %3195 = vmatpush1.msra.mxu0 0.0
        %3196 = vmatprep.subr.mxu0 0.0
        %3197 = vmatpush1.msra.mxu0 0.0
        %3198 = vmatprep.subr.mxu0 0.0
        %3199 = vmatpush1.msra.mxu0 0.0
        %3200 = vmatprep.subr.mxu0 0.0
        %3201 = vmatpush1.msra.mxu0 0.0
        %3202 = vmatprep.subr.mxu0 0.0
        %3203 = vmatpush1.msra.mxu0 0.0
        %3204 = vmatprep.subr.mxu0 0.0
        %3205 = vmatpush1.msra.mxu0 0.0
        %3206 = vmatprep.subr.mxu0 0.0
        %3207 = vmatpush1.msra.mxu0 0.0
        %3208 = vmatprep.subr.mxu0 0.0
        %3209 = vmatpush1.msra.mxu0 0.0
        %3210 = vmatprep.subr.mxu0 0.0
        %3211 = vmatpush1.msra.mxu0 0.0
        %3212 = vmatprep.subr.mxu0 0.0
        %3213 = vmatpush1.msra.mxu0 %v3180
        %3214 = vmatprep.subr.mxu0 0.0
        %3215 = vmatpush2.msra.mxu0 0.0
        %3216 = vmatprep.subr.mxu0 0.0
        %3217 = vmatpush2.msra.mxu0 0.0
        %3218 = vmatprep.subr.mxu0 0.0
        %3219 = vmatpush2.msra.mxu0 0.0
        %3220 = vmatprep.subr.mxu0 0.0
        %3221 = vmatpush2.msra.mxu0 0.0
        %3222 = vmatprep.subr.mxu0 0.0
        %3223 = vmatpush2.msra.mxu0 0.0
        %3224 = vmatprep.subr.mxu0 0.0
        %3225 = vmatpush2.msra.mxu0 0.0
        %3226 = vmatprep.subr.mxu0 0.0
        %3227 = vmatpush2.msra.mxu0 0.0
        %3228 = vmatprep.subr.mxu0 0.0
        %3229 = vmatpush2.msra.mxu0 0.0
        %3230 = vmatprep.subr.mxu0 0.0
        %3231 = vmatpush2.msra.mxu0 0.0
        %3232 = vmatprep.subr.mxu0 0.0
        %3233 = vmatpush2.msra.mxu0 0.0
        %3234 = vmatprep.subr.mxu0 0.0
        %3235 = vmatpush2.msra.mxu0 0.0
        %3236 = vmatprep.subr.mxu0 0.0
        %3237 = vmatpush2.msra.mxu0 0.0
        %3238 = vmatprep.subr.mxu0 0.0
        %3239 = vmatpush2.msra.mxu0 0.0
        %3240 = vmatprep.subr.mxu0 0.0
        %3241 = vmatpush2.msra.mxu0 0.0
        %3242 = vmatprep.subr.mxu0 0.0
        %3243 = vmatpush2.msra.mxu0 0.0
        %3244 = vmatprep.subr.mxu0 0.0
        %3245 = vmatpush2.msra.mxu0 0.0
        %3246 = vmatprep.mubr.f32.mxu0 0.0
        %3247 = vmatmul.mubr.f32.gmra.mxu0 %v3162
        %v3248 = vpop.f32.mrf.mxu0
        %v3249 = vadd.f32 0.0, %v3248
        %v3250 = vpop.f32.mrf.mxu0
        %3251 = vmatprep.mubr.f32.mxu0 0.0
        %3252 = vmatmul.mubr.f32.gmra.mxu0 %v3164
        %v3253 = vpop.f32.mrf.mxu0
        %v3254 = vadd.f32 0.0, %v3253
        %v3255 = vpop.f32.mrf.mxu0
        %3256 = vmatprep.mubr.f32.mxu0 0.0
        %3257 = vmatmul.mubr.f32.gmra.mxu0 %v3166
        %v3258 = vpop.f32.mrf.mxu0
        %v3259 = vadd.f32 0.0, %v3258
        %v3260 = vpop.f32.mrf.mxu0
        %3261 = vmatprep.mubr.f32.mxu0 0.0
        %3262 = vmatmul.mubr.f32.gmra.mxu0 %v3168
        %v3263 = vpop.f32.mrf.mxu0
        %v3264 = vadd.f32 0.0, %v3263
        %v3265 = vpop.f32.mrf.mxu0
        %3266 = vmatprep.mubr.f32.mxu0 0.0
        %3267 = vmatmul.mubr.f32.gmra.mxu0 %v3170
        %v3268 = vpop.f32.mrf.mxu0
        %v3269 = vadd.f32 0.0, %v3268
        %v3270 = vpop.f32.mrf.mxu0
        %3271 = vmatprep.mubr.f32.mxu0 0.0
        %3272 = vmatmul.mubr.f32.gmra.mxu0 %v3172
        %v3273 = vpop.f32.mrf.mxu0
        %v3274 = vadd.f32 0.0, %v3273
        %v3275 = vpop.f32.mrf.mxu0
        %3276 = vmatprep.mubr.f32.mxu0 0.0
        %3277 = vmatmul.mubr.f32.gmra.mxu0 %v3174
        %v3278 = vpop.f32.mrf.mxu0
        %v3279 = vadd.f32 0.0, %v3278
        %v3280 = vpop.f32.mrf.mxu0
        %3281 = vmatprep.mubr.f32.mxu0 0.0
        %3282 = vmatmul.mubr.f32.gmra.mxu0 %v3176
        %v3283 = vpop.f32.mrf.mxu0
        %v3284 = vadd.f32 0.0, %v3283
        %v3285 = vpop.f32.mrf.mxu0
        %3286 = vmatprep.mubr.f32.mxu0 0.0
        %3287 = vmatmul.mubr.f32.gmra.mxu0 %v3178
        %v3288 = vpop.f32.mrf.mxu0
        %v3289 = vadd.f32 0.0, %v3288
        %v3290 = vpop.f32.mrf.mxu0
        %3291 = vdwg.mxu0
        %v3292 = vadd.f32 %v3129, %v3249
        %v3293 = vadd.f32 %v3130, %v3254
        %v3294 = vadd.f32 %v3131, %v3259
        %v3295 = vadd.f32 %v3132, %v3264
        %v3296 = vadd.f32 %v3133, %v3269
        %v3297 = vadd.f32 %v3134, %v3274
        %v3298 = vadd.f32 %v3135, %v3279
        %v3299 = vadd.f32 %v3136, %v3284
        %v3300 = vadd.f32 %v3137, %v3289
        %3301 = vrot.lane.b32.xlu0 %v224, 52
        %v3302 = vpop.permute.xlu0 %3301
        %3303 = vrot.lane.b32.xlu0 %v225, 52
        %v3304 = vpop.permute.xlu0 %3303
        %3305 = vrot.lane.b32.xlu0 %v226, 52
        %v3306 = vpop.permute.xlu0 %3305
        %3307 = vrot.lane.b32.xlu0 %v227, 52
        %v3308 = vpop.permute.xlu0 %3307
        %3309 = vrot.lane.b32.xlu0 %v228, 52
        %v3310 = vpop.permute.xlu0 %3309
        %3311 = vrot.lane.b32.xlu0 %v229, 52
        %v3312 = vpop.permute.xlu0 %3311
        %3313 = vrot.lane.b32.xlu0 %v230, 52
        %v3314 = vpop.permute.xlu0 %3313
        %3315 = vrot.lane.b32.xlu0 %v231, 52
        %v3316 = vpop.permute.xlu0 %3315
        %3317 = vrot.lane.b32.xlu0 %v232, 52
        %v3318 = vpop.permute.xlu0 %3317
        %3319 = vrot.lane.b32.xlu0 %v223, 109
        %v3320 = vpop.permute.xlu0 %3319
        %3321 = vrot.lane.b32.xlu0 %v261, 109
        %v3322 = vpop.permute.xlu0 %3321
        %vm3323 = vcmask 891904
        %v3324 = vsel %vm3323, %v3320, %v3322
        %v3325 = vsel %vm268, %v3302, 0
        %v3327 = vsel %vm268, %v3304, 0
        %v3329 = vsel %vm268, %v3306, 0
        %v3331 = vsel %vm268, %v3308, 0
        %v3333 = vsel %vm268, %v3310, 0
        %v3335 = vsel %vm268, %v3312, 0
        %v3337 = vsel %vm268, %v3314, 0
        %v3339 = vsel %vm268, %v3316, 0
        %v3341 = vsel %vm268, %v3318, 0
        %v3343 = vsel %vm287, %v3324, 0
        %3345 = vmatprep.subr.mxu0 0.0
        %3346 = vmatpush1.msra.mxu0 0.0
        %3347 = vmatprep.subr.mxu0 0.0
        %3348 = vmatpush1.msra.mxu0 0.0
        %3349 = vmatprep.subr.mxu0 0.0
        %3350 = vmatpush1.msra.mxu0 0.0
        %3351 = vmatprep.subr.mxu0 0.0
        %3352 = vmatpush1.msra.mxu0 0.0
        %3353 = vmatprep.subr.mxu0 0.0
        %3354 = vmatpush1.msra.mxu0 0.0
        %3355 = vmatprep.subr.mxu0 0.0
        %3356 = vmatpush1.msra.mxu0 0.0
        %3357 = vmatprep.subr.mxu0 0.0
        %3358 = vmatpush1.msra.mxu0 0.0
        %3359 = vmatprep.subr.mxu0 0.0
        %3360 = vmatpush1.msra.mxu0 0.0
        %3361 = vmatprep.subr.mxu0 0.0
        %3362 = vmatpush1.msra.mxu0 0.0
        %3363 = vmatprep.subr.mxu0 0.0
        %3364 = vmatpush1.msra.mxu0 0.0
        %3365 = vmatprep.subr.mxu0 0.0
        %3366 = vmatpush1.msra.mxu0 0.0
        %3367 = vmatprep.subr.mxu0 0.0
        %3368 = vmatpush1.msra.mxu0 0.0
        %3369 = vmatprep.subr.mxu0 0.0
        %3370 = vmatpush1.msra.mxu0 0.0
        %3371 = vmatprep.subr.mxu0 0.0
        %3372 = vmatpush1.msra.mxu0 0.0
        %3373 = vmatprep.subr.mxu0 0.0
        %3374 = vmatpush1.msra.mxu0 0.0
        %3375 = vmatprep.subr.mxu0 0.0
        %3376 = vmatpush1.msra.mxu0 %v3343
        %3377 = vmatprep.subr.mxu0 0.0
        %3378 = vmatpush2.msra.mxu0 0.0
        %3379 = vmatprep.subr.mxu0 0.0
        %3380 = vmatpush2.msra.mxu0 0.0
        %3381 = vmatprep.subr.mxu0 0.0
        %3382 = vmatpush2.msra.mxu0 0.0
        %3383 = vmatprep.subr.mxu0 0.0
        %3384 = vmatpush2.msra.mxu0 0.0
        %3385 = vmatprep.subr.mxu0 0.0
        %3386 = vmatpush2.msra.mxu0 0.0
        %3387 = vmatprep.subr.mxu0 0.0
        %3388 = vmatpush2.msra.mxu0 0.0
        %3389 = vmatprep.subr.mxu0 0.0
        %3390 = vmatpush2.msra.mxu0 0.0
        %3391 = vmatprep.subr.mxu0 0.0
        %3392 = vmatpush2.msra.mxu0 0.0
        %3393 = vmatprep.subr.mxu0 0.0
        %3394 = vmatpush2.msra.mxu0 0.0
        %3395 = vmatprep.subr.mxu0 0.0
        %3396 = vmatpush2.msra.mxu0 0.0
        %3397 = vmatprep.subr.mxu0 0.0
        %3398 = vmatpush2.msra.mxu0 0.0
        %3399 = vmatprep.subr.mxu0 0.0
        %3400 = vmatpush2.msra.mxu0 0.0
        %3401 = vmatprep.subr.mxu0 0.0
        %3402 = vmatpush2.msra.mxu0 0.0
        %3403 = vmatprep.subr.mxu0 0.0
        %3404 = vmatpush2.msra.mxu0 0.0
        %3405 = vmatprep.subr.mxu0 0.0
        %3406 = vmatpush2.msra.mxu0 0.0
        %3407 = vmatprep.subr.mxu0 0.0
        %3408 = vmatpush2.msra.mxu0 0.0
        %3409 = vmatprep.mubr.f32.mxu0 0.0
        %3410 = vmatmul.mubr.f32.gmra.mxu0 %v3325
        %v3411 = vpop.f32.mrf.mxu0
        %v3412 = vadd.f32 0.0, %v3411
        %v3413 = vpop.f32.mrf.mxu0
        %3414 = vmatprep.mubr.f32.mxu0 0.0
        %3415 = vmatmul.mubr.f32.gmra.mxu0 %v3327
        %v3416 = vpop.f32.mrf.mxu0
        %v3417 = vadd.f32 0.0, %v3416
        %v3418 = vpop.f32.mrf.mxu0
        %3419 = vmatprep.mubr.f32.mxu0 0.0
        %3420 = vmatmul.mubr.f32.gmra.mxu0 %v3329
        %v3421 = vpop.f32.mrf.mxu0
        %v3422 = vadd.f32 0.0, %v3421
        %v3423 = vpop.f32.mrf.mxu0
        %3424 = vmatprep.mubr.f32.mxu0 0.0
        %3425 = vmatmul.mubr.f32.gmra.mxu0 %v3331
        %v3426 = vpop.f32.mrf.mxu0
        %v3427 = vadd.f32 0.0, %v3426
        %v3428 = vpop.f32.mrf.mxu0
        %3429 = vmatprep.mubr.f32.mxu0 0.0
        %3430 = vmatmul.mubr.f32.gmra.mxu0 %v3333
        %v3431 = vpop.f32.mrf.mxu0
        %v3432 = vadd.f32 0.0, %v3431
        %v3433 = vpop.f32.mrf.mxu0
        %3434 = vmatprep.mubr.f32.mxu0 0.0
        %3435 = vmatmul.mubr.f32.gmra.mxu0 %v3335
        %v3436 = vpop.f32.mrf.mxu0
        %v3437 = vadd.f32 0.0, %v3436
        %v3438 = vpop.f32.mrf.mxu0
        %3439 = vmatprep.mubr.f32.mxu0 0.0
        %3440 = vmatmul.mubr.f32.gmra.mxu0 %v3337
        %v3441 = vpop.f32.mrf.mxu0
        %v3442 = vadd.f32 0.0, %v3441
        %v3443 = vpop.f32.mrf.mxu0
        %3444 = vmatprep.mubr.f32.mxu0 0.0
        %3445 = vmatmul.mubr.f32.gmra.mxu0 %v3339
        %v3446 = vpop.f32.mrf.mxu0
        %v3447 = vadd.f32 0.0, %v3446
        %v3448 = vpop.f32.mrf.mxu0
        %3449 = vmatprep.mubr.f32.mxu0 0.0
        %3450 = vmatmul.mubr.f32.gmra.mxu0 %v3341
        %v3451 = vpop.f32.mrf.mxu0
        %v3452 = vadd.f32 0.0, %v3451
        %v3453 = vpop.f32.mrf.mxu0
        %3454 = vdwg.mxu0
        %v3455 = vadd.f32 %v3292, %v3412
        %v3456 = vadd.f32 %v3293, %v3417
        %v3457 = vadd.f32 %v3294, %v3422
        %v3458 = vadd.f32 %v3295, %v3427
        %v3459 = vadd.f32 %v3296, %v3432
        %v3460 = vadd.f32 %v3297, %v3437
        %v3461 = vadd.f32 %v3298, %v3442
        %v3462 = vadd.f32 %v3299, %v3447
        %v3463 = vadd.f32 %v3300, %v3452
        %3464 = vrot.lane.b32.xlu0 %v224, 48
        %v3465 = vpop.permute.xlu0 %3464
        %3466 = vrot.lane.b32.xlu0 %v225, 48
        %v3467 = vpop.permute.xlu0 %3466
        %3468 = vrot.lane.b32.xlu0 %v226, 48
        %v3469 = vpop.permute.xlu0 %3468
        %3470 = vrot.lane.b32.xlu0 %v227, 48
        %v3471 = vpop.permute.xlu0 %3470
        %3472 = vrot.lane.b32.xlu0 %v228, 48
        %v3473 = vpop.permute.xlu0 %3472
        %3474 = vrot.lane.b32.xlu0 %v229, 48
        %v3475 = vpop.permute.xlu0 %3474
        %3476 = vrot.lane.b32.xlu0 %v230, 48
        %v3477 = vpop.permute.xlu0 %3476
        %3478 = vrot.lane.b32.xlu0 %v231, 48
        %v3479 = vpop.permute.xlu0 %3478
        %3480 = vrot.lane.b32.xlu0 %v232, 48
        %v3481 = vpop.permute.xlu0 %3480
        %3482 = vrot.lane.b32.xlu0 %v223, 108
        %v3483 = vpop.permute.xlu0 %3482
        %3484 = vrot.lane.b32.xlu0 %v261, 108
        %v3485 = vpop.permute.xlu0 %3484
        %vm3486 = vcmask 883712
        %v3487 = vsel %vm3486, %v3483, %v3485
        %v3488 = vsel %vm268, %v3465, 0
        %v3490 = vsel %vm268, %v3467, 0
        %v3492 = vsel %vm268, %v3469, 0
        %v3494 = vsel %vm268, %v3471, 0
        %v3496 = vsel %vm268, %v3473, 0
        %v3498 = vsel %vm268, %v3475, 0
        %v3500 = vsel %vm268, %v3477, 0
        %v3502 = vsel %vm268, %v3479, 0
        %v3504 = vsel %vm268, %v3481, 0
        %v3506 = vsel %vm287, %v3487, 0
        %3508 = vmatprep.subr.mxu0 0.0
        %3509 = vmatpush1.msra.mxu0 0.0
        %3510 = vmatprep.subr.mxu0 0.0
        %3511 = vmatpush1.msra.mxu0 0.0
        %3512 = vmatprep.subr.mxu0 0.0
        %3513 = vmatpush1.msra.mxu0 0.0
        %3514 = vmatprep.subr.mxu0 0.0
        %3515 = vmatpush1.msra.mxu0 0.0
        %3516 = vmatprep.subr.mxu0 0.0
        %3517 = vmatpush1.msra.mxu0 0.0
        %3518 = vmatprep.subr.mxu0 0.0
        %3519 = vmatpush1.msra.mxu0 0.0
        %3520 = vmatprep.subr.mxu0 0.0
        %3521 = vmatpush1.msra.mxu0 0.0
        %3522 = vmatprep.subr.mxu0 0.0
        %3523 = vmatpush1.msra.mxu0 0.0
        %3524 = vmatprep.subr.mxu0 0.0
        %3525 = vmatpush1.msra.mxu0 0.0
        %3526 = vmatprep.subr.mxu0 0.0
        %3527 = vmatpush1.msra.mxu0 0.0
        %3528 = vmatprep.subr.mxu0 0.0
        %3529 = vmatpush1.msra.mxu0 0.0
        %3530 = vmatprep.subr.mxu0 0.0
        %3531 = vmatpush1.msra.mxu0 0.0
        %3532 = vmatprep.subr.mxu0 0.0
        %3533 = vmatpush1.msra.mxu0 0.0
        %3534 = vmatprep.subr.mxu0 0.0
        %3535 = vmatpush1.msra.mxu0 0.0
        %3536 = vmatprep.subr.mxu0 0.0
        %3537 = vmatpush1.msra.mxu0 0.0
        %3538 = vmatprep.subr.mxu0 0.0
        %3539 = vmatpush1.msra.mxu0 %v3506
        %3540 = vmatprep.subr.mxu0 0.0
        %3541 = vmatpush2.msra.mxu0 0.0
        %3542 = vmatprep.subr.mxu0 0.0
        %3543 = vmatpush2.msra.mxu0 0.0
        %3544 = vmatprep.subr.mxu0 0.0
        %3545 = vmatpush2.msra.mxu0 0.0
        %3546 = vmatprep.subr.mxu0 0.0
        %3547 = vmatpush2.msra.mxu0 0.0
        %3548 = vmatprep.subr.mxu0 0.0
        %3549 = vmatpush2.msra.mxu0 0.0
        %3550 = vmatprep.subr.mxu0 0.0
        %3551 = vmatpush2.msra.mxu0 0.0
        %3552 = vmatprep.subr.mxu0 0.0
        %3553 = vmatpush2.msra.mxu0 0.0
        %3554 = vmatprep.subr.mxu0 0.0
        %3555 = vmatpush2.msra.mxu0 0.0
        %3556 = vmatprep.subr.mxu0 0.0
        %3557 = vmatpush2.msra.mxu0 0.0
        %3558 = vmatprep.subr.mxu0 0.0
        %3559 = vmatpush2.msra.mxu0 0.0
        %3560 = vmatprep.subr.mxu0 0.0
        %3561 = vmatpush2.msra.mxu0 0.0
        %3562 = vmatprep.subr.mxu0 0.0
        %3563 = vmatpush2.msra.mxu0 0.0
        %3564 = vmatprep.subr.mxu0 0.0
        %3565 = vmatpush2.msra.mxu0 0.0
        %3566 = vmatprep.subr.mxu0 0.0
        %3567 = vmatpush2.msra.mxu0 0.0
        %3568 = vmatprep.subr.mxu0 0.0
        %3569 = vmatpush2.msra.mxu0 0.0
        %3570 = vmatprep.subr.mxu0 0.0
        %3571 = vmatpush2.msra.mxu0 0.0
        %3572 = vmatprep.mubr.f32.mxu0 0.0
        %3573 = vmatmul.mubr.f32.gmra.mxu0 %v3488
        %v3574 = vpop.f32.mrf.mxu0
        %v3575 = vadd.f32 0.0, %v3574
        %v3576 = vpop.f32.mrf.mxu0
        %3577 = vmatprep.mubr.f32.mxu0 0.0
        %3578 = vmatmul.mubr.f32.gmra.mxu0 %v3490
        %v3579 = vpop.f32.mrf.mxu0
        %v3580 = vadd.f32 0.0, %v3579
        %v3581 = vpop.f32.mrf.mxu0
        %3582 = vmatprep.mubr.f32.mxu0 0.0
        %3583 = vmatmul.mubr.f32.gmra.mxu0 %v3492
        %v3584 = vpop.f32.mrf.mxu0
        %v3585 = vadd.f32 0.0, %v3584
        %v3586 = vpop.f32.mrf.mxu0
        %3587 = vmatprep.mubr.f32.mxu0 0.0
        %3588 = vmatmul.mubr.f32.gmra.mxu0 %v3494
        %v3589 = vpop.f32.mrf.mxu0
        %v3590 = vadd.f32 0.0, %v3589
        %v3591 = vpop.f32.mrf.mxu0
        %3592 = vmatprep.mubr.f32.mxu0 0.0
        %3593 = vmatmul.mubr.f32.gmra.mxu0 %v3496
        %v3594 = vpop.f32.mrf.mxu0
        %v3595 = vadd.f32 0.0, %v3594
        %v3596 = vpop.f32.mrf.mxu0
        %3597 = vmatprep.mubr.f32.mxu0 0.0
        %3598 = vmatmul.mubr.f32.gmra.mxu0 %v3498
        %v3599 = vpop.f32.mrf.mxu0
        %v3600 = vadd.f32 0.0, %v3599
        %v3601 = vpop.f32.mrf.mxu0
        %3602 = vmatprep.mubr.f32.mxu0 0.0
        %3603 = vmatmul.mubr.f32.gmra.mxu0 %v3500
        %v3604 = vpop.f32.mrf.mxu0
        %v3605 = vadd.f32 0.0, %v3604
        %v3606 = vpop.f32.mrf.mxu0
        %3607 = vmatprep.mubr.f32.mxu0 0.0
        %3608 = vmatmul.mubr.f32.gmra.mxu0 %v3502
        %v3609 = vpop.f32.mrf.mxu0
        %v3610 = vadd.f32 0.0, %v3609
        %v3611 = vpop.f32.mrf.mxu0
        %3612 = vmatprep.mubr.f32.mxu0 0.0
        %3613 = vmatmul.mubr.f32.gmra.mxu0 %v3504
        %v3614 = vpop.f32.mrf.mxu0
        %v3615 = vadd.f32 0.0, %v3614
        %v3616 = vpop.f32.mrf.mxu0
        %3617 = vdwg.mxu0
        %v3618 = vadd.f32 %v3455, %v3575
        %v3619 = vadd.f32 %v3456, %v3580
        %v3620 = vadd.f32 %v3457, %v3585
        %v3621 = vadd.f32 %v3458, %v3590
        %v3622 = vadd.f32 %v3459, %v3595
        %v3623 = vadd.f32 %v3460, %v3600
        %v3624 = vadd.f32 %v3461, %v3605
        %v3625 = vadd.f32 %v3462, %v3610
        %v3626 = vadd.f32 %v3463, %v3615
        %3627 = vrot.lane.b32.xlu0 %v224, 44
        %v3628 = vpop.permute.xlu0 %3627
        %3629 = vrot.lane.b32.xlu0 %v225, 44
        %v3630 = vpop.permute.xlu0 %3629
        %3631 = vrot.lane.b32.xlu0 %v226, 44
        %v3632 = vpop.permute.xlu0 %3631
        %3633 = vrot.lane.b32.xlu0 %v227, 44
        %v3634 = vpop.permute.xlu0 %3633
        %3635 = vrot.lane.b32.xlu0 %v228, 44
        %v3636 = vpop.permute.xlu0 %3635
        %3637 = vrot.lane.b32.xlu0 %v229, 44
        %v3638 = vpop.permute.xlu0 %3637
        %3639 = vrot.lane.b32.xlu0 %v230, 44
        %v3640 = vpop.permute.xlu0 %3639
        %3641 = vrot.lane.b32.xlu0 %v231, 44
        %v3642 = vpop.permute.xlu0 %3641
        %3643 = vrot.lane.b32.xlu0 %v232, 44
        %v3644 = vpop.permute.xlu0 %3643
        %3645 = vrot.lane.b32.xlu0 %v223, 107
        %v3646 = vpop.permute.xlu0 %3645
        %3647 = vrot.lane.b32.xlu0 %v261, 107
        %v3648 = vpop.permute.xlu0 %3647
        %vm3649 = vcmask 875520
        %v3650 = vsel %vm3649, %v3646, %v3648
        %v3651 = vsel %vm268, %v3628, 0
        %v3653 = vsel %vm268, %v3630, 0
        %v3655 = vsel %vm268, %v3632, 0
        %v3657 = vsel %vm268, %v3634, 0
        %v3659 = vsel %vm268, %v3636, 0
        %v3661 = vsel %vm268, %v3638, 0
        %v3663 = vsel %vm268, %v3640, 0
        %v3665 = vsel %vm268, %v3642, 0
        %v3667 = vsel %vm268, %v3644, 0
        %v3669 = vsel %vm287, %v3650, 0
        %3671 = vmatprep.subr.mxu0 0.0
        %3672 = vmatpush1.msra.mxu0 0.0
        %3673 = vmatprep.subr.mxu0 0.0
        %3674 = vmatpush1.msra.mxu0 0.0
        %3675 = vmatprep.subr.mxu0 0.0
        %3676 = vmatpush1.msra.mxu0 0.0
        %3677 = vmatprep.subr.mxu0 0.0
        %3678 = vmatpush1.msra.mxu0 0.0
        %3679 = vmatprep.subr.mxu0 0.0
        %3680 = vmatpush1.msra.mxu0 0.0
        %3681 = vmatprep.subr.mxu0 0.0
        %3682 = vmatpush1.msra.mxu0 0.0
        %3683 = vmatprep.subr.mxu0 0.0
        %3684 = vmatpush1.msra.mxu0 0.0
        %3685 = vmatprep.subr.mxu0 0.0
        %3686 = vmatpush1.msra.mxu0 0.0
        %3687 = vmatprep.subr.mxu0 0.0
        %3688 = vmatpush1.msra.mxu0 0.0
        %3689 = vmatprep.subr.mxu0 0.0
        %3690 = vmatpush1.msra.mxu0 0.0
        %3691 = vmatprep.subr.mxu0 0.0
        %3692 = vmatpush1.msra.mxu0 0.0
        %3693 = vmatprep.subr.mxu0 0.0
        %3694 = vmatpush1.msra.mxu0 0.0
        %3695 = vmatprep.subr.mxu0 0.0
        %3696 = vmatpush1.msra.mxu0 0.0
        %3697 = vmatprep.subr.mxu0 0.0
        %3698 = vmatpush1.msra.mxu0 0.0
        %3699 = vmatprep.subr.mxu0 0.0
        %3700 = vmatpush1.msra.mxu0 0.0
        %3701 = vmatprep.subr.mxu0 0.0
        %3702 = vmatpush1.msra.mxu0 %v3669
        %3703 = vmatprep.subr.mxu0 0.0
        %3704 = vmatpush2.msra.mxu0 0.0
        %3705 = vmatprep.subr.mxu0 0.0
        %3706 = vmatpush2.msra.mxu0 0.0
        %3707 = vmatprep.subr.mxu0 0.0
        %3708 = vmatpush2.msra.mxu0 0.0
        %3709 = vmatprep.subr.mxu0 0.0
        %3710 = vmatpush2.msra.mxu0 0.0
        %3711 = vmatprep.subr.mxu0 0.0
        %3712 = vmatpush2.msra.mxu0 0.0
        %3713 = vmatprep.subr.mxu0 0.0
        %3714 = vmatpush2.msra.mxu0 0.0
        %3715 = vmatprep.subr.mxu0 0.0
        %3716 = vmatpush2.msra.mxu0 0.0
        %3717 = vmatprep.subr.mxu0 0.0
        %3718 = vmatpush2.msra.mxu0 0.0
        %3719 = vmatprep.subr.mxu0 0.0
        %3720 = vmatpush2.msra.mxu0 0.0
        %3721 = vmatprep.subr.mxu0 0.0
        %3722 = vmatpush2.msra.mxu0 0.0
        %3723 = vmatprep.subr.mxu0 0.0
        %3724 = vmatpush2.msra.mxu0 0.0
        %3725 = vmatprep.subr.mxu0 0.0
        %3726 = vmatpush2.msra.mxu0 0.0
        %3727 = vmatprep.subr.mxu0 0.0
        %3728 = vmatpush2.msra.mxu0 0.0
        %3729 = vmatprep.subr.mxu0 0.0
        %3730 = vmatpush2.msra.mxu0 0.0
        %3731 = vmatprep.subr.mxu0 0.0
        %3732 = vmatpush2.msra.mxu0 0.0
        %3733 = vmatprep.subr.mxu0 0.0
        %3734 = vmatpush2.msra.mxu0 0.0
        %3735 = vmatprep.mubr.f32.mxu0 0.0
        %3736 = vmatmul.mubr.f32.gmra.mxu0 %v3651
        %v3737 = vpop.f32.mrf.mxu0
        %v3738 = vadd.f32 0.0, %v3737
        %v3739 = vpop.f32.mrf.mxu0
        %3740 = vmatprep.mubr.f32.mxu0 0.0
        %3741 = vmatmul.mubr.f32.gmra.mxu0 %v3653
        %v3742 = vpop.f32.mrf.mxu0
        %v3743 = vadd.f32 0.0, %v3742
        %v3744 = vpop.f32.mrf.mxu0
        %3745 = vmatprep.mubr.f32.mxu0 0.0
        %3746 = vmatmul.mubr.f32.gmra.mxu0 %v3655
        %v3747 = vpop.f32.mrf.mxu0
        %v3748 = vadd.f32 0.0, %v3747
        %v3749 = vpop.f32.mrf.mxu0
        %3750 = vmatprep.mubr.f32.mxu0 0.0
        %3751 = vmatmul.mubr.f32.gmra.mxu0 %v3657
        %v3752 = vpop.f32.mrf.mxu0
        %v3753 = vadd.f32 0.0, %v3752
        %v3754 = vpop.f32.mrf.mxu0
        %3755 = vmatprep.mubr.f32.mxu0 0.0
        %3756 = vmatmul.mubr.f32.gmra.mxu0 %v3659
        %v3757 = vpop.f32.mrf.mxu0
        %v3758 = vadd.f32 0.0, %v3757
        %v3759 = vpop.f32.mrf.mxu0
        %3760 = vmatprep.mubr.f32.mxu0 0.0
        %3761 = vmatmul.mubr.f32.gmra.mxu0 %v3661
        %v3762 = vpop.f32.mrf.mxu0
        %v3763 = vadd.f32 0.0, %v3762
        %v3764 = vpop.f32.mrf.mxu0
        %3765 = vmatprep.mubr.f32.mxu0 0.0
        %3766 = vmatmul.mubr.f32.gmra.mxu0 %v3663
        %v3767 = vpop.f32.mrf.mxu0
        %v3768 = vadd.f32 0.0, %v3767
        %v3769 = vpop.f32.mrf.mxu0
        %3770 = vmatprep.mubr.f32.mxu0 0.0
        %3771 = vmatmul.mubr.f32.gmra.mxu0 %v3665
        %v3772 = vpop.f32.mrf.mxu0
        %v3773 = vadd.f32 0.0, %v3772
        %v3774 = vpop.f32.mrf.mxu0
        %3775 = vmatprep.mubr.f32.mxu0 0.0
        %3776 = vmatmul.mubr.f32.gmra.mxu0 %v3667
        %v3777 = vpop.f32.mrf.mxu0
        %v3778 = vadd.f32 0.0, %v3777
        %v3779 = vpop.f32.mrf.mxu0
        %3780 = vdwg.mxu0
        %v3781 = vadd.f32 %v3618, %v3738
        %v3782 = vadd.f32 %v3619, %v3743
        %v3783 = vadd.f32 %v3620, %v3748
        %v3784 = vadd.f32 %v3621, %v3753
        %v3785 = vadd.f32 %v3622, %v3758
        %v3786 = vadd.f32 %v3623, %v3763
        %v3787 = vadd.f32 %v3624, %v3768
        %v3788 = vadd.f32 %v3625, %v3773
        %v3789 = vadd.f32 %v3626, %v3778
        %3790 = vrot.lane.b32.xlu0 %v224, 40
        %v3791 = vpop.permute.xlu0 %3790
        %3792 = vrot.lane.b32.xlu0 %v225, 40
        %v3793 = vpop.permute.xlu0 %3792
        %3794 = vrot.lane.b32.xlu0 %v226, 40
        %v3795 = vpop.permute.xlu0 %3794
        %3796 = vrot.lane.b32.xlu0 %v227, 40
        %v3797 = vpop.permute.xlu0 %3796
        %3798 = vrot.lane.b32.xlu0 %v228, 40
        %v3799 = vpop.permute.xlu0 %3798
        %3800 = vrot.lane.b32.xlu0 %v229, 40
        %v3801 = vpop.permute.xlu0 %3800
        %3802 = vrot.lane.b32.xlu0 %v230, 40
        %v3803 = vpop.permute.xlu0 %3802
        %3804 = vrot.lane.b32.xlu0 %v231, 40
        %v3805 = vpop.permute.xlu0 %3804
        %3806 = vrot.lane.b32.xlu0 %v232, 40
        %v3807 = vpop.permute.xlu0 %3806
        %3808 = vrot.lane.b32.xlu0 %v223, 106
        %v3809 = vpop.permute.xlu0 %3808
        %3810 = vrot.lane.b32.xlu0 %v261, 106
        %v3811 = vpop.permute.xlu0 %3810
        %vm3812 = vcmask 867328
        %v3813 = vsel %vm3812, %v3809, %v3811
        %v3814 = vsel %vm268, %v3791, 0
        %v3816 = vsel %vm268, %v3793, 0
        %v3818 = vsel %vm268, %v3795, 0
        %v3820 = vsel %vm268, %v3797, 0
        %v3822 = vsel %vm268, %v3799, 0
        %v3824 = vsel %vm268, %v3801, 0
        %v3826 = vsel %vm268, %v3803, 0
        %v3828 = vsel %vm268, %v3805, 0
        %v3830 = vsel %vm268, %v3807, 0
        %v3832 = vsel %vm287, %v3813, 0
        %3834 = vmatprep.subr.mxu0 0.0
        %3835 = vmatpush1.msra.mxu0 0.0
        %3836 = vmatprep.subr.mxu0 0.0
        %3837 = vmatpush1.msra.mxu0 0.0
        %3838 = vmatprep.subr.mxu0 0.0
        %3839 = vmatpush1.msra.mxu0 0.0
        %3840 = vmatprep.subr.mxu0 0.0
        %3841 = vmatpush1.msra.mxu0 0.0
        %3842 = vmatprep.subr.mxu0 0.0
        %3843 = vmatpush1.msra.mxu0 0.0
        %3844 = vmatprep.subr.mxu0 0.0
        %3845 = vmatpush1.msra.mxu0 0.0
        %3846 = vmatprep.subr.mxu0 0.0
        %3847 = vmatpush1.msra.mxu0 0.0
        %3848 = vmatprep.subr.mxu0 0.0
        %3849 = vmatpush1.msra.mxu0 0.0
        %3850 = vmatprep.subr.mxu0 0.0
        %3851 = vmatpush1.msra.mxu0 0.0
        %3852 = vmatprep.subr.mxu0 0.0
        %3853 = vmatpush1.msra.mxu0 0.0
        %3854 = vmatprep.subr.mxu0 0.0
        %3855 = vmatpush1.msra.mxu0 0.0
        %3856 = vmatprep.subr.mxu0 0.0
        %3857 = vmatpush1.msra.mxu0 0.0
        %3858 = vmatprep.subr.mxu0 0.0
        %3859 = vmatpush1.msra.mxu0 0.0
        %3860 = vmatprep.subr.mxu0 0.0
        %3861 = vmatpush1.msra.mxu0 0.0
        %3862 = vmatprep.subr.mxu0 0.0
        %3863 = vmatpush1.msra.mxu0 0.0
        %3864 = vmatprep.subr.mxu0 0.0
        %3865 = vmatpush1.msra.mxu0 %v3832
        %3866 = vmatprep.subr.mxu0 0.0
        %3867 = vmatpush2.msra.mxu0 0.0
        %3868 = vmatprep.subr.mxu0 0.0
        %3869 = vmatpush2.msra.mxu0 0.0
        %3870 = vmatprep.subr.mxu0 0.0
        %3871 = vmatpush2.msra.mxu0 0.0
        %3872 = vmatprep.subr.mxu0 0.0
        %3873 = vmatpush2.msra.mxu0 0.0
        %3874 = vmatprep.subr.mxu0 0.0
        %3875 = vmatpush2.msra.mxu0 0.0
        %3876 = vmatprep.subr.mxu0 0.0
        %3877 = vmatpush2.msra.mxu0 0.0
        %3878 = vmatprep.subr.mxu0 0.0
        %3879 = vmatpush2.msra.mxu0 0.0
        %3880 = vmatprep.subr.mxu0 0.0
        %3881 = vmatpush2.msra.mxu0 0.0
        %3882 = vmatprep.subr.mxu0 0.0
        %3883 = vmatpush2.msra.mxu0 0.0
        %3884 = vmatprep.subr.mxu0 0.0
        %3885 = vmatpush2.msra.mxu0 0.0
        %3886 = vmatprep.subr.mxu0 0.0
        %3887 = vmatpush2.msra.mxu0 0.0
        %3888 = vmatprep.subr.mxu0 0.0
        %3889 = vmatpush2.msra.mxu0 0.0
        %3890 = vmatprep.subr.mxu0 0.0
        %3891 = vmatpush2.msra.mxu0 0.0
        %3892 = vmatprep.subr.mxu0 0.0
        %3893 = vmatpush2.msra.mxu0 0.0
        %3894 = vmatprep.subr.mxu0 0.0
        %3895 = vmatpush2.msra.mxu0 0.0
        %3896 = vmatprep.subr.mxu0 0.0
        %3897 = vmatpush2.msra.mxu0 0.0
        %3898 = vmatprep.mubr.f32.mxu0 0.0
        %3899 = vmatmul.mubr.f32.gmra.mxu0 %v3814
        %v3900 = vpop.f32.mrf.mxu0
        %v3901 = vadd.f32 0.0, %v3900
        %v3902 = vpop.f32.mrf.mxu0
        %3903 = vmatprep.mubr.f32.mxu0 0.0
        %3904 = vmatmul.mubr.f32.gmra.mxu0 %v3816
        %v3905 = vpop.f32.mrf.mxu0
        %v3906 = vadd.f32 0.0, %v3905
        %v3907 = vpop.f32.mrf.mxu0
        %3908 = vmatprep.mubr.f32.mxu0 0.0
        %3909 = vmatmul.mubr.f32.gmra.mxu0 %v3818
        %v3910 = vpop.f32.mrf.mxu0
        %v3911 = vadd.f32 0.0, %v3910
        %v3912 = vpop.f32.mrf.mxu0
        %3913 = vmatprep.mubr.f32.mxu0 0.0
        %3914 = vmatmul.mubr.f32.gmra.mxu0 %v3820
        %v3915 = vpop.f32.mrf.mxu0
        %v3916 = vadd.f32 0.0, %v3915
        %v3917 = vpop.f32.mrf.mxu0
        %3918 = vmatprep.mubr.f32.mxu0 0.0
        %3919 = vmatmul.mubr.f32.gmra.mxu0 %v3822
        %v3920 = vpop.f32.mrf.mxu0
        %v3921 = vadd.f32 0.0, %v3920
        %v3922 = vpop.f32.mrf.mxu0
        %3923 = vmatprep.mubr.f32.mxu0 0.0
        %3924 = vmatmul.mubr.f32.gmra.mxu0 %v3824
        %v3925 = vpop.f32.mrf.mxu0
        %v3926 = vadd.f32 0.0, %v3925
        %v3927 = vpop.f32.mrf.mxu0
        %3928 = vmatprep.mubr.f32.mxu0 0.0
        %3929 = vmatmul.mubr.f32.gmra.mxu0 %v3826
        %v3930 = vpop.f32.mrf.mxu0
        %v3931 = vadd.f32 0.0, %v3930
        %v3932 = vpop.f32.mrf.mxu0
        %3933 = vmatprep.mubr.f32.mxu0 0.0
        %3934 = vmatmul.mubr.f32.gmra.mxu0 %v3828
        %v3935 = vpop.f32.mrf.mxu0
        %v3936 = vadd.f32 0.0, %v3935
        %v3937 = vpop.f32.mrf.mxu0
        %3938 = vmatprep.mubr.f32.mxu0 0.0
        %3939 = vmatmul.mubr.f32.gmra.mxu0 %v3830
        %v3940 = vpop.f32.mrf.mxu0
        %v3941 = vadd.f32 0.0, %v3940
        %v3942 = vpop.f32.mrf.mxu0
        %3943 = vdwg.mxu0
        %v3944 = vadd.f32 %v3781, %v3901
        %v3945 = vadd.f32 %v3782, %v3906
        %v3946 = vadd.f32 %v3783, %v3911
        %v3947 = vadd.f32 %v3784, %v3916
        %v3948 = vadd.f32 %v3785, %v3921
        %v3949 = vadd.f32 %v3786, %v3926
        %v3950 = vadd.f32 %v3787, %v3931
        %v3951 = vadd.f32 %v3788, %v3936
        %v3952 = vadd.f32 %v3789, %v3941
        %3953 = vrot.lane.b32.xlu0 %v224, 36
        %v3954 = vpop.permute.xlu0 %3953
        %3955 = vrot.lane.b32.xlu0 %v225, 36
        %v3956 = vpop.permute.xlu0 %3955
        %3957 = vrot.lane.b32.xlu0 %v226, 36
        %v3958 = vpop.permute.xlu0 %3957
        %3959 = vrot.lane.b32.xlu0 %v227, 36
        %v3960 = vpop.permute.xlu0 %3959
        %3961 = vrot.lane.b32.xlu0 %v228, 36
        %v3962 = vpop.permute.xlu0 %3961
        %3963 = vrot.lane.b32.xlu0 %v229, 36
        %v3964 = vpop.permute.xlu0 %3963
        %3965 = vrot.lane.b32.xlu0 %v230, 36
        %v3966 = vpop.permute.xlu0 %3965
        %3967 = vrot.lane.b32.xlu0 %v231, 36
        %v3968 = vpop.permute.xlu0 %3967
        %3969 = vrot.lane.b32.xlu0 %v232, 36
        %v3970 = vpop.permute.xlu0 %3969
        %3971 = vrot.lane.b32.xlu0 %v223, 105
        %v3972 = vpop.permute.xlu0 %3971
        %3973 = vrot.lane.b32.xlu0 %v261, 105
        %v3974 = vpop.permute.xlu0 %3973
        %vm3975 = vcmask 859136
        %v3976 = vsel %vm3975, %v3972, %v3974
        %v3977 = vsel %vm268, %v3954, 0
        %v3979 = vsel %vm268, %v3956, 0
        %v3981 = vsel %vm268, %v3958, 0
        %v3983 = vsel %vm268, %v3960, 0
        %v3985 = vsel %vm268, %v3962, 0
        %v3987 = vsel %vm268, %v3964, 0
        %v3989 = vsel %vm268, %v3966, 0
        %v3991 = vsel %vm268, %v3968, 0
        %v3993 = vsel %vm268, %v3970, 0
        %v3995 = vsel %vm287, %v3976, 0
        %3997 = vmatprep.subr.mxu0 0.0
        %3998 = vmatpush1.msra.mxu0 0.0
        %3999 = vmatprep.subr.mxu0 0.0
        %4000 = vmatpush1.msra.mxu0 0.0
        %4001 = vmatprep.subr.mxu0 0.0
        %4002 = vmatpush1.msra.mxu0 0.0
        %4003 = vmatprep.subr.mxu0 0.0
        %4004 = vmatpush1.msra.mxu0 0.0
        %4005 = vmatprep.subr.mxu0 0.0
        %4006 = vmatpush1.msra.mxu0 0.0
        %4007 = vmatprep.subr.mxu0 0.0
        %4008 = vmatpush1.msra.mxu0 0.0
        %4009 = vmatprep.subr.mxu0 0.0
        %4010 = vmatpush1.msra.mxu0 0.0
        %4011 = vmatprep.subr.mxu0 0.0
        %4012 = vmatpush1.msra.mxu0 0.0
        %4013 = vmatprep.subr.mxu0 0.0
        %4014 = vmatpush1.msra.mxu0 0.0
        %4015 = vmatprep.subr.mxu0 0.0
        %4016 = vmatpush1.msra.mxu0 0.0
        %4017 = vmatprep.subr.mxu0 0.0
        %4018 = vmatpush1.msra.mxu0 0.0
        %4019 = vmatprep.subr.mxu0 0.0
        %4020 = vmatpush1.msra.mxu0 0.0
        %4021 = vmatprep.subr.mxu0 0.0
        %4022 = vmatpush1.msra.mxu0 0.0
        %4023 = vmatprep.subr.mxu0 0.0
        %4024 = vmatpush1.msra.mxu0 0.0
        %4025 = vmatprep.subr.mxu0 0.0
        %4026 = vmatpush1.msra.mxu0 0.0
        %4027 = vmatprep.subr.mxu0 0.0
        %4028 = vmatpush1.msra.mxu0 %v3995
        %4029 = vmatprep.subr.mxu0 0.0
        %4030 = vmatpush2.msra.mxu0 0.0
        %4031 = vmatprep.subr.mxu0 0.0
        %4032 = vmatpush2.msra.mxu0 0.0
        %4033 = vmatprep.subr.mxu0 0.0
        %4034 = vmatpush2.msra.mxu0 0.0
        %4035 = vmatprep.subr.mxu0 0.0
        %4036 = vmatpush2.msra.mxu0 0.0
        %4037 = vmatprep.subr.mxu0 0.0
        %4038 = vmatpush2.msra.mxu0 0.0
        %4039 = vmatprep.subr.mxu0 0.0
        %4040 = vmatpush2.msra.mxu0 0.0
        %4041 = vmatprep.subr.mxu0 0.0
        %4042 = vmatpush2.msra.mxu0 0.0
        %4043 = vmatprep.subr.mxu0 0.0
        %4044 = vmatpush2.msra.mxu0 0.0
        %4045 = vmatprep.subr.mxu0 0.0
        %4046 = vmatpush2.msra.mxu0 0.0
        %4047 = vmatprep.subr.mxu0 0.0
        %4048 = vmatpush2.msra.mxu0 0.0
        %4049 = vmatprep.subr.mxu0 0.0
        %4050 = vmatpush2.msra.mxu0 0.0
        %4051 = vmatprep.subr.mxu0 0.0
        %4052 = vmatpush2.msra.mxu0 0.0
        %4053 = vmatprep.subr.mxu0 0.0
        %4054 = vmatpush2.msra.mxu0 0.0
        %4055 = vmatprep.subr.mxu0 0.0
        %4056 = vmatpush2.msra.mxu0 0.0
        %4057 = vmatprep.subr.mxu0 0.0
        %4058 = vmatpush2.msra.mxu0 0.0
        %4059 = vmatprep.subr.mxu0 0.0
        %4060 = vmatpush2.msra.mxu0 0.0
        %4061 = vmatprep.mubr.f32.mxu0 0.0
        %4062 = vmatmul.mubr.f32.gmra.mxu0 %v3977
        %v4063 = vpop.f32.mrf.mxu0
        %v4064 = vadd.f32 0.0, %v4063
        %v4065 = vpop.f32.mrf.mxu0
        %4066 = vmatprep.mubr.f32.mxu0 0.0
        %4067 = vmatmul.mubr.f32.gmra.mxu0 %v3979
        %v4068 = vpop.f32.mrf.mxu0
        %v4069 = vadd.f32 0.0, %v4068
        %v4070 = vpop.f32.mrf.mxu0
        %4071 = vmatprep.mubr.f32.mxu0 0.0
        %4072 = vmatmul.mubr.f32.gmra.mxu0 %v3981
        %v4073 = vpop.f32.mrf.mxu0
        %v4074 = vadd.f32 0.0, %v4073
        %v4075 = vpop.f32.mrf.mxu0
        %4076 = vmatprep.mubr.f32.mxu0 0.0
        %4077 = vmatmul.mubr.f32.gmra.mxu0 %v3983
        %v4078 = vpop.f32.mrf.mxu0
        %v4079 = vadd.f32 0.0, %v4078
        %v4080 = vpop.f32.mrf.mxu0
        %4081 = vmatprep.mubr.f32.mxu0 0.0
        %4082 = vmatmul.mubr.f32.gmra.mxu0 %v3985
        %v4083 = vpop.f32.mrf.mxu0
        %v4084 = vadd.f32 0.0, %v4083
        %v4085 = vpop.f32.mrf.mxu0
        %4086 = vmatprep.mubr.f32.mxu0 0.0
        %4087 = vmatmul.mubr.f32.gmra.mxu0 %v3987
        %v4088 = vpop.f32.mrf.mxu0
        %v4089 = vadd.f32 0.0, %v4088
        %v4090 = vpop.f32.mrf.mxu0
        %4091 = vmatprep.mubr.f32.mxu0 0.0
        %4092 = vmatmul.mubr.f32.gmra.mxu0 %v3989
        %v4093 = vpop.f32.mrf.mxu0
        %v4094 = vadd.f32 0.0, %v4093
        %v4095 = vpop.f32.mrf.mxu0
        %4096 = vmatprep.mubr.f32.mxu0 0.0
        %4097 = vmatmul.mubr.f32.gmra.mxu0 %v3991
        %v4098 = vpop.f32.mrf.mxu0
        %v4099 = vadd.f32 0.0, %v4098
        %v4100 = vpop.f32.mrf.mxu0
        %4101 = vmatprep.mubr.f32.mxu0 0.0
        %4102 = vmatmul.mubr.f32.gmra.mxu0 %v3993
        %v4103 = vpop.f32.mrf.mxu0
        %v4104 = vadd.f32 0.0, %v4103
        %v4105 = vpop.f32.mrf.mxu0
        %4106 = vdwg.mxu0
        %v4107 = vadd.f32 %v3944, %v4064
        %v4108 = vadd.f32 %v3945, %v4069
        %v4109 = vadd.f32 %v3946, %v4074
        %v4110 = vadd.f32 %v3947, %v4079
        %v4111 = vadd.f32 %v3948, %v4084
        %v4112 = vadd.f32 %v3949, %v4089
        %v4113 = vadd.f32 %v3950, %v4094
        %v4114 = vadd.f32 %v3951, %v4099
        %v4115 = vadd.f32 %v3952, %v4104
        %4116 = vrot.lane.b32.xlu0 %v224, 32
        %v4117 = vpop.permute.xlu0 %4116
        %4118 = vrot.lane.b32.xlu0 %v225, 32
        %v4119 = vpop.permute.xlu0 %4118
        %4120 = vrot.lane.b32.xlu0 %v226, 32
        %v4121 = vpop.permute.xlu0 %4120
        %4122 = vrot.lane.b32.xlu0 %v227, 32
        %v4123 = vpop.permute.xlu0 %4122
        %4124 = vrot.lane.b32.xlu0 %v228, 32
        %v4125 = vpop.permute.xlu0 %4124
        %4126 = vrot.lane.b32.xlu0 %v229, 32
        %v4127 = vpop.permute.xlu0 %4126
        %4128 = vrot.lane.b32.xlu0 %v230, 32
        %v4129 = vpop.permute.xlu0 %4128
        %4130 = vrot.lane.b32.xlu0 %v231, 32
        %v4131 = vpop.permute.xlu0 %4130
        %4132 = vrot.lane.b32.xlu0 %v232, 32
        %v4133 = vpop.permute.xlu0 %4132
        %4134 = vrot.lane.b32.xlu0 %v223, 104
        %v4135 = vpop.permute.xlu0 %4134
        %4136 = vrot.lane.b32.xlu0 %v261, 104
        %v4137 = vpop.permute.xlu0 %4136
        %vm4138 = vcmask 850944
        %v4139 = vsel %vm4138, %v4135, %v4137
        %v4140 = vsel %vm268, %v4117, 0
        %v4142 = vsel %vm268, %v4119, 0
        %v4144 = vsel %vm268, %v4121, 0
        %v4146 = vsel %vm268, %v4123, 0
        %v4148 = vsel %vm268, %v4125, 0
        %v4150 = vsel %vm268, %v4127, 0
        %v4152 = vsel %vm268, %v4129, 0
        %v4154 = vsel %vm268, %v4131, 0
        %v4156 = vsel %vm268, %v4133, 0
        %v4158 = vsel %vm287, %v4139, 0
        %4160 = vmatprep.subr.mxu0 0.0
        %4161 = vmatpush1.msra.mxu0 0.0
        %4162 = vmatprep.subr.mxu0 0.0
        %4163 = vmatpush1.msra.mxu0 0.0
        %4164 = vmatprep.subr.mxu0 0.0
        %4165 = vmatpush1.msra.mxu0 0.0
        %4166 = vmatprep.subr.mxu0 0.0
        %4167 = vmatpush1.msra.mxu0 0.0
        %4168 = vmatprep.subr.mxu0 0.0
        %4169 = vmatpush1.msra.mxu0 0.0
        %4170 = vmatprep.subr.mxu0 0.0
        %4171 = vmatpush1.msra.mxu0 0.0
        %4172 = vmatprep.subr.mxu0 0.0
        %4173 = vmatpush1.msra.mxu0 0.0
        %4174 = vmatprep.subr.mxu0 0.0
        %4175 = vmatpush1.msra.mxu0 0.0
        %4176 = vmatprep.subr.mxu0 0.0
        %4177 = vmatpush1.msra.mxu0 0.0
        %4178 = vmatprep.subr.mxu0 0.0
        %4179 = vmatpush1.msra.mxu0 0.0
        %4180 = vmatprep.subr.mxu0 0.0
        %4181 = vmatpush1.msra.mxu0 0.0
        %4182 = vmatprep.subr.mxu0 0.0
        %4183 = vmatpush1.msra.mxu0 0.0
        %4184 = vmatprep.subr.mxu0 0.0
        %4185 = vmatpush1.msra.mxu0 0.0
        %4186 = vmatprep.subr.mxu0 0.0
        %4187 = vmatpush1.msra.mxu0 0.0
        %4188 = vmatprep.subr.mxu0 0.0
        %4189 = vmatpush1.msra.mxu0 0.0
        %4190 = vmatprep.subr.mxu0 0.0
        %4191 = vmatpush1.msra.mxu0 %v4158
        %4192 = vmatprep.subr.mxu0 0.0
        %4193 = vmatpush2.msra.mxu0 0.0
        %4194 = vmatprep.subr.mxu0 0.0
        %4195 = vmatpush2.msra.mxu0 0.0
        %4196 = vmatprep.subr.mxu0 0.0
        %4197 = vmatpush2.msra.mxu0 0.0
        %4198 = vmatprep.subr.mxu0 0.0
        %4199 = vmatpush2.msra.mxu0 0.0
        %4200 = vmatprep.subr.mxu0 0.0
        %4201 = vmatpush2.msra.mxu0 0.0
        %4202 = vmatprep.subr.mxu0 0.0
        %4203 = vmatpush2.msra.mxu0 0.0
        %4204 = vmatprep.subr.mxu0 0.0
        %4205 = vmatpush2.msra.mxu0 0.0
        %4206 = vmatprep.subr.mxu0 0.0
        %4207 = vmatpush2.msra.mxu0 0.0
        %4208 = vmatprep.subr.mxu0 0.0
        %4209 = vmatpush2.msra.mxu0 0.0
        %4210 = vmatprep.subr.mxu0 0.0
        %4211 = vmatpush2.msra.mxu0 0.0
        %4212 = vmatprep.subr.mxu0 0.0
        %4213 = vmatpush2.msra.mxu0 0.0
        %4214 = vmatprep.subr.mxu0 0.0
        %4215 = vmatpush2.msra.mxu0 0.0
        %4216 = vmatprep.subr.mxu0 0.0
        %4217 = vmatpush2.msra.mxu0 0.0
        %4218 = vmatprep.subr.mxu0 0.0
        %4219 = vmatpush2.msra.mxu0 0.0
        %4220 = vmatprep.subr.mxu0 0.0
        %4221 = vmatpush2.msra.mxu0 0.0
        %4222 = vmatprep.subr.mxu0 0.0
        %4223 = vmatpush2.msra.mxu0 0.0
        %4224 = vmatprep.mubr.f32.mxu0 0.0
        %4225 = vmatmul.mubr.f32.gmra.mxu0 %v4140
        %v4226 = vpop.f32.mrf.mxu0
        %v4227 = vadd.f32 0.0, %v4226
        %v4228 = vpop.f32.mrf.mxu0
        %4229 = vmatprep.mubr.f32.mxu0 0.0
        %4230 = vmatmul.mubr.f32.gmra.mxu0 %v4142
        %v4231 = vpop.f32.mrf.mxu0
        %v4232 = vadd.f32 0.0, %v4231
        %v4233 = vpop.f32.mrf.mxu0
        %4234 = vmatprep.mubr.f32.mxu0 0.0
        %4235 = vmatmul.mubr.f32.gmra.mxu0 %v4144
        %v4236 = vpop.f32.mrf.mxu0
        %v4237 = vadd.f32 0.0, %v4236
        %v4238 = vpop.f32.mrf.mxu0
        %4239 = vmatprep.mubr.f32.mxu0 0.0
        %4240 = vmatmul.mubr.f32.gmra.mxu0 %v4146
        %v4241 = vpop.f32.mrf.mxu0
        %v4242 = vadd.f32 0.0, %v4241
        %v4243 = vpop.f32.mrf.mxu0
        %4244 = vmatprep.mubr.f32.mxu0 0.0
        %4245 = vmatmul.mubr.f32.gmra.mxu0 %v4148
        %v4246 = vpop.f32.mrf.mxu0
        %v4247 = vadd.f32 0.0, %v4246
        %v4248 = vpop.f32.mrf.mxu0
        %4249 = vmatprep.mubr.f32.mxu0 0.0
        %4250 = vmatmul.mubr.f32.gmra.mxu0 %v4150
        %v4251 = vpop.f32.mrf.mxu0
        %v4252 = vadd.f32 0.0, %v4251
        %v4253 = vpop.f32.mrf.mxu0
        %4254 = vmatprep.mubr.f32.mxu0 0.0
        %4255 = vmatmul.mubr.f32.gmra.mxu0 %v4152
        %v4256 = vpop.f32.mrf.mxu0
        %v4257 = vadd.f32 0.0, %v4256
        %v4258 = vpop.f32.mrf.mxu0
        %4259 = vmatprep.mubr.f32.mxu0 0.0
        %4260 = vmatmul.mubr.f32.gmra.mxu0 %v4154
        %v4261 = vpop.f32.mrf.mxu0
        %v4262 = vadd.f32 0.0, %v4261
        %v4263 = vpop.f32.mrf.mxu0
        %4264 = vmatprep.mubr.f32.mxu0 0.0
        %4265 = vmatmul.mubr.f32.gmra.mxu0 %v4156
        %v4266 = vpop.f32.mrf.mxu0
        %v4267 = vadd.f32 0.0, %v4266
        %v4268 = vpop.f32.mrf.mxu0
        %4269 = vdwg.mxu0
        %v4270 = vadd.f32 %v4107, %v4227
        %v4271 = vadd.f32 %v4108, %v4232
        %v4272 = vadd.f32 %v4109, %v4237
        %v4273 = vadd.f32 %v4110, %v4242
        %v4274 = vadd.f32 %v4111, %v4247
        %v4275 = vadd.f32 %v4112, %v4252
        %v4276 = vadd.f32 %v4113, %v4257
        %v4277 = vadd.f32 %v4114, %v4262
        %v4278 = vadd.f32 %v4115, %v4267
        %v4279 = vld [vmem:[%s2] sm:$0xff]
        %v4280 = vld [vmem:[%s2 + $0x8] sm:$0xff]
        %v4281 = vld [vmem:[%s2 + $0x10] sm:$0xff]
        %v4282 = vld [vmem:[%s2 + $0x18] sm:$0xff]
        %v4283 = vld [vmem:[%s2 + $0x20] sm:$0xff]
        %v4284 = vld [vmem:[%s2 + $0x28] sm:$0xff]
        %v4285 = vld [vmem:[%s2 + $0x30] sm:$0xff]
        %v4286 = vld [vmem:[%s2 + $0x38] sm:$0xff]
        %v4287 = vld [vmem:[%s2 + $0x40] sm:$0xff]
        %4289 = vset.pattern.permute.xlu0 0
        %4290 = vperm.xlu0 %4289, %v4279
        %v4291 = vpop.permute.xlu0 %4290
        %4294 = vset.pattern.permute.xlu0 0
        %4295 = vperm.xlu0 %4294, %v4280
        %v4296 = vpop.permute.xlu0 %4295
        %4299 = vset.pattern.permute.xlu0 0
        %4300 = vperm.xlu0 %4299, %v4281
        %v4301 = vpop.permute.xlu0 %4300
        %4304 = vset.pattern.permute.xlu0 0
        %4305 = vperm.xlu0 %4304, %v4282
        %v4306 = vpop.permute.xlu0 %4305
        %4309 = vset.pattern.permute.xlu0 0
        %4310 = vperm.xlu0 %4309, %v4283
        %v4311 = vpop.permute.xlu0 %4310
        %4314 = vset.pattern.permute.xlu0 0
        %4315 = vperm.xlu0 %4314, %v4284
        %v4316 = vpop.permute.xlu0 %4315
        %4319 = vset.pattern.permute.xlu0 0
        %4320 = vperm.xlu0 %4319, %v4285
        %v4321 = vpop.permute.xlu0 %4320
        %4324 = vset.pattern.permute.xlu0 0
        %4325 = vperm.xlu0 %4324, %v4286
        %v4326 = vpop.permute.xlu0 %4325
        %4329 = vset.pattern.permute.xlu0 0
        %4330 = vperm.xlu0 %4329, %v4287
        %v4331 = vpop.permute.xlu0 %4330
        %v4333 = vadd.f32 %v4270, %v4291
        %v4334 = vadd.f32 %v4271, %v4296
        %v4335 = vadd.f32 %v4272, %v4301
        %v4336 = vadd.f32 %v4273, %v4306
        %v4337 = vadd.f32 %v4274, %v4311
        %v4338 = vadd.f32 %v4275, %v4316
        %v4339 = vadd.f32 %v4276, %v4321
        %v4340 = vadd.f32 %v4277, %v4326
        %v4341 = vadd.f32 %v4278, %v4331
        %v4342 = vld [vmem:[%s4] sm:$0xff]
        %v4343 = vld [vmem:[%s4 + $0x8] sm:$0xff]
        %v4344 = vld [vmem:[%s4 + $0x10] sm:$0xff]
        %4346 = vset.pattern.permute.xlu0 0
        %4347 = vperm.xlu0 %4346, %v4342
        %v4348 = vpop.permute.xlu0 %4347
        %4351 = vset.pattern.permute.xlu0 0
        %4352 = vperm.xlu0 %4351, %v4343
        %v4353 = vpop.permute.xlu0 %4352
        %4356 = vset.pattern.permute.xlu0 0
        %4357 = vperm.xlu0 %4356, %v4344
        %v4358 = vpop.permute.xlu0 %4357
        %4360 = vxpose.xlu0.b32.start [1/16] %v4333, 128
        %4361 = vxpose.xlu0.b32.cont [2/16] 0.0, 128
        %4362 = vxpose.xlu0.b32.cont [3/16] 0.0, 128
        %4363 = vxpose.xlu0.b32.cont [4/16] 0.0, 128
        %4364 = vxpose.xlu0.b32.cont [5/16] 0.0, 128
        %4365 = vxpose.xlu0.b32.cont [6/16] 0.0, 128
        %4366 = vxpose.xlu0.b32.cont [7/16] 0.0, 128
        %4367 = vxpose.xlu0.b32.cont [8/16] 0.0, 128
        %4368 = vxpose.xlu0.b32.cont [9/16] 0.0, 128
        %4369 = vxpose.xlu0.b32.cont [10/16] 0.0, 128
        %4370 = vxpose.xlu0.b32.cont [11/16] 0.0, 128
        %4371 = vxpose.xlu0.b32.cont [12/16] 0.0, 128
        %4372 = vxpose.xlu0.b32.cont [13/16] 0.0, 128
        %4373 = vxpose.xlu0.b32.cont [14/16] 0.0, 128
        %4374 = vxpose.xlu0.b32.cont [15/16] 0.0, 128
        %4375 = vxpose.xlu0.b32.end [16/16] 0.0, 128
        %v4376 = vpop.trf.xlu0
        %v4377 = vpop.trf.xlu0
        %v4378 = vpop.trf.xlu0
        %v4379 = vpop.trf.xlu0
        %v4380 = vpop.trf.xlu0
        %v4381 = vpop.trf.xlu0
        %v4382 = vpop.trf.xlu0
        %v4383 = vpop.trf.xlu0
        %v4384 = vpop.trf.xlu0
        %v4385 = vpop.trf.xlu0
        %v4386 = vpop.trf.xlu0
        %v4387 = vpop.trf.xlu0
        %v4388 = vpop.trf.xlu0
        %v4389 = vpop.trf.xlu0
        %v4390 = vpop.trf.xlu0
        %v4391 = vpop.trf.xlu0
        %vm4392 = vcmask 64512
        %v4394 = vsel %vm4392, %v4376, 0
        %v4397 = vsel %vm4392, %v4377, 0
        %v4400 = vsel %vm4392, %v4378, 0
        %v4403 = vsel %vm4392, %v4379, 0
        %v4406 = vsel %vm4392, %v4380, 0
        %v4409 = vsel %vm4392, %v4381, 0
        %v4412 = vsel %vm4392, %v4382, 0
        %v4415 = vsel %vm4392, %v4383, 0
        %v4418 = vsel %vm4392, %v4384, 0
        %v4421 = vsel %vm4392, %v4385, 0
        %v4424 = vsel %vm4392, %v4386, 0
        %v4427 = vsel %vm4392, %v4387, 0
        %v4430 = vsel %vm4392, %v4388, 0
        %v4433 = vsel %vm4392, %v4389, 0
        %v4436 = vsel %vm4392, %v4390, 0
        %v4439 = vsel %vm4392, %v4391, 0
        %4441 = vmatprep.subr.mxu0 0.0
        %4442 = vmatpush1.msra.mxu0 0.0
        %4443 = vmatprep.subr.mxu0 0.0
        %4444 = vmatpush1.msra.mxu0 0.0
        %4445 = vmatprep.subr.mxu0 0.0
        %4446 = vmatpush1.msra.mxu0 0.0
        %4447 = vmatprep.subr.mxu0 0.0
        %4448 = vmatpush1.msra.mxu0 0.0
        %4449 = vmatprep.subr.mxu0 0.0
        %4450 = vmatpush1.msra.mxu0 0.0
        %4451 = vmatprep.subr.mxu0 0.0
        %4452 = vmatpush1.msra.mxu0 0.0
        %4453 = vmatprep.subr.mxu0 0.0
        %4454 = vmatpush1.msra.mxu0 0.0
        %4455 = vmatprep.subr.mxu0 0.0
        %4456 = vmatpush1.msra.mxu0 0.0
        %4457 = vmatprep.subr.mxu0 0.0
        %4458 = vmatpush1.msra.mxu0 0.0
        %4459 = vmatprep.subr.mxu0 0.0
        %4460 = vmatpush1.msra.mxu0 0.0
        %4461 = vmatprep.subr.mxu0 0.0
        %4462 = vmatpush1.msra.mxu0 0.0
        %4463 = vmatprep.subr.mxu0 0.0
        %4464 = vmatpush1.msra.mxu0 0.0
        %4465 = vmatprep.subr.mxu0 0.0
        %4466 = vmatpush1.msra.mxu0 0.0
        %4467 = vmatprep.subr.mxu0 0.0
        %4468 = vmatpush1.msra.mxu0 0.0
        %4469 = vmatprep.subr.mxu0 0.0
        %4470 = vmatpush1.msra.mxu0 0.0
        %4471 = vmatprep.subr.mxu0 0.0
        %4472 = vmatpush1.msra.mxu0 %v4334
        %4473 = vmatprep.subr.mxu0 0.0
        %4474 = vmatpush2.msra.mxu0 0.0
        %4475 = vmatprep.subr.mxu0 0.0
        %4476 = vmatpush2.msra.mxu0 0.0
        %4477 = vmatprep.subr.mxu0 0.0
        %4478 = vmatpush2.msra.mxu0 0.0
        %4479 = vmatprep.subr.mxu0 0.0
        %4480 = vmatpush2.msra.mxu0 0.0
        %4481 = vmatprep.subr.mxu0 0.0
        %4482 = vmatpush2.msra.mxu0 0.0
        %4483 = vmatprep.subr.mxu0 0.0
        %4484 = vmatpush2.msra.mxu0 0.0
        %4485 = vmatprep.subr.mxu0 0.0
        %4486 = vmatpush2.msra.mxu0 0.0
        %4487 = vmatprep.subr.mxu0 0.0
        %4488 = vmatpush2.msra.mxu0 0.0
        %4489 = vmatprep.subr.mxu0 0.0
        %4490 = vmatpush2.msra.mxu0 0.0
        %4491 = vmatprep.subr.mxu0 0.0
        %4492 = vmatpush2.msra.mxu0 0.0
        %4493 = vmatprep.subr.mxu0 0.0
        %4494 = vmatpush2.msra.mxu0 0.0
        %4495 = vmatprep.subr.mxu0 0.0
        %4496 = vmatpush2.msra.mxu0 0.0
        %4497 = vmatprep.subr.mxu0 0.0
        %4498 = vmatpush2.msra.mxu0 0.0
        %4499 = vmatprep.subr.mxu0 0.0
        %4500 = vmatpush2.msra.mxu0 0.0
        %4501 = vmatprep.subr.mxu0 0.0
        %4502 = vmatpush2.msra.mxu0 0.0
        %4503 = vmatprep.subr.mxu0 0.0
        %4504 = vmatpush2.msra.mxu0 0.0
        %4505 = vmatprep.mubr.f32.mxu0 0.0
        %4506 = vmatmul.mubr.f32.gmra.mxu0 %v4394
        %v4507 = vpop.f32.mrf.mxu0
        %v4508 = vadd.f32 0.0, %v4507
        %v4509 = vpop.f32.mrf.mxu0
        %4510 = vmatprep.mubr.f32.mxu0 0.0
        %4511 = vmatmul.mubr.f32.gmra.mxu0 %v4397
        %v4512 = vpop.f32.mrf.mxu0
        %v4513 = vadd.f32 0.0, %v4512
        %v4514 = vpop.f32.mrf.mxu0
        %4515 = vmatprep.mubr.f32.mxu0 0.0
        %4516 = vmatmul.mubr.f32.gmra.mxu0 %v4400
        %v4517 = vpop.f32.mrf.mxu0
        %v4518 = vadd.f32 0.0, %v4517
        %v4519 = vpop.f32.mrf.mxu0
        %4520 = vmatprep.mubr.f32.mxu0 0.0
        %4521 = vmatmul.mubr.f32.gmra.mxu0 %v4403
        %v4522 = vpop.f32.mrf.mxu0
        %v4523 = vadd.f32 0.0, %v4522
        %v4524 = vpop.f32.mrf.mxu0
        %4525 = vmatprep.mubr.f32.mxu0 0.0
        %4526 = vmatmul.mubr.f32.gmra.mxu0 %v4406
        %v4527 = vpop.f32.mrf.mxu0
        %v4528 = vadd.f32 0.0, %v4527
        %v4529 = vpop.f32.mrf.mxu0
        %4530 = vmatprep.mubr.f32.mxu0 0.0
        %4531 = vmatmul.mubr.f32.gmra.mxu0 %v4409
        %v4532 = vpop.f32.mrf.mxu0
        %v4533 = vadd.f32 0.0, %v4532
        %v4534 = vpop.f32.mrf.mxu0
        %4535 = vmatprep.mubr.f32.mxu0 0.0
        %4536 = vmatmul.mubr.f32.gmra.mxu0 %v4412
        %v4537 = vpop.f32.mrf.mxu0
        %v4538 = vadd.f32 0.0, %v4537
        %v4539 = vpop.f32.mrf.mxu0
        %4540 = vmatprep.mubr.f32.mxu0 0.0
        %4541 = vmatmul.mubr.f32.gmra.mxu0 %v4415
        %v4542 = vpop.f32.mrf.mxu0
        %v4543 = vadd.f32 0.0, %v4542
        %v4544 = vpop.f32.mrf.mxu0
        %4545 = vmatprep.mubr.f32.mxu0 0.0
        %4546 = vmatmul.mubr.f32.gmra.mxu0 %v4418
        %v4547 = vpop.f32.mrf.mxu0
        %v4548 = vadd.f32 0.0, %v4547
        %v4549 = vpop.f32.mrf.mxu0
        %4550 = vmatprep.mubr.f32.mxu0 0.0
        %4551 = vmatmul.mubr.f32.gmra.mxu0 %v4421
        %v4552 = vpop.f32.mrf.mxu0
        %v4553 = vadd.f32 0.0, %v4552
        %v4554 = vpop.f32.mrf.mxu0
        %4555 = vmatprep.mubr.f32.mxu0 0.0
        %4556 = vmatmul.mubr.f32.gmra.mxu0 %v4424
        %v4557 = vpop.f32.mrf.mxu0
        %v4558 = vadd.f32 0.0, %v4557
        %v4559 = vpop.f32.mrf.mxu0
        %4560 = vmatprep.mubr.f32.mxu0 0.0
        %4561 = vmatmul.mubr.f32.gmra.mxu0 %v4427
        %v4562 = vpop.f32.mrf.mxu0
        %v4563 = vadd.f32 0.0, %v4562
        %v4564 = vpop.f32.mrf.mxu0
        %4565 = vmatprep.mubr.f32.mxu0 0.0
        %4566 = vmatmul.mubr.f32.gmra.mxu0 %v4430
        %v4567 = vpop.f32.mrf.mxu0
        %v4568 = vadd.f32 0.0, %v4567
        %v4569 = vpop.f32.mrf.mxu0
        %4570 = vmatprep.mubr.f32.mxu0 0.0
        %4571 = vmatmul.mubr.f32.gmra.mxu0 %v4433
        %v4572 = vpop.f32.mrf.mxu0
        %v4573 = vadd.f32 0.0, %v4572
        %v4574 = vpop.f32.mrf.mxu0
        %4575 = vmatprep.mubr.f32.mxu0 0.0
        %4576 = vmatmul.mubr.f32.gmra.mxu0 %v4436
        %v4577 = vpop.f32.mrf.mxu0
        %v4578 = vadd.f32 0.0, %v4577
        %v4579 = vpop.f32.mrf.mxu0
        %4580 = vmatprep.mubr.f32.mxu0 0.0
        %4581 = vmatmul.mubr.f32.gmra.mxu0 %v4439
        %v4582 = vpop.f32.mrf.mxu0
        %v4583 = vadd.f32 0.0, %v4582
        %v4584 = vpop.f32.mrf.mxu0
        %4585 = vdwg.mxu0
        %v4586 = vmul.f32 %v4508, 0.35355338
        %v4587 = vmul.f32 %v4513, 0.35355338
        %v4588 = vmul.f32 %v4518, 0.35355338
        %v4589 = vmul.f32 %v4523, 0.35355338
        %v4590 = vmul.f32 %v4528, 0.35355338
        %v4591 = vmul.f32 %v4533, 0.35355338
        %v4592 = vmul.f32 %v4538, 0.35355338
        %v4593 = vmul.f32 %v4543, 0.35355338
        %v4594 = vmul.f32 %v4548, 0.35355338
        %v4595 = vmul.f32 %v4553, 0.35355338
        %v4596 = vmul.f32 %v4558, 0.35355338
        %v4597 = vmul.f32 %v4563, 0.35355338
        %v4598 = vmul.f32 %v4568, 0.35355338
        %v4599 = vmul.f32 %v4573, 0.35355338
        %v4600 = vmul.f32 %v4578, 0.35355338
        %v4601 = vmul.f32 %v4583, 0.35355338
        %4602 = vmax.xlane.f32.xlu0 %v4586
        %v4603 = vpop.xlane.xlu0 %4602
        %4604 = vmax.xlane.f32.xlu0 %v4587
        %v4605 = vpop.xlane.xlu0 %4604
        %4606 = vmax.xlane.f32.xlu0 %v4588
        %v4607 = vpop.xlane.xlu0 %4606
        %4608 = vmax.xlane.f32.xlu0 %v4589
        %v4609 = vpop.xlane.xlu0 %4608
        %4610 = vmax.xlane.f32.xlu0 %v4590
        %v4611 = vpop.xlane.xlu0 %4610
        %4612 = vmax.xlane.f32.xlu0 %v4591
        %v4613 = vpop.xlane.xlu0 %4612
        %4614 = vmax.xlane.f32.xlu0 %v4592
        %v4615 = vpop.xlane.xlu0 %4614
        %4616 = vmax.xlane.f32.xlu0 %v4593
        %v4617 = vpop.xlane.xlu0 %4616
        %4618 = vmax.xlane.f32.xlu0 %v4594
        %v4619 = vpop.xlane.xlu0 %4618
        %4620 = vmax.xlane.f32.xlu0 %v4595
        %v4621 = vpop.xlane.xlu0 %4620
        %4622 = vmax.xlane.f32.xlu0 %v4596
        %v4623 = vpop.xlane.xlu0 %4622
        %4624 = vmax.xlane.f32.xlu0 %v4597
        %v4625 = vpop.xlane.xlu0 %4624
        %4626 = vmax.xlane.f32.xlu0 %v4598
        %v4627 = vpop.xlane.xlu0 %4626
        %4628 = vmax.xlane.f32.xlu0 %v4599
        %v4629 = vpop.xlane.xlu0 %4628
        %4630 = vmax.xlane.f32.xlu0 %v4600
        %v4631 = vpop.xlane.xlu0 %4630
        %4632 = vmax.xlane.f32.xlu0 %v4601
        %v4633 = vpop.xlane.xlu0 %4632
        %v4634 = vsub.f32 %v4586, %v4603
        %v4635 = vsub.f32 %v4587, %v4605
        %v4636 = vsub.f32 %v4588, %v4607
        %v4637 = vsub.f32 %v4589, %v4609
        %v4638 = vsub.f32 %v4590, %v4611
        %v4639 = vsub.f32 %v4591, %v4613
        %v4640 = vsub.f32 %v4592, %v4615
        %v4641 = vsub.f32 %v4593, %v4617
        %v4642 = vsub.f32 %v4594, %v4619
        %v4643 = vsub.f32 %v4595, %v4621
        %v4644 = vsub.f32 %v4596, %v4623
        %v4645 = vsub.f32 %v4597, %v4625
        %v4646 = vsub.f32 %v4598, %v4627
        %v4647 = vsub.f32 %v4599, %v4629
        %v4648 = vsub.f32 %v4600, %v4631
        %v4649 = vsub.f32 %v4601, %v4633
        %v4650 = vmul.f32 %v4634, 1.442695
        %v4651 = vpow.pop %v4650
        %v4652 = vmul.f32 %v4635, 1.442695
        %v4653 = vpow.pop %v4652
        %v4654 = vmul.f32 %v4636, 1.442695
        %v4655 = vpow.pop %v4654
        %v4656 = vmul.f32 %v4637, 1.442695
        %v4657 = vpow.pop %v4656
        %v4658 = vmul.f32 %v4638, 1.442695
        %v4659 = vpow.pop %v4658
        %v4660 = vmul.f32 %v4639, 1.442695
        %v4661 = vpow.pop %v4660
        %v4662 = vmul.f32 %v4640, 1.442695
        %v4663 = vpow.pop %v4662
        %v4664 = vmul.f32 %v4641, 1.442695
        %v4665 = vpow.pop %v4664
        %v4666 = vmul.f32 %v4642, 1.442695
        %v4667 = vpow.pop %v4666
        %v4668 = vmul.f32 %v4643, 1.442695
        %v4669 = vpow.pop %v4668
        %v4670 = vmul.f32 %v4644, 1.442695
        %v4671 = vpow.pop %v4670
        %v4672 = vmul.f32 %v4645, 1.442695
        %v4673 = vpow.pop %v4672
        %v4674 = vmul.f32 %v4646, 1.442695
        %v4675 = vpow.pop %v4674
        %v4676 = vmul.f32 %v4647, 1.442695
        %v4677 = vpow.pop %v4676
        %v4678 = vmul.f32 %v4648, 1.442695
        %v4679 = vpow.pop %v4678
        %v4680 = vmul.f32 %v4649, 1.442695
        %v4681 = vpow.pop %v4680
        %4682 = vadd.xlane.f32.xlu0 %v4651
        %v4683 = vpop.xlane.xlu0 %4682
        %4684 = vadd.xlane.f32.xlu0 %v4653
        %v4685 = vpop.xlane.xlu0 %4684
        %4686 = vadd.xlane.f32.xlu0 %v4655
        %v4687 = vpop.xlane.xlu0 %4686
        %4688 = vadd.xlane.f32.xlu0 %v4657
        %v4689 = vpop.xlane.xlu0 %4688
        %4690 = vadd.xlane.f32.xlu0 %v4659
        %v4691 = vpop.xlane.xlu0 %4690
        %4692 = vadd.xlane.f32.xlu0 %v4661
        %v4693 = vpop.xlane.xlu0 %4692
        %4694 = vadd.xlane.f32.xlu0 %v4663
        %v4695 = vpop.xlane.xlu0 %4694
        %4696 = vadd.xlane.f32.xlu0 %v4665
        %v4697 = vpop.xlane.xlu0 %4696
        %4698 = vadd.xlane.f32.xlu0 %v4667
        %v4699 = vpop.xlane.xlu0 %4698
        %4700 = vadd.xlane.f32.xlu0 %v4669
        %v4701 = vpop.xlane.xlu0 %4700
        %4702 = vadd.xlane.f32.xlu0 %v4671
        %v4703 = vpop.xlane.xlu0 %4702
        %4704 = vadd.xlane.f32.xlu0 %v4673
        %v4705 = vpop.xlane.xlu0 %4704
        %4706 = vadd.xlane.f32.xlu0 %v4675
        %v4707 = vpop.xlane.xlu0 %4706
        %4708 = vadd.xlane.f32.xlu0 %v4677
        %v4709 = vpop.xlane.xlu0 %4708
        %4710 = vadd.xlane.f32.xlu0 %v4679
        %v4711 = vpop.xlane.xlu0 %4710
        %4712 = vadd.xlane.f32.xlu0 %v4681
        %v4713 = vpop.xlane.xlu0 %4712
        %v4714 = vrcp.pop %v4683
        %v4715 = vmul.f32 %v4651, %v4714
        %v4716 = vrcp.pop %v4685
        %v4717 = vmul.f32 %v4653, %v4716
        %v4718 = vrcp.pop %v4687
        %v4719 = vmul.f32 %v4655, %v4718
        %v4720 = vrcp.pop %v4689
        %v4721 = vmul.f32 %v4657, %v4720
        %v4722 = vrcp.pop %v4691
        %v4723 = vmul.f32 %v4659, %v4722
        %v4724 = vrcp.pop %v4693
        %v4725 = vmul.f32 %v4661, %v4724
        %v4726 = vrcp.pop %v4695
        %v4727 = vmul.f32 %v4663, %v4726
        %v4728 = vrcp.pop %v4697
        %v4729 = vmul.f32 %v4665, %v4728
        %v4730 = vrcp.pop %v4699
        %v4731 = vmul.f32 %v4667, %v4730
        %v4732 = vrcp.pop %v4701
        %v4733 = vmul.f32 %v4669, %v4732
        %v4734 = vrcp.pop %v4703
        %v4735 = vmul.f32 %v4671, %v4734
        %v4736 = vrcp.pop %v4705
        %v4737 = vmul.f32 %v4673, %v4736
        %v4738 = vrcp.pop %v4707
        %v4739 = vmul.f32 %v4675, %v4738
        %v4740 = vrcp.pop %v4709
        %v4741 = vmul.f32 %v4677, %v4740
        %v4742 = vrcp.pop %v4711
        %v4743 = vmul.f32 %v4679, %v4742
        %v4744 = vrcp.pop %v4713
        %v4745 = vmul.f32 %v4681, %v4744
        %4746 = vmatprep.subr.mxu0 0.0
        %4747 = vmatpush1.xpose.msra.mxu0 %v4745
        %4748 = vmatprep.subr.mxu0 0.0
        %4749 = vmatpush1.xpose.msra.mxu0 %v4743
        %4750 = vmatprep.subr.mxu0 0.0
        %4751 = vmatpush1.xpose.msra.mxu0 %v4741
        %4752 = vmatprep.subr.mxu0 0.0
        %4753 = vmatpush1.xpose.msra.mxu0 %v4739
        %4754 = vmatprep.subr.mxu0 0.0
        %4755 = vmatpush1.xpose.msra.mxu0 %v4737
        %4756 = vmatprep.subr.mxu0 0.0
        %4757 = vmatpush1.xpose.msra.mxu0 %v4735
        %4758 = vmatprep.subr.mxu0 0.0
        %4759 = vmatpush1.xpose.msra.mxu0 %v4733
        %4760 = vmatprep.subr.mxu0 0.0
        %4761 = vmatpush1.xpose.msra.mxu0 %v4731
        %4762 = vmatprep.subr.mxu0 0.0
        %4763 = vmatpush1.xpose.msra.mxu0 %v4729
        %4764 = vmatprep.subr.mxu0 0.0
        %4765 = vmatpush1.xpose.msra.mxu0 %v4727
        %4766 = vmatprep.subr.mxu0 0.0
        %4767 = vmatpush1.xpose.msra.mxu0 %v4725
        %4768 = vmatprep.subr.mxu0 0.0
        %4769 = vmatpush1.xpose.msra.mxu0 %v4723
        %4770 = vmatprep.subr.mxu0 0.0
        %4771 = vmatpush1.xpose.msra.mxu0 %v4721
        %4772 = vmatprep.subr.mxu0 0.0
        %4773 = vmatpush1.xpose.msra.mxu0 %v4719
        %4774 = vmatprep.subr.mxu0 0.0
        %4775 = vmatpush1.xpose.msra.mxu0 %v4717
        %4776 = vmatprep.subr.mxu0 0.0
        %4777 = vmatpush1.xpose.msra.mxu0 %v4715
        %4778 = vmatprep.subr.mxu0 0.0
        %4779 = vmatpush2.xpose.msra.mxu0 0.0
        %4780 = vmatprep.subr.mxu0 0.0
        %4781 = vmatpush2.xpose.msra.mxu0 0.0
        %4782 = vmatprep.subr.mxu0 0.0
        %4783 = vmatpush2.xpose.msra.mxu0 0.0
        %4784 = vmatprep.subr.mxu0 0.0
        %4785 = vmatpush2.xpose.msra.mxu0 0.0
        %4786 = vmatprep.subr.mxu0 0.0
        %4787 = vmatpush2.xpose.msra.mxu0 0.0
        %4788 = vmatprep.subr.mxu0 0.0
        %4789 = vmatpush2.xpose.msra.mxu0 0.0
        %4790 = vmatprep.subr.mxu0 0.0
        %4791 = vmatpush2.xpose.msra.mxu0 0.0
        %4792 = vmatprep.subr.mxu0 0.0
        %4793 = vmatpush2.xpose.msra.mxu0 0.0
        %4794 = vmatprep.subr.mxu0 0.0
        %4795 = vmatpush2.xpose.msra.mxu0 0.0
        %4796 = vmatprep.subr.mxu0 0.0
        %4797 = vmatpush2.xpose.msra.mxu0 0.0
        %4798 = vmatprep.subr.mxu0 0.0
        %4799 = vmatpush2.xpose.msra.mxu0 0.0
        %4800 = vmatprep.subr.mxu0 0.0
        %4801 = vmatpush2.xpose.msra.mxu0 0.0
        %4802 = vmatprep.subr.mxu0 0.0
        %4803 = vmatpush2.xpose.msra.mxu0 0.0
        %4804 = vmatprep.subr.mxu0 0.0
        %4805 = vmatpush2.xpose.msra.mxu0 0.0
        %4806 = vmatprep.subr.mxu0 0.0
        %4807 = vmatpush2.xpose.msra.mxu0 0.0
        %4808 = vmatprep.subr.mxu0 0.0
        %4809 = vmatpush2.xpose.msra.mxu0 0.0
        %4810 = vmatprep.mubr.f32.mxu0 0.0
        %4811 = vmatmul.mubr.f32.gmra.mxu0 %v4335
        %v4812 = vpop.f32.mrf.mxu0
        %v4813 = vadd.f32 0.0, %v4812
        %v4814 = vpop.f32.mrf.mxu0
        %4815 = vdwg.mxu0
        %v4816 = vld [vmem:[%s3] sm:$0xff]
        %v4817 = vld [vmem:[%s3 + $0x8] sm:$0xff]
        %v4818 = vld [vmem:[%s3 + $0x10] sm:$0xff]
        %v4820 = vsel %vm4392, %v4816, 0
        %v4823 = vsel %vm4392, %v4817, 0
        %v4826 = vsel %vm4392, %v4818, 0
        %4828 = vmatprep.subr.mxu0 0.0
        %4829 = vmatpush1.msra.mxu0 0.0
        %4830 = vmatprep.subr.mxu0 0.0
        %4831 = vmatpush1.msra.mxu0 0.0
        %4832 = vmatprep.subr.mxu0 0.0
        %4833 = vmatpush1.msra.mxu0 0.0
        %4834 = vmatprep.subr.mxu0 0.0
        %4835 = vmatpush1.msra.mxu0 0.0
        %4836 = vmatprep.subr.mxu0 0.0
        %4837 = vmatpush1.msra.mxu0 0.0
        %4838 = vmatprep.subr.mxu0 0.0
        %4839 = vmatpush1.msra.mxu0 0.0
        %4840 = vmatprep.subr.mxu0 0.0
        %4841 = vmatpush1.msra.mxu0 0.0
        %4842 = vmatprep.subr.mxu0 0.0
        %4843 = vmatpush1.msra.mxu0 0.0
        %4844 = vmatprep.subr.mxu0 0.0
        %4845 = vmatpush1.msra.mxu0 0.0
        %4846 = vmatprep.subr.mxu0 0.0
        %4847 = vmatpush1.msra.mxu0 0.0
        %4848 = vmatprep.subr.mxu0 0.0
        %4849 = vmatpush1.msra.mxu0 0.0
        %4850 = vmatprep.subr.mxu0 0.0
        %4851 = vmatpush1.msra.mxu0 0.0
        %4852 = vmatprep.subr.mxu0 0.0
        %4853 = vmatpush1.msra.mxu0 0.0
        %4854 = vmatprep.subr.mxu0 0.0
        %4855 = vmatpush1.msra.mxu0 0.0
        %4856 = vmatprep.subr.mxu0 0.0
        %4857 = vmatpush1.msra.mxu0 0.0
        %4858 = vmatprep.subr.mxu0 0.0
        %4859 = vmatpush1.msra.mxu0 %v4813
        %4860 = vmatprep.subr.mxu0 0.0
        %4861 = vmatpush2.msra.mxu0 0.0
        %4862 = vmatprep.subr.mxu0 0.0
        %4863 = vmatpush2.msra.mxu0 0.0
        %4864 = vmatprep.subr.mxu0 0.0
        %4865 = vmatpush2.msra.mxu0 0.0
        %4866 = vmatprep.subr.mxu0 0.0
        %4867 = vmatpush2.msra.mxu0 0.0
        %4868 = vmatprep.subr.mxu0 0.0
        %4869 = vmatpush2.msra.mxu0 0.0
        %4870 = vmatprep.subr.mxu0 0.0
        %4871 = vmatpush2.msra.mxu0 0.0
        %4872 = vmatprep.subr.mxu0 0.0
        %4873 = vmatpush2.msra.mxu0 0.0
        %4874 = vmatprep.subr.mxu0 0.0
        %4875 = vmatpush2.msra.mxu0 0.0
        %4876 = vmatprep.subr.mxu0 0.0
        %4877 = vmatpush2.msra.mxu0 0.0
        %4878 = vmatprep.subr.mxu0 0.0
        %4879 = vmatpush2.msra.mxu0 0.0
        %4880 = vmatprep.subr.mxu0 0.0
        %4881 = vmatpush2.msra.mxu0 0.0
        %4882 = vmatprep.subr.mxu0 0.0
        %4883 = vmatpush2.msra.mxu0 0.0
        %4884 = vmatprep.subr.mxu0 0.0
        %4885 = vmatpush2.msra.mxu0 0.0
        %4886 = vmatprep.subr.mxu0 0.0
        %4887 = vmatpush2.msra.mxu0 0.0
        %4888 = vmatprep.subr.mxu0 0.0
        %4889 = vmatpush2.msra.mxu0 0.0
        %4890 = vmatprep.subr.mxu0 0.0
        %4891 = vmatpush2.msra.mxu0 0.0
        %4892 = vmatprep.mubr.f32.mxu0 0.0
        %4893 = vmatmul.mubr.f32.gmra.mxu0 %v4820
        %v4894 = vpop.f32.mrf.mxu0
        %v4895 = vadd.f32 0.0, %v4894
        %v4896 = vpop.f32.mrf.mxu0
        %4897 = vmatprep.mubr.f32.mxu0 0.0
        %4898 = vmatmul.mubr.f32.gmra.mxu0 %v4823
        %v4899 = vpop.f32.mrf.mxu0
        %v4900 = vadd.f32 0.0, %v4899
        %v4901 = vpop.f32.mrf.mxu0
        %4902 = vmatprep.mubr.f32.mxu0 0.0
        %4903 = vmatmul.mubr.f32.gmra.mxu0 %v4826
        %v4904 = vpop.f32.mrf.mxu0
        %v4905 = vadd.f32 0.0, %v4904
        %v4906 = vpop.f32.mrf.mxu0
        %4907 = vdwg.mxu0
        %v4908 = vadd.f32 %v4348, %v4895
        %v4909 = vadd.f32 %v4353, %v4900
        %v4910 = vadd.f32 %v4358, %v4905
        %4911 = vxpose.xlu0.b32.start [1/16] %v4336, 128
        %4912 = vxpose.xlu0.b32.cont [2/16] 0.0, 128
        %4913 = vxpose.xlu0.b32.cont [3/16] 0.0, 128
        %4914 = vxpose.xlu0.b32.cont [4/16] 0.0, 128
        %4915 = vxpose.xlu0.b32.cont [5/16] 0.0, 128
        %4916 = vxpose.xlu0.b32.cont [6/16] 0.0, 128
        %4917 = vxpose.xlu0.b32.cont [7/16] 0.0, 128
        %4918 = vxpose.xlu0.b32.cont [8/16] 0.0, 128
        %4919 = vxpose.xlu0.b32.cont [9/16] 0.0, 128
        %4920 = vxpose.xlu0.b32.cont [10/16] 0.0, 128
        %4921 = vxpose.xlu0.b32.cont [11/16] 0.0, 128
        %4922 = vxpose.xlu0.b32.cont [12/16] 0.0, 128
        %4923 = vxpose.xlu0.b32.cont [13/16] 0.0, 128
        %4924 = vxpose.xlu0.b32.cont [14/16] 0.0, 128
        %4925 = vxpose.xlu0.b32.cont [15/16] 0.0, 128
        %4926 = vxpose.xlu0.b32.end [16/16] 0.0, 128
        %v4927 = vpop.trf.xlu0
        %v4928 = vpop.trf.xlu0
        %v4929 = vpop.trf.xlu0
        %v4930 = vpop.trf.xlu0
        %v4931 = vpop.trf.xlu0
        %v4932 = vpop.trf.xlu0
        %v4933 = vpop.trf.xlu0
        %v4934 = vpop.trf.xlu0
        %v4935 = vpop.trf.xlu0
        %v4936 = vpop.trf.xlu0
        %v4937 = vpop.trf.xlu0
        %v4938 = vpop.trf.xlu0
        %v4939 = vpop.trf.xlu0
        %v4940 = vpop.trf.xlu0
        %v4941 = vpop.trf.xlu0
        %v4942 = vpop.trf.xlu0
        %v4944 = vsel %vm4392, %v4927, 0
        %v4947 = vsel %vm4392, %v4928, 0
        %v4950 = vsel %vm4392, %v4929, 0
        %v4953 = vsel %vm4392, %v4930, 0
        %v4956 = vsel %vm4392, %v4931, 0
        %v4959 = vsel %vm4392, %v4932, 0
        %v4962 = vsel %vm4392, %v4933, 0
        %v4965 = vsel %vm4392, %v4934, 0
        %v4968 = vsel %vm4392, %v4935, 0
        %v4971 = vsel %vm4392, %v4936, 0
        %v4974 = vsel %vm4392, %v4937, 0
        %v4977 = vsel %vm4392, %v4938, 0
        %v4980 = vsel %vm4392, %v4939, 0
        %v4983 = vsel %vm4392, %v4940, 0
        %v4986 = vsel %vm4392, %v4941, 0
        %v4989 = vsel %vm4392, %v4942, 0
        %4991 = vmatprep.subr.mxu0 0.0
        %4992 = vmatpush1.msra.mxu0 0.0
        %4993 = vmatprep.subr.mxu0 0.0
        %4994 = vmatpush1.msra.mxu0 0.0
        %4995 = vmatprep.subr.mxu0 0.0
        %4996 = vmatpush1.msra.mxu0 0.0
        %4997 = vmatprep.subr.mxu0 0.0
        %4998 = vmatpush1.msra.mxu0 0.0
        %4999 = vmatprep.subr.mxu0 0.0
        %5000 = vmatpush1.msra.mxu0 0.0
        %5001 = vmatprep.subr.mxu0 0.0
        %5002 = vmatpush1.msra.mxu0 0.0
        %5003 = vmatprep.subr.mxu0 0.0
        %5004 = vmatpush1.msra.mxu0 0.0
        %5005 = vmatprep.subr.mxu0 0.0
        %5006 = vmatpush1.msra.mxu0 0.0
        %5007 = vmatprep.subr.mxu0 0.0
        %5008 = vmatpush1.msra.mxu0 0.0
        %5009 = vmatprep.subr.mxu0 0.0
        %5010 = vmatpush1.msra.mxu0 0.0
        %5011 = vmatprep.subr.mxu0 0.0
        %5012 = vmatpush1.msra.mxu0 0.0
        %5013 = vmatprep.subr.mxu0 0.0
        %5014 = vmatpush1.msra.mxu0 0.0
        %5015 = vmatprep.subr.mxu0 0.0
        %5016 = vmatpush1.msra.mxu0 0.0
        %5017 = vmatprep.subr.mxu0 0.0
        %5018 = vmatpush1.msra.mxu0 0.0
        %5019 = vmatprep.subr.mxu0 0.0
        %5020 = vmatpush1.msra.mxu0 0.0
        %5021 = vmatprep.subr.mxu0 0.0
        %5022 = vmatpush1.msra.mxu0 %v4337
        %5023 = vmatprep.subr.mxu0 0.0
        %5024 = vmatpush2.msra.mxu0 0.0
        %5025 = vmatprep.subr.mxu0 0.0
        %5026 = vmatpush2.msra.mxu0 0.0
        %5027 = vmatprep.subr.mxu0 0.0
        %5028 = vmatpush2.msra.mxu0 0.0
        %5029 = vmatprep.subr.mxu0 0.0
        %5030 = vmatpush2.msra.mxu0 0.0
        %5031 = vmatprep.subr.mxu0 0.0
        %5032 = vmatpush2.msra.mxu0 0.0
        %5033 = vmatprep.subr.mxu0 0.0
        %5034 = vmatpush2.msra.mxu0 0.0
        %5035 = vmatprep.subr.mxu0 0.0
        %5036 = vmatpush2.msra.mxu0 0.0
        %5037 = vmatprep.subr.mxu0 0.0
        %5038 = vmatpush2.msra.mxu0 0.0
        %5039 = vmatprep.subr.mxu0 0.0
        %5040 = vmatpush2.msra.mxu0 0.0
        %5041 = vmatprep.subr.mxu0 0.0
        %5042 = vmatpush2.msra.mxu0 0.0
        %5043 = vmatprep.subr.mxu0 0.0
        %5044 = vmatpush2.msra.mxu0 0.0
        %5045 = vmatprep.subr.mxu0 0.0
        %5046 = vmatpush2.msra.mxu0 0.0
        %5047 = vmatprep.subr.mxu0 0.0
        %5048 = vmatpush2.msra.mxu0 0.0
        %5049 = vmatprep.subr.mxu0 0.0
        %5050 = vmatpush2.msra.mxu0 0.0
        %5051 = vmatprep.subr.mxu0 0.0
        %5052 = vmatpush2.msra.mxu0 0.0
        %5053 = vmatprep.subr.mxu0 0.0
        %5054 = vmatpush2.msra.mxu0 0.0
        %5055 = vmatprep.mubr.f32.mxu0 0.0
        %5056 = vmatmul.mubr.f32.gmra.mxu0 %v4944
        %v5057 = vpop.f32.mrf.mxu0
        %v5058 = vadd.f32 0.0, %v5057
        %v5059 = vpop.f32.mrf.mxu0
        %5060 = vmatprep.mubr.f32.mxu0 0.0
        %5061 = vmatmul.mubr.f32.gmra.mxu0 %v4947
        %v5062 = vpop.f32.mrf.mxu0
        %v5063 = vadd.f32 0.0, %v5062
        %v5064 = vpop.f32.mrf.mxu0
        %5065 = vmatprep.mubr.f32.mxu0 0.0
        %5066 = vmatmul.mubr.f32.gmra.mxu0 %v4950
        %v5067 = vpop.f32.mrf.mxu0
        %v5068 = vadd.f32 0.0, %v5067
        %v5069 = vpop.f32.mrf.mxu0
        %5070 = vmatprep.mubr.f32.mxu0 0.0
        %5071 = vmatmul.mubr.f32.gmra.mxu0 %v4953
        %v5072 = vpop.f32.mrf.mxu0
        %v5073 = vadd.f32 0.0, %v5072
        %v5074 = vpop.f32.mrf.mxu0
        %5075 = vmatprep.mubr.f32.mxu0 0.0
        %5076 = vmatmul.mubr.f32.gmra.mxu0 %v4956
        %v5077 = vpop.f32.mrf.mxu0
        %v5078 = vadd.f32 0.0, %v5077
        %v5079 = vpop.f32.mrf.mxu0
        %5080 = vmatprep.mubr.f32.mxu0 0.0
        %5081 = vmatmul.mubr.f32.gmra.mxu0 %v4959
        %v5082 = vpop.f32.mrf.mxu0
        %v5083 = vadd.f32 0.0, %v5082
        %v5084 = vpop.f32.mrf.mxu0
        %5085 = vmatprep.mubr.f32.mxu0 0.0
        %5086 = vmatmul.mubr.f32.gmra.mxu0 %v4962
        %v5087 = vpop.f32.mrf.mxu0
        %v5088 = vadd.f32 0.0, %v5087
        %v5089 = vpop.f32.mrf.mxu0
        %5090 = vmatprep.mubr.f32.mxu0 0.0
        %5091 = vmatmul.mubr.f32.gmra.mxu0 %v4965
        %v5092 = vpop.f32.mrf.mxu0
        %v5093 = vadd.f32 0.0, %v5092
        %v5094 = vpop.f32.mrf.mxu0
        %5095 = vmatprep.mubr.f32.mxu0 0.0
        %5096 = vmatmul.mubr.f32.gmra.mxu0 %v4968
        %v5097 = vpop.f32.mrf.mxu0
        %v5098 = vadd.f32 0.0, %v5097
        %v5099 = vpop.f32.mrf.mxu0
        %5100 = vmatprep.mubr.f32.mxu0 0.0
        %5101 = vmatmul.mubr.f32.gmra.mxu0 %v4971
        %v5102 = vpop.f32.mrf.mxu0
        %v5103 = vadd.f32 0.0, %v5102
        %v5104 = vpop.f32.mrf.mxu0
        %5105 = vmatprep.mubr.f32.mxu0 0.0
        %5106 = vmatmul.mubr.f32.gmra.mxu0 %v4974
        %v5107 = vpop.f32.mrf.mxu0
        %v5108 = vadd.f32 0.0, %v5107
        %v5109 = vpop.f32.mrf.mxu0
        %5110 = vmatprep.mubr.f32.mxu0 0.0
        %5111 = vmatmul.mubr.f32.gmra.mxu0 %v4977
        %v5112 = vpop.f32.mrf.mxu0
        %v5113 = vadd.f32 0.0, %v5112
        %v5114 = vpop.f32.mrf.mxu0
        %5115 = vmatprep.mubr.f32.mxu0 0.0
        %5116 = vmatmul.mubr.f32.gmra.mxu0 %v4980
        %v5117 = vpop.f32.mrf.mxu0
        %v5118 = vadd.f32 0.0, %v5117
        %v5119 = vpop.f32.mrf.mxu0
        %5120 = vmatprep.mubr.f32.mxu0 0.0
        %5121 = vmatmul.mubr.f32.gmra.mxu0 %v4983
        %v5122 = vpop.f32.mrf.mxu0
        %v5123 = vadd.f32 0.0, %v5122
        %v5124 = vpop.f32.mrf.mxu0
        %5125 = vmatprep.mubr.f32.mxu0 0.0
        %5126 = vmatmul.mubr.f32.gmra.mxu0 %v4986
        %v5127 = vpop.f32.mrf.mxu0
        %v5128 = vadd.f32 0.0, %v5127
        %v5129 = vpop.f32.mrf.mxu0
        %5130 = vmatprep.mubr.f32.mxu0 0.0
        %5131 = vmatmul.mubr.f32.gmra.mxu0 %v4989
        %v5132 = vpop.f32.mrf.mxu0
        %v5133 = vadd.f32 0.0, %v5132
        %v5134 = vpop.f32.mrf.mxu0
        %5135 = vdwg.mxu0
        %v5136 = vmul.f32 %v5058, 0.35355338
        %v5137 = vmul.f32 %v5063, 0.35355338
        %v5138 = vmul.f32 %v5068, 0.35355338
        %v5139 = vmul.f32 %v5073, 0.35355338
        %v5140 = vmul.f32 %v5078, 0.35355338
        %v5141 = vmul.f32 %v5083, 0.35355338
        %v5142 = vmul.f32 %v5088, 0.35355338
        %v5143 = vmul.f32 %v5093, 0.35355338
        %v5144 = vmul.f32 %v5098, 0.35355338
        %v5145 = vmul.f32 %v5103, 0.35355338
        %v5146 = vmul.f32 %v5108, 0.35355338
        %v5147 = vmul.f32 %v5113, 0.35355338
        %v5148 = vmul.f32 %v5118, 0.35355338
        %v5149 = vmul.f32 %v5123, 0.35355338
        %v5150 = vmul.f32 %v5128, 0.35355338
        %v5151 = vmul.f32 %v5133, 0.35355338
        %5152 = vmax.xlane.f32.xlu0 %v5136
        %v5153 = vpop.xlane.xlu0 %5152
        %5154 = vmax.xlane.f32.xlu0 %v5137
        %v5155 = vpop.xlane.xlu0 %5154
        %5156 = vmax.xlane.f32.xlu0 %v5138
        %v5157 = vpop.xlane.xlu0 %5156
        %5158 = vmax.xlane.f32.xlu0 %v5139
        %v5159 = vpop.xlane.xlu0 %5158
        %5160 = vmax.xlane.f32.xlu0 %v5140
        %v5161 = vpop.xlane.xlu0 %5160
        %5162 = vmax.xlane.f32.xlu0 %v5141
        %v5163 = vpop.xlane.xlu0 %5162
        %5164 = vmax.xlane.f32.xlu0 %v5142
        %v5165 = vpop.xlane.xlu0 %5164
        %5166 = vmax.xlane.f32.xlu0 %v5143
        %v5167 = vpop.xlane.xlu0 %5166
        %5168 = vmax.xlane.f32.xlu0 %v5144
        %v5169 = vpop.xlane.xlu0 %5168
        %5170 = vmax.xlane.f32.xlu0 %v5145
        %v5171 = vpop.xlane.xlu0 %5170
        %5172 = vmax.xlane.f32.xlu0 %v5146
        %v5173 = vpop.xlane.xlu0 %5172
        %5174 = vmax.xlane.f32.xlu0 %v5147
        %v5175 = vpop.xlane.xlu0 %5174
        %5176 = vmax.xlane.f32.xlu0 %v5148
        %v5177 = vpop.xlane.xlu0 %5176
        %5178 = vmax.xlane.f32.xlu0 %v5149
        %v5179 = vpop.xlane.xlu0 %5178
        %5180 = vmax.xlane.f32.xlu0 %v5150
        %v5181 = vpop.xlane.xlu0 %5180
        %5182 = vmax.xlane.f32.xlu0 %v5151
        %v5183 = vpop.xlane.xlu0 %5182
        %v5184 = vsub.f32 %v5136, %v5153
        %v5185 = vsub.f32 %v5137, %v5155
        %v5186 = vsub.f32 %v5138, %v5157
        %v5187 = vsub.f32 %v5139, %v5159
        %v5188 = vsub.f32 %v5140, %v5161
        %v5189 = vsub.f32 %v5141, %v5163
        %v5190 = vsub.f32 %v5142, %v5165
        %v5191 = vsub.f32 %v5143, %v5167
        %v5192 = vsub.f32 %v5144, %v5169
        %v5193 = vsub.f32 %v5145, %v5171
        %v5194 = vsub.f32 %v5146, %v5173
        %v5195 = vsub.f32 %v5147, %v5175
        %v5196 = vsub.f32 %v5148, %v5177
        %v5197 = vsub.f32 %v5149, %v5179
        %v5198 = vsub.f32 %v5150, %v5181
        %v5199 = vsub.f32 %v5151, %v5183
        %v5200 = vmul.f32 %v5184, 1.442695
        %v5201 = vpow.pop %v5200
        %v5202 = vmul.f32 %v5185, 1.442695
        %v5203 = vpow.pop %v5202
        %v5204 = vmul.f32 %v5186, 1.442695
        %v5205 = vpow.pop %v5204
        %v5206 = vmul.f32 %v5187, 1.442695
        %v5207 = vpow.pop %v5206
        %v5208 = vmul.f32 %v5188, 1.442695
        %v5209 = vpow.pop %v5208
        %v5210 = vmul.f32 %v5189, 1.442695
        %v5211 = vpow.pop %v5210
        %v5212 = vmul.f32 %v5190, 1.442695
        %v5213 = vpow.pop %v5212
        %v5214 = vmul.f32 %v5191, 1.442695
        %v5215 = vpow.pop %v5214
        %v5216 = vmul.f32 %v5192, 1.442695
        %v5217 = vpow.pop %v5216
        %v5218 = vmul.f32 %v5193, 1.442695
        %v5219 = vpow.pop %v5218
        %v5220 = vmul.f32 %v5194, 1.442695
        %v5221 = vpow.pop %v5220
        %v5222 = vmul.f32 %v5195, 1.442695
        %v5223 = vpow.pop %v5222
        %v5224 = vmul.f32 %v5196, 1.442695
        %v5225 = vpow.pop %v5224
        %v5226 = vmul.f32 %v5197, 1.442695
        %v5227 = vpow.pop %v5226
        %v5228 = vmul.f32 %v5198, 1.442695
        %v5229 = vpow.pop %v5228
        %v5230 = vmul.f32 %v5199, 1.442695
        %v5231 = vpow.pop %v5230
        %5232 = vadd.xlane.f32.xlu0 %v5201
        %v5233 = vpop.xlane.xlu0 %5232
        %5234 = vadd.xlane.f32.xlu0 %v5203
        %v5235 = vpop.xlane.xlu0 %5234
        %5236 = vadd.xlane.f32.xlu0 %v5205
        %v5237 = vpop.xlane.xlu0 %5236
        %5238 = vadd.xlane.f32.xlu0 %v5207
        %v5239 = vpop.xlane.xlu0 %5238
        %5240 = vadd.xlane.f32.xlu0 %v5209
        %v5241 = vpop.xlane.xlu0 %5240
        %5242 = vadd.xlane.f32.xlu0 %v5211
        %v5243 = vpop.xlane.xlu0 %5242
        %5244 = vadd.xlane.f32.xlu0 %v5213
        %v5245 = vpop.xlane.xlu0 %5244
        %5246 = vadd.xlane.f32.xlu0 %v5215
        %v5247 = vpop.xlane.xlu0 %5246
        %5248 = vadd.xlane.f32.xlu0 %v5217
        %v5249 = vpop.xlane.xlu0 %5248
        %5250 = vadd.xlane.f32.xlu0 %v5219
        %v5251 = vpop.xlane.xlu0 %5250
        %5252 = vadd.xlane.f32.xlu0 %v5221
        %v5253 = vpop.xlane.xlu0 %5252
        %5254 = vadd.xlane.f32.xlu0 %v5223
        %v5255 = vpop.xlane.xlu0 %5254
        %5256 = vadd.xlane.f32.xlu0 %v5225
        %v5257 = vpop.xlane.xlu0 %5256
        %5258 = vadd.xlane.f32.xlu0 %v5227
        %v5259 = vpop.xlane.xlu0 %5258
        %5260 = vadd.xlane.f32.xlu0 %v5229
        %v5261 = vpop.xlane.xlu0 %5260
        %5262 = vadd.xlane.f32.xlu0 %v5231
        %v5263 = vpop.xlane.xlu0 %5262
        %v5264 = vrcp.pop %v5233
        %v5265 = vmul.f32 %v5201, %v5264
        %v5266 = vrcp.pop %v5235
        %v5267 = vmul.f32 %v5203, %v5266
        %v5268 = vrcp.pop %v5237
        %v5269 = vmul.f32 %v5205, %v5268
        %v5270 = vrcp.pop %v5239
        %v5271 = vmul.f32 %v5207, %v5270
        %v5272 = vrcp.pop %v5241
        %v5273 = vmul.f32 %v5209, %v5272
        %v5274 = vrcp.pop %v5243
        %v5275 = vmul.f32 %v5211, %v5274
        %v5276 = vrcp.pop %v5245
        %v5277 = vmul.f32 %v5213, %v5276
        %v5278 = vrcp.pop %v5247
        %v5279 = vmul.f32 %v5215, %v5278
        %v5280 = vrcp.pop %v5249
        %v5281 = vmul.f32 %v5217, %v5280
        %v5282 = vrcp.pop %v5251
        %v5283 = vmul.f32 %v5219, %v5282
        %v5284 = vrcp.pop %v5253
        %v5285 = vmul.f32 %v5221, %v5284
        %v5286 = vrcp.pop %v5255
        %v5287 = vmul.f32 %v5223, %v5286
        %v5288 = vrcp.pop %v5257
        %v5289 = vmul.f32 %v5225, %v5288
        %v5290 = vrcp.pop %v5259
        %v5291 = vmul.f32 %v5227, %v5290
        %v5292 = vrcp.pop %v5261
        %v5293 = vmul.f32 %v5229, %v5292
        %v5294 = vrcp.pop %v5263
        %v5295 = vmul.f32 %v5231, %v5294
        %5296 = vmatprep.subr.mxu0 0.0
        %5297 = vmatpush1.xpose.msra.mxu0 %v5295
        %5298 = vmatprep.subr.mxu0 0.0
        %5299 = vmatpush1.xpose.msra.mxu0 %v5293
        %5300 = vmatprep.subr.mxu0 0.0
        %5301 = vmatpush1.xpose.msra.mxu0 %v5291
        %5302 = vmatprep.subr.mxu0 0.0
        %5303 = vmatpush1.xpose.msra.mxu0 %v5289
        %5304 = vmatprep.subr.mxu0 0.0
        %5305 = vmatpush1.xpose.msra.mxu0 %v5287
        %5306 = vmatprep.subr.mxu0 0.0
        %5307 = vmatpush1.xpose.msra.mxu0 %v5285
        %5308 = vmatprep.subr.mxu0 0.0
        %5309 = vmatpush1.xpose.msra.mxu0 %v5283
        %5310 = vmatprep.subr.mxu0 0.0
        %5311 = vmatpush1.xpose.msra.mxu0 %v5281
        %5312 = vmatprep.subr.mxu0 0.0
        %5313 = vmatpush1.xpose.msra.mxu0 %v5279
        %5314 = vmatprep.subr.mxu0 0.0
        %5315 = vmatpush1.xpose.msra.mxu0 %v5277
        %5316 = vmatprep.subr.mxu0 0.0
        %5317 = vmatpush1.xpose.msra.mxu0 %v5275
        %5318 = vmatprep.subr.mxu0 0.0
        %5319 = vmatpush1.xpose.msra.mxu0 %v5273
        %5320 = vmatprep.subr.mxu0 0.0
        %5321 = vmatpush1.xpose.msra.mxu0 %v5271
        %5322 = vmatprep.subr.mxu0 0.0
        %5323 = vmatpush1.xpose.msra.mxu0 %v5269
        %5324 = vmatprep.subr.mxu0 0.0
        %5325 = vmatpush1.xpose.msra.mxu0 %v5267
        %5326 = vmatprep.subr.mxu0 0.0
        %5327 = vmatpush1.xpose.msra.mxu0 %v5265
        %5328 = vmatprep.subr.mxu0 0.0
        %5329 = vmatpush2.xpose.msra.mxu0 0.0
        %5330 = vmatprep.subr.mxu0 0.0
        %5331 = vmatpush2.xpose.msra.mxu0 0.0
        %5332 = vmatprep.subr.mxu0 0.0
        %5333 = vmatpush2.xpose.msra.mxu0 0.0
        %5334 = vmatprep.subr.mxu0 0.0
        %5335 = vmatpush2.xpose.msra.mxu0 0.0
        %5336 = vmatprep.subr.mxu0 0.0
        %5337 = vmatpush2.xpose.msra.mxu0 0.0
        %5338 = vmatprep.subr.mxu0 0.0
        %5339 = vmatpush2.xpose.msra.mxu0 0.0
        %5340 = vmatprep.subr.mxu0 0.0
        %5341 = vmatpush2.xpose.msra.mxu0 0.0
        %5342 = vmatprep.subr.mxu0 0.0
        %5343 = vmatpush2.xpose.msra.mxu0 0.0
        %5344 = vmatprep.subr.mxu0 0.0
        %5345 = vmatpush2.xpose.msra.mxu0 0.0
        %5346 = vmatprep.subr.mxu0 0.0
        %5347 = vmatpush2.xpose.msra.mxu0 0.0
        %5348 = vmatprep.subr.mxu0 0.0
        %5349 = vmatpush2.xpose.msra.mxu0 0.0
        %5350 = vmatprep.subr.mxu0 0.0
        %5351 = vmatpush2.xpose.msra.mxu0 0.0
        %5352 = vmatprep.subr.mxu0 0.0
        %5353 = vmatpush2.xpose.msra.mxu0 0.0
        %5354 = vmatprep.subr.mxu0 0.0
        %5355 = vmatpush2.xpose.msra.mxu0 0.0
        %5356 = vmatprep.subr.mxu0 0.0
        %5357 = vmatpush2.xpose.msra.mxu0 0.0
        %5358 = vmatprep.subr.mxu0 0.0
        %5359 = vmatpush2.xpose.msra.mxu0 0.0
        %5360 = vmatprep.mubr.f32.mxu0 0.0
        %5361 = vmatmul.mubr.f32.gmra.mxu0 %v4338
        %v5362 = vpop.f32.mrf.mxu0
        %v5363 = vadd.f32 0.0, %v5362
        %v5364 = vpop.f32.mrf.mxu0
        %5365 = vdwg.mxu0
        %s5366 = scalar_lea.vmem %s3, 24
        %v5367 = vld [vmem:[%s5366] sm:$0xff]
        %v5368 = vld [vmem:[%s5366 + $0x8] sm:$0xff]
        %v5369 = vld [vmem:[%s5366 + $0x10] sm:$0xff]
        %v5371 = vsel %vm4392, %v5367, 0
        %v5374 = vsel %vm4392, %v5368, 0
        %v5377 = vsel %vm4392, %v5369, 0
        %5379 = vmatprep.subr.mxu0 0.0
        %5380 = vmatpush1.msra.mxu0 0.0
        %5381 = vmatprep.subr.mxu0 0.0
        %5382 = vmatpush1.msra.mxu0 0.0
        %5383 = vmatprep.subr.mxu0 0.0
        %5384 = vmatpush1.msra.mxu0 0.0
        %5385 = vmatprep.subr.mxu0 0.0
        %5386 = vmatpush1.msra.mxu0 0.0
        %5387 = vmatprep.subr.mxu0 0.0
        %5388 = vmatpush1.msra.mxu0 0.0
        %5389 = vmatprep.subr.mxu0 0.0
        %5390 = vmatpush1.msra.mxu0 0.0
        %5391 = vmatprep.subr.mxu0 0.0
        %5392 = vmatpush1.msra.mxu0 0.0
        %5393 = vmatprep.subr.mxu0 0.0
        %5394 = vmatpush1.msra.mxu0 0.0
        %5395 = vmatprep.subr.mxu0 0.0
        %5396 = vmatpush1.msra.mxu0 0.0
        %5397 = vmatprep.subr.mxu0 0.0
        %5398 = vmatpush1.msra.mxu0 0.0
        %5399 = vmatprep.subr.mxu0 0.0
        %5400 = vmatpush1.msra.mxu0 0.0
        %5401 = vmatprep.subr.mxu0 0.0
        %5402 = vmatpush1.msra.mxu0 0.0
        %5403 = vmatprep.subr.mxu0 0.0
        %5404 = vmatpush1.msra.mxu0 0.0
        %5405 = vmatprep.subr.mxu0 0.0
        %5406 = vmatpush1.msra.mxu0 0.0
        %5407 = vmatprep.subr.mxu0 0.0
        %5408 = vmatpush1.msra.mxu0 0.0
        %5409 = vmatprep.subr.mxu0 0.0
        %5410 = vmatpush1.msra.mxu0 %v5363
        %5411 = vmatprep.subr.mxu0 0.0
        %5412 = vmatpush2.msra.mxu0 0.0
        %5413 = vmatprep.subr.mxu0 0.0
        %5414 = vmatpush2.msra.mxu0 0.0
        %5415 = vmatprep.subr.mxu0 0.0
        %5416 = vmatpush2.msra.mxu0 0.0
        %5417 = vmatprep.subr.mxu0 0.0
        %5418 = vmatpush2.msra.mxu0 0.0
        %5419 = vmatprep.subr.mxu0 0.0
        %5420 = vmatpush2.msra.mxu0 0.0
        %5421 = vmatprep.subr.mxu0 0.0
        %5422 = vmatpush2.msra.mxu0 0.0
        %5423 = vmatprep.subr.mxu0 0.0
        %5424 = vmatpush2.msra.mxu0 0.0
        %5425 = vmatprep.subr.mxu0 0.0
        %5426 = vmatpush2.msra.mxu0 0.0
        %5427 = vmatprep.subr.mxu0 0.0
        %5428 = vmatpush2.msra.mxu0 0.0
        %5429 = vmatprep.subr.mxu0 0.0
        %5430 = vmatpush2.msra.mxu0 0.0
        %5431 = vmatprep.subr.mxu0 0.0
        %5432 = vmatpush2.msra.mxu0 0.0
        %5433 = vmatprep.subr.mxu0 0.0
        %5434 = vmatpush2.msra.mxu0 0.0
        %5435 = vmatprep.subr.mxu0 0.0
        %5436 = vmatpush2.msra.mxu0 0.0
        %5437 = vmatprep.subr.mxu0 0.0
        %5438 = vmatpush2.msra.mxu0 0.0
        %5439 = vmatprep.subr.mxu0 0.0
        %5440 = vmatpush2.msra.mxu0 0.0
        %5441 = vmatprep.subr.mxu0 0.0
        %5442 = vmatpush2.msra.mxu0 0.0
        %5443 = vmatprep.mubr.f32.mxu0 0.0
        %5444 = vmatmul.mubr.f32.gmra.mxu0 %v5371
        %v5445 = vpop.f32.mrf.mxu0
        %v5446 = vadd.f32 0.0, %v5445
        %v5447 = vpop.f32.mrf.mxu0
        %5448 = vmatprep.mubr.f32.mxu0 0.0
        %5449 = vmatmul.mubr.f32.gmra.mxu0 %v5374
        %v5450 = vpop.f32.mrf.mxu0
        %v5451 = vadd.f32 0.0, %v5450
        %v5452 = vpop.f32.mrf.mxu0
        %5453 = vmatprep.mubr.f32.mxu0 0.0
        %5454 = vmatmul.mubr.f32.gmra.mxu0 %v5377
        %v5455 = vpop.f32.mrf.mxu0
        %v5456 = vadd.f32 0.0, %v5455
        %v5457 = vpop.f32.mrf.mxu0
        %5458 = vdwg.mxu0
        %v5459 = vadd.f32 %v4908, %v5446
        %v5460 = vadd.f32 %v4909, %v5451
        %v5461 = vadd.f32 %v4910, %v5456
        %5462 = vxpose.xlu0.b32.start [1/16] %v4339, 128
        %5463 = vxpose.xlu0.b32.cont [2/16] 0.0, 128
        %5464 = vxpose.xlu0.b32.cont [3/16] 0.0, 128
        %5465 = vxpose.xlu0.b32.cont [4/16] 0.0, 128
        %5466 = vxpose.xlu0.b32.cont [5/16] 0.0, 128
        %5467 = vxpose.xlu0.b32.cont [6/16] 0.0, 128
        %5468 = vxpose.xlu0.b32.cont [7/16] 0.0, 128
        %5469 = vxpose.xlu0.b32.cont [8/16] 0.0, 128
        %5470 = vxpose.xlu0.b32.cont [9/16] 0.0, 128
        %5471 = vxpose.xlu0.b32.cont [10/16] 0.0, 128
        %5472 = vxpose.xlu0.b32.cont [11/16] 0.0, 128
        %5473 = vxpose.xlu0.b32.cont [12/16] 0.0, 128
        %5474 = vxpose.xlu0.b32.cont [13/16] 0.0, 128
        %5475 = vxpose.xlu0.b32.cont [14/16] 0.0, 128
        %5476 = vxpose.xlu0.b32.cont [15/16] 0.0, 128
        %5477 = vxpose.xlu0.b32.end [16/16] 0.0, 128
        %v5478 = vpop.trf.xlu0
        %v5479 = vpop.trf.xlu0
        %v5480 = vpop.trf.xlu0
        %v5481 = vpop.trf.xlu0
        %v5482 = vpop.trf.xlu0
        %v5483 = vpop.trf.xlu0
        %v5484 = vpop.trf.xlu0
        %v5485 = vpop.trf.xlu0
        %v5486 = vpop.trf.xlu0
        %v5487 = vpop.trf.xlu0
        %v5488 = vpop.trf.xlu0
        %v5489 = vpop.trf.xlu0
        %v5490 = vpop.trf.xlu0
        %v5491 = vpop.trf.xlu0
        %v5492 = vpop.trf.xlu0
        %v5493 = vpop.trf.xlu0
        %v5495 = vsel %vm4392, %v5478, 0
        %v5498 = vsel %vm4392, %v5479, 0
        %v5501 = vsel %vm4392, %v5480, 0
        %v5504 = vsel %vm4392, %v5481, 0
        %v5507 = vsel %vm4392, %v5482, 0
        %v5510 = vsel %vm4392, %v5483, 0
        %v5513 = vsel %vm4392, %v5484, 0
        %v5516 = vsel %vm4392, %v5485, 0
        %v5519 = vsel %vm4392, %v5486, 0
        %v5522 = vsel %vm4392, %v5487, 0
        %v5525 = vsel %vm4392, %v5488, 0
        %v5528 = vsel %vm4392, %v5489, 0
        %v5531 = vsel %vm4392, %v5490, 0
        %v5534 = vsel %vm4392, %v5491, 0
        %v5537 = vsel %vm4392, %v5492, 0
        %v5540 = vsel %vm4392, %v5493, 0
        %5542 = vmatprep.subr.mxu0 0.0
        %5543 = vmatpush1.msra.mxu0 0.0
        %5544 = vmatprep.subr.mxu0 0.0
        %5545 = vmatpush1.msra.mxu0 0.0
        %5546 = vmatprep.subr.mxu0 0.0
        %5547 = vmatpush1.msra.mxu0 0.0
        %5548 = vmatprep.subr.mxu0 0.0
        %5549 = vmatpush1.msra.mxu0 0.0
        %5550 = vmatprep.subr.mxu0 0.0
        %5551 = vmatpush1.msra.mxu0 0.0
        %5552 = vmatprep.subr.mxu0 0.0
        %5553 = vmatpush1.msra.mxu0 0.0
        %5554 = vmatprep.subr.mxu0 0.0
        %5555 = vmatpush1.msra.mxu0 0.0
        %5556 = vmatprep.subr.mxu0 0.0
        %5557 = vmatpush1.msra.mxu0 0.0
        %5558 = vmatprep.subr.mxu0 0.0
        %5559 = vmatpush1.msra.mxu0 0.0
        %5560 = vmatprep.subr.mxu0 0.0
        %5561 = vmatpush1.msra.mxu0 0.0
        %5562 = vmatprep.subr.mxu0 0.0
        %5563 = vmatpush1.msra.mxu0 0.0
        %5564 = vmatprep.subr.mxu0 0.0
        %5565 = vmatpush1.msra.mxu0 0.0
        %5566 = vmatprep.subr.mxu0 0.0
        %5567 = vmatpush1.msra.mxu0 0.0
        %5568 = vmatprep.subr.mxu0 0.0
        %5569 = vmatpush1.msra.mxu0 0.0
        %5570 = vmatprep.subr.mxu0 0.0
        %5571 = vmatpush1.msra.mxu0 0.0
        %5572 = vmatprep.subr.mxu0 0.0
        %5573 = vmatpush1.msra.mxu0 %v4340
        %5574 = vmatprep.subr.mxu0 0.0
        %5575 = vmatpush2.msra.mxu0 0.0
        %5576 = vmatprep.subr.mxu0 0.0
        %5577 = vmatpush2.msra.mxu0 0.0
        %5578 = vmatprep.subr.mxu0 0.0
        %5579 = vmatpush2.msra.mxu0 0.0
        %5580 = vmatprep.subr.mxu0 0.0
        %5581 = vmatpush2.msra.mxu0 0.0
        %5582 = vmatprep.subr.mxu0 0.0
        %5583 = vmatpush2.msra.mxu0 0.0
        %5584 = vmatprep.subr.mxu0 0.0
        %5585 = vmatpush2.msra.mxu0 0.0
        %5586 = vmatprep.subr.mxu0 0.0
        %5587 = vmatpush2.msra.mxu0 0.0
        %5588 = vmatprep.subr.mxu0 0.0
        %5589 = vmatpush2.msra.mxu0 0.0
        %5590 = vmatprep.subr.mxu0 0.0
        %5591 = vmatpush2.msra.mxu0 0.0
        %5592 = vmatprep.subr.mxu0 0.0
        %5593 = vmatpush2.msra.mxu0 0.0
        %5594 = vmatprep.subr.mxu0 0.0
        %5595 = vmatpush2.msra.mxu0 0.0
        %5596 = vmatprep.subr.mxu0 0.0
        %5597 = vmatpush2.msra.mxu0 0.0
        %5598 = vmatprep.subr.mxu0 0.0
        %5599 = vmatpush2.msra.mxu0 0.0
        %5600 = vmatprep.subr.mxu0 0.0
        %5601 = vmatpush2.msra.mxu0 0.0
        %5602 = vmatprep.subr.mxu0 0.0
        %5603 = vmatpush2.msra.mxu0 0.0
        %5604 = vmatprep.subr.mxu0 0.0
        %5605 = vmatpush2.msra.mxu0 0.0
        %5606 = vmatprep.mubr.f32.mxu0 0.0
        %5607 = vmatmul.mubr.f32.gmra.mxu0 %v5495
        %v5608 = vpop.f32.mrf.mxu0
        %v5609 = vadd.f32 0.0, %v5608
        %v5610 = vpop.f32.mrf.mxu0
        %5611 = vmatprep.mubr.f32.mxu0 0.0
        %5612 = vmatmul.mubr.f32.gmra.mxu0 %v5498
        %v5613 = vpop.f32.mrf.mxu0
        %v5614 = vadd.f32 0.0, %v5613
        %v5615 = vpop.f32.mrf.mxu0
        %5616 = vmatprep.mubr.f32.mxu0 0.0
        %5617 = vmatmul.mubr.f32.gmra.mxu0 %v5501
        %v5618 = vpop.f32.mrf.mxu0
        %v5619 = vadd.f32 0.0, %v5618
        %v5620 = vpop.f32.mrf.mxu0
        %5621 = vmatprep.mubr.f32.mxu0 0.0
        %5622 = vmatmul.mubr.f32.gmra.mxu0 %v5504
        %v5623 = vpop.f32.mrf.mxu0
        %v5624 = vadd.f32 0.0, %v5623
        %v5625 = vpop.f32.mrf.mxu0
        %5626 = vmatprep.mubr.f32.mxu0 0.0
        %5627 = vmatmul.mubr.f32.gmra.mxu0 %v5507
        %v5628 = vpop.f32.mrf.mxu0
        %v5629 = vadd.f32 0.0, %v5628
        %v5630 = vpop.f32.mrf.mxu0
        %5631 = vmatprep.mubr.f32.mxu0 0.0
        %5632 = vmatmul.mubr.f32.gmra.mxu0 %v5510
        %v5633 = vpop.f32.mrf.mxu0
        %v5634 = vadd.f32 0.0, %v5633
        %v5635 = vpop.f32.mrf.mxu0
        %5636 = vmatprep.mubr.f32.mxu0 0.0
        %5637 = vmatmul.mubr.f32.gmra.mxu0 %v5513
        %v5638 = vpop.f32.mrf.mxu0
        %v5639 = vadd.f32 0.0, %v5638
        %v5640 = vpop.f32.mrf.mxu0
        %5641 = vmatprep.mubr.f32.mxu0 0.0
        %5642 = vmatmul.mubr.f32.gmra.mxu0 %v5516
        %v5643 = vpop.f32.mrf.mxu0
        %v5644 = vadd.f32 0.0, %v5643
        %v5645 = vpop.f32.mrf.mxu0
        %5646 = vmatprep.mubr.f32.mxu0 0.0
        %5647 = vmatmul.mubr.f32.gmra.mxu0 %v5519
        %v5648 = vpop.f32.mrf.mxu0
        %v5649 = vadd.f32 0.0, %v5648
        %v5650 = vpop.f32.mrf.mxu0
        %5651 = vmatprep.mubr.f32.mxu0 0.0
        %5652 = vmatmul.mubr.f32.gmra.mxu0 %v5522
        %v5653 = vpop.f32.mrf.mxu0
        %v5654 = vadd.f32 0.0, %v5653
        %v5655 = vpop.f32.mrf.mxu0
        %5656 = vmatprep.mubr.f32.mxu0 0.0
        %5657 = vmatmul.mubr.f32.gmra.mxu0 %v5525
        %v5658 = vpop.f32.mrf.mxu0
        %v5659 = vadd.f32 0.0, %v5658
        %v5660 = vpop.f32.mrf.mxu0
        %5661 = vmatprep.mubr.f32.mxu0 0.0
        %5662 = vmatmul.mubr.f32.gmra.mxu0 %v5528
        %v5663 = vpop.f32.mrf.mxu0
        %v5664 = vadd.f32 0.0, %v5663
        %v5665 = vpop.f32.mrf.mxu0
        %5666 = vmatprep.mubr.f32.mxu0 0.0
        %5667 = vmatmul.mubr.f32.gmra.mxu0 %v5531
        %v5668 = vpop.f32.mrf.mxu0
        %v5669 = vadd.f32 0.0, %v5668
        %v5670 = vpop.f32.mrf.mxu0
        %5671 = vmatprep.mubr.f32.mxu0 0.0
        %5672 = vmatmul.mubr.f32.gmra.mxu0 %v5534
        %v5673 = vpop.f32.mrf.mxu0
        %v5674 = vadd.f32 0.0, %v5673
        %v5675 = vpop.f32.mrf.mxu0
        %5676 = vmatprep.mubr.f32.mxu0 0.0
        %5677 = vmatmul.mubr.f32.gmra.mxu0 %v5537
        %v5678 = vpop.f32.mrf.mxu0
        %v5679 = vadd.f32 0.0, %v5678
        %v5680 = vpop.f32.mrf.mxu0
        %5681 = vmatprep.mubr.f32.mxu0 0.0
        %5682 = vmatmul.mubr.f32.gmra.mxu0 %v5540
        %v5683 = vpop.f32.mrf.mxu0
        %v5684 = vadd.f32 0.0, %v5683
        %v5685 = vpop.f32.mrf.mxu0
        %5686 = vdwg.mxu0
        %v5687 = vmul.f32 %v5609, 0.35355338
        %v5688 = vmul.f32 %v5614, 0.35355338
        %v5689 = vmul.f32 %v5619, 0.35355338
        %v5690 = vmul.f32 %v5624, 0.35355338
        %v5691 = vmul.f32 %v5629, 0.35355338
        %v5692 = vmul.f32 %v5634, 0.35355338
        %v5693 = vmul.f32 %v5639, 0.35355338
        %v5694 = vmul.f32 %v5644, 0.35355338
        %v5695 = vmul.f32 %v5649, 0.35355338
        %v5696 = vmul.f32 %v5654, 0.35355338
        %v5697 = vmul.f32 %v5659, 0.35355338
        %v5698 = vmul.f32 %v5664, 0.35355338
        %v5699 = vmul.f32 %v5669, 0.35355338
        %v5700 = vmul.f32 %v5674, 0.35355338
        %v5701 = vmul.f32 %v5679, 0.35355338
        %v5702 = vmul.f32 %v5684, 0.35355338
        %5703 = vmax.xlane.f32.xlu0 %v5687
        %v5704 = vpop.xlane.xlu0 %5703
        %5705 = vmax.xlane.f32.xlu0 %v5688
        %v5706 = vpop.xlane.xlu0 %5705
        %5707 = vmax.xlane.f32.xlu0 %v5689
        %v5708 = vpop.xlane.xlu0 %5707
        %5709 = vmax.xlane.f32.xlu0 %v5690
        %v5710 = vpop.xlane.xlu0 %5709
        %5711 = vmax.xlane.f32.xlu0 %v5691
        %v5712 = vpop.xlane.xlu0 %5711
        %5713 = vmax.xlane.f32.xlu0 %v5692
        %v5714 = vpop.xlane.xlu0 %5713
        %5715 = vmax.xlane.f32.xlu0 %v5693
        %v5716 = vpop.xlane.xlu0 %5715
        %5717 = vmax.xlane.f32.xlu0 %v5694
        %v5718 = vpop.xlane.xlu0 %5717
        %5719 = vmax.xlane.f32.xlu0 %v5695
        %v5720 = vpop.xlane.xlu0 %5719
        %5721 = vmax.xlane.f32.xlu0 %v5696
        %v5722 = vpop.xlane.xlu0 %5721
        %5723 = vmax.xlane.f32.xlu0 %v5697
        %v5724 = vpop.xlane.xlu0 %5723
        %5725 = vmax.xlane.f32.xlu0 %v5698
        %v5726 = vpop.xlane.xlu0 %5725
        %5727 = vmax.xlane.f32.xlu0 %v5699
        %v5728 = vpop.xlane.xlu0 %5727
        %5729 = vmax.xlane.f32.xlu0 %v5700
        %v5730 = vpop.xlane.xlu0 %5729
        %5731 = vmax.xlane.f32.xlu0 %v5701
        %v5732 = vpop.xlane.xlu0 %5731
        %5733 = vmax.xlane.f32.xlu0 %v5702
        %v5734 = vpop.xlane.xlu0 %5733
        %v5735 = vsub.f32 %v5687, %v5704
        %v5736 = vsub.f32 %v5688, %v5706
        %v5737 = vsub.f32 %v5689, %v5708
        %v5738 = vsub.f32 %v5690, %v5710
        %v5739 = vsub.f32 %v5691, %v5712
        %v5740 = vsub.f32 %v5692, %v5714
        %v5741 = vsub.f32 %v5693, %v5716
        %v5742 = vsub.f32 %v5694, %v5718
        %v5743 = vsub.f32 %v5695, %v5720
        %v5744 = vsub.f32 %v5696, %v5722
        %v5745 = vsub.f32 %v5697, %v5724
        %v5746 = vsub.f32 %v5698, %v5726
        %v5747 = vsub.f32 %v5699, %v5728
        %v5748 = vsub.f32 %v5700, %v5730
        %v5749 = vsub.f32 %v5701, %v5732
        %v5750 = vsub.f32 %v5702, %v5734
        %v5751 = vmul.f32 %v5735, 1.442695
        %v5752 = vpow.pop %v5751
        %v5753 = vmul.f32 %v5736, 1.442695
        %v5754 = vpow.pop %v5753
        %v5755 = vmul.f32 %v5737, 1.442695
        %v5756 = vpow.pop %v5755
        %v5757 = vmul.f32 %v5738, 1.442695
        %v5758 = vpow.pop %v5757
        %v5759 = vmul.f32 %v5739, 1.442695
        %v5760 = vpow.pop %v5759
        %v5761 = vmul.f32 %v5740, 1.442695
        %v5762 = vpow.pop %v5761
        %v5763 = vmul.f32 %v5741, 1.442695
        %v5764 = vpow.pop %v5763
        %v5765 = vmul.f32 %v5742, 1.442695
        %v5766 = vpow.pop %v5765
        %v5767 = vmul.f32 %v5743, 1.442695
        %v5768 = vpow.pop %v5767
        %v5769 = vmul.f32 %v5744, 1.442695
        %v5770 = vpow.pop %v5769
        %v5771 = vmul.f32 %v5745, 1.442695
        %v5772 = vpow.pop %v5771
        %v5773 = vmul.f32 %v5746, 1.442695
        %v5774 = vpow.pop %v5773
        %v5775 = vmul.f32 %v5747, 1.442695
        %v5776 = vpow.pop %v5775
        %v5777 = vmul.f32 %v5748, 1.442695
        %v5778 = vpow.pop %v5777
        %v5779 = vmul.f32 %v5749, 1.442695
        %v5780 = vpow.pop %v5779
        %v5781 = vmul.f32 %v5750, 1.442695
        %v5782 = vpow.pop %v5781
        %5783 = vadd.xlane.f32.xlu0 %v5752
        %v5784 = vpop.xlane.xlu0 %5783
        %5785 = vadd.xlane.f32.xlu0 %v5754
        %v5786 = vpop.xlane.xlu0 %5785
        %5787 = vadd.xlane.f32.xlu0 %v5756
        %v5788 = vpop.xlane.xlu0 %5787
        %5789 = vadd.xlane.f32.xlu0 %v5758
        %v5790 = vpop.xlane.xlu0 %5789
        %5791 = vadd.xlane.f32.xlu0 %v5760
        %v5792 = vpop.xlane.xlu0 %5791
        %5793 = vadd.xlane.f32.xlu0 %v5762
        %v5794 = vpop.xlane.xlu0 %5793
        %5795 = vadd.xlane.f32.xlu0 %v5764
        %v5796 = vpop.xlane.xlu0 %5795
        %5797 = vadd.xlane.f32.xlu0 %v5766
        %v5798 = vpop.xlane.xlu0 %5797
        %5799 = vadd.xlane.f32.xlu0 %v5768
        %v5800 = vpop.xlane.xlu0 %5799
        %5801 = vadd.xlane.f32.xlu0 %v5770
        %v5802 = vpop.xlane.xlu0 %5801
        %5803 = vadd.xlane.f32.xlu0 %v5772
        %v5804 = vpop.xlane.xlu0 %5803
        %5805 = vadd.xlane.f32.xlu0 %v5774
        %v5806 = vpop.xlane.xlu0 %5805
        %5807 = vadd.xlane.f32.xlu0 %v5776
        %v5808 = vpop.xlane.xlu0 %5807
        %5809 = vadd.xlane.f32.xlu0 %v5778
        %v5810 = vpop.xlane.xlu0 %5809
        %5811 = vadd.xlane.f32.xlu0 %v5780
        %v5812 = vpop.xlane.xlu0 %5811
        %5813 = vadd.xlane.f32.xlu0 %v5782
        %v5814 = vpop.xlane.xlu0 %5813
        %v5815 = vrcp.pop %v5784
        %v5816 = vmul.f32 %v5752, %v5815
        %v5817 = vrcp.pop %v5786
        %v5818 = vmul.f32 %v5754, %v5817
        %v5819 = vrcp.pop %v5788
        %v5820 = vmul.f32 %v5756, %v5819
        %v5821 = vrcp.pop %v5790
        %v5822 = vmul.f32 %v5758, %v5821
        %v5823 = vrcp.pop %v5792
        %v5824 = vmul.f32 %v5760, %v5823
        %v5825 = vrcp.pop %v5794
        %v5826 = vmul.f32 %v5762, %v5825
        %v5827 = vrcp.pop %v5796
        %v5828 = vmul.f32 %v5764, %v5827
        %v5829 = vrcp.pop %v5798
        %v5830 = vmul.f32 %v5766, %v5829
        %v5831 = vrcp.pop %v5800
        %v5832 = vmul.f32 %v5768, %v5831
        %v5833 = vrcp.pop %v5802
        %v5834 = vmul.f32 %v5770, %v5833
        %v5835 = vrcp.pop %v5804
        %v5836 = vmul.f32 %v5772, %v5835
        %v5837 = vrcp.pop %v5806
        %v5838 = vmul.f32 %v5774, %v5837
        %v5839 = vrcp.pop %v5808
        %v5840 = vmul.f32 %v5776, %v5839
        %v5841 = vrcp.pop %v5810
        %v5842 = vmul.f32 %v5778, %v5841
        %v5843 = vrcp.pop %v5812
        %v5844 = vmul.f32 %v5780, %v5843
        %v5845 = vrcp.pop %v5814
        %v5846 = vmul.f32 %v5782, %v5845
        %5847 = vmatprep.subr.mxu0 0.0
        %5848 = vmatpush1.xpose.msra.mxu0 %v5846
        %5849 = vmatprep.subr.mxu0 0.0
        %5850 = vmatpush1.xpose.msra.mxu0 %v5844
        %5851 = vmatprep.subr.mxu0 0.0
        %5852 = vmatpush1.xpose.msra.mxu0 %v5842
        %5853 = vmatprep.subr.mxu0 0.0
        %5854 = vmatpush1.xpose.msra.mxu0 %v5840
        %5855 = vmatprep.subr.mxu0 0.0
        %5856 = vmatpush1.xpose.msra.mxu0 %v5838
        %5857 = vmatprep.subr.mxu0 0.0
        %5858 = vmatpush1.xpose.msra.mxu0 %v5836
        %5859 = vmatprep.subr.mxu0 0.0
        %5860 = vmatpush1.xpose.msra.mxu0 %v5834
        %5861 = vmatprep.subr.mxu0 0.0
        %5862 = vmatpush1.xpose.msra.mxu0 %v5832
        %5863 = vmatprep.subr.mxu0 0.0
        %5864 = vmatpush1.xpose.msra.mxu0 %v5830
        %5865 = vmatprep.subr.mxu0 0.0
        %5866 = vmatpush1.xpose.msra.mxu0 %v5828
        %5867 = vmatprep.subr.mxu0 0.0
        %5868 = vmatpush1.xpose.msra.mxu0 %v5826
        %5869 = vmatprep.subr.mxu0 0.0
        %5870 = vmatpush1.xpose.msra.mxu0 %v5824
        %5871 = vmatprep.subr.mxu0 0.0
        %5872 = vmatpush1.xpose.msra.mxu0 %v5822
        %5873 = vmatprep.subr.mxu0 0.0
        %5874 = vmatpush1.xpose.msra.mxu0 %v5820
        %5875 = vmatprep.subr.mxu0 0.0
        %5876 = vmatpush1.xpose.msra.mxu0 %v5818
        %5877 = vmatprep.subr.mxu0 0.0
        %5878 = vmatpush1.xpose.msra.mxu0 %v5816
        %5879 = vmatprep.subr.mxu0 0.0
        %5880 = vmatpush2.xpose.msra.mxu0 0.0
        %5881 = vmatprep.subr.mxu0 0.0
        %5882 = vmatpush2.xpose.msra.mxu0 0.0
        %5883 = vmatprep.subr.mxu0 0.0
        %5884 = vmatpush2.xpose.msra.mxu0 0.0
        %5885 = vmatprep.subr.mxu0 0.0
        %5886 = vmatpush2.xpose.msra.mxu0 0.0
        %5887 = vmatprep.subr.mxu0 0.0
        %5888 = vmatpush2.xpose.msra.mxu0 0.0
        %5889 = vmatprep.subr.mxu0 0.0
        %5890 = vmatpush2.xpose.msra.mxu0 0.0
        %5891 = vmatprep.subr.mxu0 0.0
        %5892 = vmatpush2.xpose.msra.mxu0 0.0
        %5893 = vmatprep.subr.mxu0 0.0
        %5894 = vmatpush2.xpose.msra.mxu0 0.0
        %5895 = vmatprep.subr.mxu0 0.0
        %5896 = vmatpush2.xpose.msra.mxu0 0.0
        %5897 = vmatprep.subr.mxu0 0.0
        %5898 = vmatpush2.xpose.msra.mxu0 0.0
        %5899 = vmatprep.subr.mxu0 0.0
        %5900 = vmatpush2.xpose.msra.mxu0 0.0
        %5901 = vmatprep.subr.mxu0 0.0
        %5902 = vmatpush2.xpose.msra.mxu0 0.0
        %5903 = vmatprep.subr.mxu0 0.0
        %5904 = vmatpush2.xpose.msra.mxu0 0.0
        %5905 = vmatprep.subr.mxu0 0.0
        %5906 = vmatpush2.xpose.msra.mxu0 0.0
        %5907 = vmatprep.subr.mxu0 0.0
        %5908 = vmatpush2.xpose.msra.mxu0 0.0
        %5909 = vmatprep.subr.mxu0 0.0
        %5910 = vmatpush2.xpose.msra.mxu0 0.0
        %5911 = vmatprep.mubr.f32.mxu0 0.0
        %5912 = vmatmul.mubr.f32.gmra.mxu0 %v4341
        %v5913 = vpop.f32.mrf.mxu0
        %v5914 = vadd.f32 0.0, %v5913
        %v5915 = vpop.f32.mrf.mxu0
        %5916 = vdwg.mxu0
        %s5917 = scalar_lea.vmem %s3, 48
        %v5918 = vld [vmem:[%s5917] sm:$0xff]
        %v5919 = vld [vmem:[%s5917 + $0x8] sm:$0xff]
        %v5920 = vld [vmem:[%s5917 + $0x10] sm:$0xff]
        %v5922 = vsel %vm4392, %v5918, 0
        %v5925 = vsel %vm4392, %v5919, 0
        %v5928 = vsel %vm4392, %v5920, 0
        %5930 = vmatprep.subr.mxu0 0.0
        %5931 = vmatpush1.msra.mxu0 0.0
        %5932 = vmatprep.subr.mxu0 0.0
        %5933 = vmatpush1.msra.mxu0 0.0
        %5934 = vmatprep.subr.mxu0 0.0
        %5935 = vmatpush1.msra.mxu0 0.0
        %5936 = vmatprep.subr.mxu0 0.0
        %5937 = vmatpush1.msra.mxu0 0.0
        %5938 = vmatprep.subr.mxu0 0.0
        %5939 = vmatpush1.msra.mxu0 0.0
        %5940 = vmatprep.subr.mxu0 0.0
        %5941 = vmatpush1.msra.mxu0 0.0
        %5942 = vmatprep.subr.mxu0 0.0
        %5943 = vmatpush1.msra.mxu0 0.0
        %5944 = vmatprep.subr.mxu0 0.0
        %5945 = vmatpush1.msra.mxu0 0.0
        %5946 = vmatprep.subr.mxu0 0.0
        %5947 = vmatpush1.msra.mxu0 0.0
        %5948 = vmatprep.subr.mxu0 0.0
        %5949 = vmatpush1.msra.mxu0 0.0
        %5950 = vmatprep.subr.mxu0 0.0
        %5951 = vmatpush1.msra.mxu0 0.0
        %5952 = vmatprep.subr.mxu0 0.0
        %5953 = vmatpush1.msra.mxu0 0.0
        %5954 = vmatprep.subr.mxu0 0.0
        %5955 = vmatpush1.msra.mxu0 0.0
        %5956 = vmatprep.subr.mxu0 0.0
        %5957 = vmatpush1.msra.mxu0 0.0
        %5958 = vmatprep.subr.mxu0 0.0
        %5959 = vmatpush1.msra.mxu0 0.0
        %5960 = vmatprep.subr.mxu0 0.0
        %5961 = vmatpush1.msra.mxu0 %v5914
        %5962 = vmatprep.subr.mxu0 0.0
        %5963 = vmatpush2.msra.mxu0 0.0
        %5964 = vmatprep.subr.mxu0 0.0
        %5965 = vmatpush2.msra.mxu0 0.0
        %5966 = vmatprep.subr.mxu0 0.0
        %5967 = vmatpush2.msra.mxu0 0.0
        %5968 = vmatprep.subr.mxu0 0.0
        %5969 = vmatpush2.msra.mxu0 0.0
        %5970 = vmatprep.subr.mxu0 0.0
        %5971 = vmatpush2.msra.mxu0 0.0
        %5972 = vmatprep.subr.mxu0 0.0
        %5973 = vmatpush2.msra.mxu0 0.0
        %5974 = vmatprep.subr.mxu0 0.0
        %5975 = vmatpush2.msra.mxu0 0.0
        %5976 = vmatprep.subr.mxu0 0.0
        %5977 = vmatpush2.msra.mxu0 0.0
        %5978 = vmatprep.subr.mxu0 0.0
        %5979 = vmatpush2.msra.mxu0 0.0
        %5980 = vmatprep.subr.mxu0 0.0
        %5981 = vmatpush2.msra.mxu0 0.0
        %5982 = vmatprep.subr.mxu0 0.0
        %5983 = vmatpush2.msra.mxu0 0.0
        %5984 = vmatprep.subr.mxu0 0.0
        %5985 = vmatpush2.msra.mxu0 0.0
        %5986 = vmatprep.subr.mxu0 0.0
        %5987 = vmatpush2.msra.mxu0 0.0
        %5988 = vmatprep.subr.mxu0 0.0
        %5989 = vmatpush2.msra.mxu0 0.0
        %5990 = vmatprep.subr.mxu0 0.0
        %5991 = vmatpush2.msra.mxu0 0.0
        %5992 = vmatprep.subr.mxu0 0.0
        %5993 = vmatpush2.msra.mxu0 0.0
        %5994 = vmatprep.mubr.f32.mxu0 0.0
        %5995 = vmatmul.mubr.f32.gmra.mxu0 %v5922
        %v5996 = vpop.f32.mrf.mxu0
        %v5997 = vadd.f32 0.0, %v5996
        %v5998 = vpop.f32.mrf.mxu0
        %5999 = vmatprep.mubr.f32.mxu0 0.0
        %6000 = vmatmul.mubr.f32.gmra.mxu0 %v5925
        %v6001 = vpop.f32.mrf.mxu0
        %v6002 = vadd.f32 0.0, %v6001
        %v6003 = vpop.f32.mrf.mxu0
        %6004 = vmatprep.mubr.f32.mxu0 0.0
        %6005 = vmatmul.mubr.f32.gmra.mxu0 %v5928
        %v6006 = vpop.f32.mrf.mxu0
        %v6007 = vadd.f32 0.0, %v6006
        %v6008 = vpop.f32.mrf.mxu0
        %6009 = vdwg.mxu0
        %v6010 = vadd.f32 %v5459, %v5997
        %v6011 = vadd.f32 %v5460, %v6002
        %v6012 = vadd.f32 %v5461, %v6007
        %v6013 = vtanh.pop %v6010
        %v6014 = vtanh.pop %v6011
        %v6015 = vtanh.pop %v6012
        %6016 = vst [vmem:[%s217] sm:$0xff] %v6013
        %6017 = vst [vmem:[%s217 + $0x8] sm:$0xff] %v6014
        %6018 = vst [vmem:[%s217 + $0x10] sm:$0xff] %v6015
        %s6019 = sand.u32 %s137, 1
        %s6020 = scalar_lea.sflag [#allocation3], %s6019
        %s6021 = sand.u32 %s137, 1
        %s6022 = smul.addr %s6021, 24
        %s6023 = scalar_lea.vmem [#allocation2], %s6022
        // Predicated region
        $region41: #{tpu_custom_call.1} parent=39 // pred_check
          %p6024 = pneg %p147
        $region42: #{tpu_custom_call.1} parent=39 // pred_check_branch
          %6026 = sbr.rel (%p6024) target = $region44
        $region43: #{tpu_custom_call.1} parent=39 // pred_region
          %s6028 = ssub.s32 384, 384
          %6029 = vsyncadd %s6020, %s6028
          %s6030 = smul.addr %s19, 3
          %s6031 = smul.addr %s6030, 128
          %s6032 = scalar_lea.hbm %s5, %s6031
          %s6033 = sshll.u32 %s6023, 4
          %s6034 = int_to_ptr.vmem [resolvable:$true] %s6033
          %6039 = dma.vmem_to_hbm [thread:$0]  %s6034, 384, %s6032, %s6020, 128, 128, 8
        $region44: #{tpu_custom_call.1} parent=39 // pred_fallthru
          _
      $region40: #{tpu_custom_call.1} parent=5 // pred_fallthru
        _
      %p6040 = scmp.le.s32.totalorder 2, %s14
      // Predicated region
      $region45: #{tpu_custom_call.1} parent=5 // pred_check
        %p6041 = pneg %p6040
      $region46: #{tpu_custom_call.1} parent=5 // pred_check_branch
        %6043 = sbr.rel (%p6041) target = $region48
      $region47: #{tpu_custom_call.1} parent=5 // pred_region
        %s6044 = ssub.s32 %s14, 2
        // Predicated region
        $region49: #{tpu_custom_call.1} parent=47 // pred_check
          %p6045 = pneg %p153
        $region50: #{tpu_custom_call.1} parent=47 // pred_check_branch
          %6047 = sbr.rel (%p6045) target = $region52
        $region51: #{tpu_custom_call.1} parent=47 // pred_region
          %s6048 = sand.u32 %s138, 1
          %s6049 = scalar_lea.sflag [#allocation3], %s6048
          %s6050 = sand.u32 %s138, 1
          %s6051 = smul.addr %s6050, 24
          %s6052 = scalar_lea.vmem [#allocation2], %s6051
          %6053 = dma.done %s6049, 384
        $region52: #{tpu_custom_call.1} parent=47 // pred_fallthru
          _
      $region48: #{tpu_custom_call.1} parent=5 // pred_fallthru
        _
    $region6: #{tpu_custom_call.1} parent=1 // loop_footer
      %s18 = sadd.s32 1, %s14
    $region7: #{tpu_custom_call.1} parent=1 // loop_footer_branch
      %13 = sbr.rel target = $region3
    $region8: #{tpu_custom_call.1} parent=1 // loop_exit
      _
    %6054 = vsyncpa [#allocation3], 1
    %s6055 = scalar_lea.sflag [#allocation3], 1
    %6056 = vsyncpa %s6055, 1

</llo_original>
